<compile_context>
chip_gen: v7x
topology: tpu7x:2x2x1
jax: 0.10.0
libtpu: 0.0.40
codegen_flags: <defaults>
</compile_context>

<pallas_src>
import numpy as np
import jax
import jax.numpy as jnp
from jax.experimental import pallas as pl
from jax.experimental.pallas import tpu as pltpu


def _ceil_to(x, m):
    return ((x + m - 1) // m) * m


def _sigmoid(x):
    # Exact identity: sigmoid(x) = 0.5*tanh(0.5*x) + 0.5.
    # Only the tanh goes to the (single-slot) EUP; the affine part is VPU work.
    return 0.5 * jnp.tanh(0.5 * x) + 0.5


# ---------------------------------------------------------------------------
# Recurrence kernel: consumes precomputed, TIME-MAJOR input gates
# (Tp, Bp, 4*Hp) in blocks of (TT, BB, 4*Hp); per step only h_prev @ W_hh^T
# runs on the MXU.  Gate order matches PyTorch: i, f, g, o.
# Two independent half-batch chains (A = rows [0, BBH), B = rows [BBH, BB))
# are interleaved for latency hiding.
# ---------------------------------------------------------------------------
def _make_lstm_kernel(TT, T_real, needs_mask, BBH):
    def kernel(gx_ref, whh_ref, out_ref, hn_ref, cn_ref,
               h0_sc, c0_sc, h1_sc, c1_sc):
        tb = pl.program_id(1)                      # time-block index (serial)

        @pl.when(tb == 0)
        def _():
            h0_sc[...] = jnp.zeros_like(h0_sc)
            c0_sc[...] = jnp.zeros_like(c0_sc)
            h1_sc[...] = jnp.zeros_like(h1_sc)
            c1_sc[...] = jnp.zeros_like(c1_sc)

        Hp = h0_sc.shape[-1]
        hA, cA = h0_sc[...], c0_sc[...]            # (BBH, Hp)
        hB, cB = h1_sc[...], c1_sc[...]            # (BBH, Hp)

        def cell(gates, h, c):
            # Hp is a multiple of 128 -> all gate slices are lane-tile aligned.
            i_g = _sigmoid(gates[:, 0 * Hp:1 * Hp])
            f_g = _sigmoid(gates[:, 1 * Hp:2 * Hp])
            g_g = jnp.tanh(gates[:, 2 * Hp:3 * Hp])
            o_g = _sigmoid(gates[:, 3 * Hp:4 * Hp])
            c_new = f_g * c + i_g * g_g
            h_new = o_g * jnp.tanh(c_new)
            return h_new, c_new

        # Moderate static unroll over the TT timesteps of this block.
        for tt in range(TT):
            gx_t = gx_ref[tt]                      # (BB, 4Hp) full-tile load

            # Two independent half-batch recurrent matmuls + nonlinearities:
            # the scheduler can overlap B's MXU push with A's EUP work.
            gatesA = gx_t[:BBH, :] + jnp.dot(
                hA, whh_ref[...], preferred_element_type=jnp.float32)
            gatesB = gx_t[BBH:, :] + jnp.dot(
                hB, whh_ref[...], preferred_element_type=jnp.float32)

            hA_new, cA_new = cell(gatesA, hA, cA)
            hB_new, cB_new = cell(gatesB, hB, cB)

            if needs_mask:  # only traced when T was padded up to a TT multiple
                valid = (tb * TT + tt) < T_real
                hA_new = jnp.where(valid, hA_new, hA)
                cA_new = jnp.where(valid, cA_new, cA)
                hB_new = jnp.where(valid, hB_new, hB)
                cB_new = jnp.where(valid, cB_new, cB)

            hA, cA = hA_new, cA_new
            hB, cB = hB_new, cB_new

            # Leading-axis, sublane-aligned, lane-dense full stores (no masks).
            out_ref[tt, :BBH, :] = hA.astype(out_ref.dtype)
            out_ref[tt, BBH:, :] = hB.astype(out_ref.dtype)

        h0_sc[...], c0_sc[...] = hA, cA
        h1_sc[...], c1_sc[...] = hB, cB

        # Only the final time block writes hn/cn (no dead stores).
        @pl.when(tb == pl.num_programs(1) - 1)
        def _():
            hn_ref[:BBH, :] = hA.astype(hn_ref.dtype)
            hn_ref[BBH:, :] = hB.astype(hn_ref.dtype)
            cn_ref[:BBH, :] = cA.astype(cn_ref.dtype)
            cn_ref[BBH:, :] = cB.astype(cn_ref.dtype)

    return kernel


def _vmem_estimate_bytes(BB, TT, G, Hp):
    dsz = 4  # f32
    gates = 2 * TT * BB * G * dsz        # double-buffered gate input block
    outb = 2 * TT * BB * Hp * dsz        # double-buffered output block
    whh = 2 * Hp * G * dsz               # W_hh (double-buffered by default)
    hcout = 2 * 2 * BB * Hp * dsz        # hn, cn output blocks
    scr = 2 * BB * Hp * dsz              # h/c scratch (4 halves)
    return gates + outb + whh + hcout + scr


def lstm_pallas(emb, w_ih, w_hh, b_ih, b_hh):
    """emb: (B, T, E) float32 batch-first.
       w_ih: (4H, E), w_hh: (4H, H), biases (4H,) in PyTorch nn.LSTM layout."""
    B, T, E = emb.shape
    H = w_hh.shape[1]
    Hp = _ceil_to(H, 128)        # lane-align hidden dim
    G = 4 * Hp

    # --- per-gate zero padding of weights / bias to Hp (provably inert:
    # padded gate lanes stay exactly 0 -> i=f=o=0.5, g=0 -> padded h/c lanes
    # stay 0 forever; padded W_hh rows/cols are 0 so they contribute nothing).
    def pad_gate_rows(w):        # (4H, X) -> (4Hp, X)
        w4 = w.reshape(4, H, -1).astype(jnp.float32)
        w4 = jnp.pad(w4, ((0, 0), (0, Hp - H), (0, 0)))
        return w4.reshape(4 * Hp, -1)

    wih_p = pad_gate_rows(w_ih)                                   # (4Hp, E)
    whh_p = pad_gate_rows(w_hh)                                   # (4Hp, H)
    whh_p = jnp.pad(whh_p, ((0, 0), (0, Hp - H)))                 # (4Hp, Hp)
    bias_p = jnp.pad((b_ih + b_hh).astype(jnp.float32).reshape(4, H),
                     ((0, 0), (0, Hp - H))).reshape(4 * Hp)       # (4Hp,)

    # --- hoisted input projection: ONE big MXU matmul over all timesteps,
    # produced directly TIME-MAJOR (T, B, 4Hp) so the kernel's per-step read
    # is a leading-axis full-tile load.
    gates_x = jnp.einsum('bte,ge->tbg', emb.astype(jnp.float32), wih_p) + bias_p

    # --- tile selection ------------------------------------------------------
    # BB: power-of-two multiple of 16 (two sublane-aligned half-chains),
    # capped at 128 and by a ~24 MiB VMEM budget (safe on v7x's 64 MiB VMEM).
    # TODO(synk): on v6e/v7x, bf16 gates_x/whh would halve the gate stream and
    # allow BB=256 / larger TT, but risks the 1e-4 f32 tolerance.
    Bp_min = _ceil_to(B, 16)
    BB = 16
    while BB < min(Bp_min, 128):
        BB *= 2

    TT = max(1, min(T, 16))                        # moderate static unroll
    _BUDGET = 24 * 1024 * 1024
    while TT > 1 and _vmem_estimate_bytes(BB, TT, G, Hp) > _BUDGET:
        TT //= 2
    while BB > 16 and _vmem_estimate_bytes(BB, TT, G, Hp) > _BUDGET:
        BB //= 2

    Bp = _ceil_to(B, BB)
    Tp = _ceil_to(T, TT)
    needs_mask = (Tp != T)

    gates_x = jnp.pad(gates_x, ((0, Tp - T), (0, Bp - B), (0, 0)))  # (Tp,Bp,G)
    whh_t = jnp.transpose(whh_p)                                    # (Hp, 4Hp)

    kernel = _make_lstm_kernel(TT, T, needs_mask, BB // 2)

    out_tm, hn, cn = pl.pallas_call(
        kernel,
        out_shape=(jax.ShapeDtypeStruct((Tp, Bp, Hp), jnp.float32),
                   jax.ShapeDtypeStruct((Bp, Hp), jnp.float32),
                   jax.ShapeDtypeStruct((Bp, Hp), jnp.float32)),
        grid_spec=pltpu.PrefetchScalarGridSpec(
            num_scalar_prefetch=0,
            grid=(Bp // BB, Tp // TT),
            in_specs=[pl.BlockSpec((TT, BB, G), lambda bb, tb: (tb, bb, 0)),
                      pl.BlockSpec((Hp, G), lambda bb, tb: (0, 0))],
            out_specs=[pl.BlockSpec((TT, BB, Hp), lambda bb, tb: (tb, bb, 0)),
                       pl.BlockSpec((BB, Hp), lambda bb, tb: (bb, 0)),
                       pl.BlockSpec((BB, Hp), lambda bb, tb: (bb, 0))],
            scratch_shapes=[pltpu.VMEM((BB // 2, Hp), jnp.float32)] * 4),
        compiler_params=pltpu.CompilerParams(
            # batch blocks independent -> "parallel" (megacore on v7x);
            # recurrence over time blocks -> "arbitrary" (sequential, inner).
            dimension_semantics=("parallel", "arbitrary"),
            vmem_limit_bytes=32 * 1024 * 1024),
    )(gates_x, whh_t)

    # time-major -> batch-first, strip lane / sublane / time padding
    out = jnp.transpose(out_tm[:T, :B, :H], (1, 0, 2))              # (B, T, H)
    return out, hn[:B, :H], cn[:B, :H]


# ---------------------------------------------------------------------------
# Encoder forward (default config: embeddings.mode='bert_weights_extracted',
# dropout=0, lstm.layers=1, bidirectional=False, sequence_encoding='lstm')
# ---------------------------------------------------------------------------
def encoder_forward(params, input_ids):
    # TODO(synk): only the default config path is implemented; the full-BERT
    # 'bert' / 'bert_pooled' branches and dropout>0 have no kernel here.
    emb = params["embedding"][input_ids]              # (B, T, E) gather
    outputs, hn, cn = lstm_pallas(emb, params["w_ih"], params["w_hh"],
                                  params["b_ih"], params["b_hh"])
    return outputs, hn[None], cn[None]                # (B,T,H), (1,B,H), (1,B,H)


# ---------------------------------------------------------------------------
# Pure-JAX reference (lax.scan LSTM) for the correctness check
# ---------------------------------------------------------------------------
def encoder_forward_ref(params, input_ids):
    emb = params["embedding"][input_ids]              # (B, T, E)
    w_ih, w_hh = params["w_ih"], params["w_hh"]
    b = params["b_ih"] + params["b_hh"]
    H = w_hh.shape[1]
    B = emb.shape[0]

    def step(carry, x_t):
        h, c = carry
        gates = x_t @ w_ih.T + h @ w_hh.T + b
        i = jax.nn.sigmoid(gates[:, 0 * H:1 * H])
        f = jax.nn.sigmoid(gates[:, 1 * H:2 * H])
        g = jnp.tanh(gates[:, 2 * H:3 * H])
        o = jax.nn.sigmoid(gates[:, 3 * H:4 * H])
        c_new = f * c + i * g
        h_new = o * jnp.tanh(c_new)
        return (h_new, c_new), h_new

    h0 = jnp.zeros((B, H), jnp.float32)
    c0 = jnp.zeros((B, H), jnp.float32)
    (hn, cn), outs = jax.lax.scan(step, (h0, c0), jnp.transpose(emb, (1, 0, 2)))
    return jnp.transpose(outs, (1, 0, 2)), hn[None], cn[None]


if __name__ == "__main__":
    # small shapes implied by the module: batch=2, seq=8, embed=32, hidden=32
    B, T, E, H, V = 2, 8, 32, 32, 100

    key = jax.random.PRNGKey(0)
    k_emb, k_wih, k_whh, k_bih, k_bhh, k_ids = jax.random.split(key, 6)
    bound = 1.0 / np.sqrt(H)   # torch.nn.LSTM default init: U(-1/sqrt(H), 1/sqrt(H))
    params = {
        "embedding": jax.random.normal(k_emb, (V, E), jnp.float32) * 0.02,
        "w_ih": jax.random.uniform(k_wih, (4 * H, E), jnp.float32, -bound, bound),
        "w_hh": jax.random.uniform(k_whh, (4 * H, H), jnp.float32, -bound, bound),
        "b_ih": jax.random.uniform(k_bih, (4 * H,), jnp.float32, -bound, bound),
        "b_hh": jax.random.uniform(k_bhh, (4 * H,), jnp.float32, -bound, bound),
    }
    input_ids = jax.random.randint(k_ids, (B, T), 0, V)

    outputs, hn, cn = encoder_forward(params, input_ids)
    jax.block_until_ready((outputs, hn, cn))

    # correctness check against the pure-JAX reference
    ref_out, ref_hn, ref_cn = encoder_forward_ref(params, input_ids)
    np.testing.assert_allclose(np.asarray(outputs), np.asarray(ref_out),
                               rtol=1e-4, atol=1e-4)
    np.testing.assert_allclose(np.asarray(hn), np.asarray(ref_hn),
                               rtol=1e-4, atol=1e-4)
    np.testing.assert_allclose(np.asarray(cn), np.asarray(ref_cn),
                               rtol=1e-4, atol=1e-4)

    assert outputs.shape == (B, T, H) and hn.shape == (1, B, H) and cn.shape == (1, B, H)
    print("KERNEL_OK")
</pallas_src>

<mosaic_0001>
module attributes {stable_mosaic.version = 11 : i64} {
  func.func @kernel(%arg0: i32, %arg1: i32, %arg2: memref<8x16x512xf32, #tpu.memory_space<vmem>>, %arg3: memref<128x512xf32, #tpu.memory_space<vmem>>, %arg4: memref<8x16x128xf32, #tpu.memory_space<vmem>>, %arg5: memref<16x128xf32, #tpu.memory_space<vmem>>, %arg6: memref<16x128xf32, #tpu.memory_space<vmem>>, %arg7: memref<8x128xf32, #tpu.memory_space<vmem>>, %arg8: memref<8x128xf32, #tpu.memory_space<vmem>>, %arg9: memref<8x128xf32, #tpu.memory_space<vmem>>, %arg10: memref<8x128xf32, #tpu.memory_space<vmem>>) attributes {dimension_semantics = [#tpu.dimension_semantics<parallel>, #tpu.dimension_semantics<arbitrary>], iteration_bounds = array<i64: 1, 1>, scalar_prefetch = 0 : i64, scratch_operands = 4 : i64, tpu.core_type = #tpu.core_type<tc>, window_params = [{transform_indices = @transform_0, window_bounds = array<i64: 8, 16, 512>}, {pipeline_mode = #tpu.pipeline_mode<synchronous>, transform_indices = @transform_1, window_bounds = array<i64: 128, 512>}, {transform_indices = @transform_2, window_bounds = array<i64: 8, 16, 128>}, {transform_indices = @transform_3, window_bounds = array<i64: 16, 128>}, {transform_indices = @transform_4, window_bounds = array<i64: 16, 128>}]} {
    %c0_i32 = arith.constant 0 : i32
    %0 = arith.cmpi eq, %arg1, %c0_i32 : i32
    %1 = arith.extui %0 : i1 to i32
    %c0_i32_0 = arith.constant 0 : i32
    %2 = arith.cmpi ne, %1, %c0_i32_0 : i32
    scf.if %2 {
      %cst_273 = arith.constant 0.000000e+00 : f32
      %638 = vector.broadcast %cst_273 : f32 to vector<8x128xf32>
      %c0_274 = arith.constant 0 : index
      %c0_275 = arith.constant 0 : index
      %639 = vector.load %arg7[%c0_274, %c0_275] : memref<8x128xf32, #tpu.memory_space<vmem>>, vector<8x128xf32>
      tpu.vector_store %arg7[%c0_274, %c0_275], %638 {strides = array<i32>} : memref<8x128xf32, #tpu.memory_space<vmem>>, vector<8x128xf32>,
      %cst_276 = arith.constant 0.000000e+00 : f32
      %640 = vector.broadcast %cst_276 : f32 to vector<8x128xf32>
      %c0_277 = arith.constant 0 : index
      %c0_278 = arith.constant 0 : index
      %641 = vector.load %arg8[%c0_277, %c0_278] : memref<8x128xf32, #tpu.memory_space<vmem>>, vector<8x128xf32>
      tpu.vector_store %arg8[%c0_277, %c0_278], %640 {strides = array<i32>} : memref<8x128xf32, #tpu.memory_space<vmem>>, vector<8x128xf32>,
      %cst_279 = arith.constant 0.000000e+00 : f32
      %642 = vector.broadcast %cst_279 : f32 to vector<8x128xf32>
      %c0_280 = arith.constant 0 : index
      %c0_281 = arith.constant 0 : index
      %643 = vector.load %arg9[%c0_280, %c0_281] : memref<8x128xf32, #tpu.memory_space<vmem>>, vector<8x128xf32>
      tpu.vector_store %arg9[%c0_280, %c0_281], %642 {strides = array<i32>} : memref<8x128xf32, #tpu.memory_space<vmem>>, vector<8x128xf32>,
      %cst_282 = arith.constant 0.000000e+00 : f32
      %644 = vector.broadcast %cst_282 : f32 to vector<8x128xf32>
      %c0_283 = arith.constant 0 : index
      %c0_284 = arith.constant 0 : index
      %645 = vector.load %arg10[%c0_283, %c0_284] : memref<8x128xf32, #tpu.memory_space<vmem>>, vector<8x128xf32>
      tpu.vector_store %arg10[%c0_283, %c0_284], %644 {strides = array<i32>} : memref<8x128xf32, #tpu.memory_space<vmem>>, vector<8x128xf32>,
    } else {
    }
    %c0 = arith.constant 0 : index
    %c0_1 = arith.constant 0 : index
    %3 = vector.load %arg7[%c0, %c0_1] : memref<8x128xf32, #tpu.memory_space<vmem>>, vector<8x128xf32>
    %c0_2 = arith.constant 0 : index
    %c0_3 = arith.constant 0 : index
    %4 = vector.load %arg8[%c0_2, %c0_3] : memref<8x128xf32, #tpu.memory_space<vmem>>, vector<8x128xf32>
    %c0_4 = arith.constant 0 : index
    %c0_5 = arith.constant 0 : index
    %5 = vector.load %arg9[%c0_4, %c0_5] : memref<8x128xf32, #tpu.memory_space<vmem>>, vector<8x128xf32>
    %c0_6 = arith.constant 0 : index
    %c0_7 = arith.constant 0 : index
    %6 = vector.load %arg10[%c0_6, %c0_7] : memref<8x128xf32, #tpu.memory_space<vmem>>, vector<8x128xf32>
    %c0_8 = arith.constant 0 : index
    %c0_9 = arith.constant 0 : index
    %c0_10 = arith.constant 0 : index
    %7 = vector.load %arg2[%c0_8, %c0_9, %c0_10] : memref<8x16x512xf32, #tpu.memory_space<vmem>>, vector<1x16x512xf32>
    %8 = vector.shape_cast %7 : vector<1x16x512xf32> to vector<16x512xf32>
    %9 = vector.extract_strided_slice %8 {offsets = [0, 0], sizes = [8, 512], strides = [1, 1]} : vector<16x512xf32> to vector<8x512xf32>
    %c0_11 = arith.constant 0 : index
    %c0_12 = arith.constant 0 : index
    %10 = vector.load %arg3[%c0_11, %c0_12] : memref<128x512xf32, #tpu.memory_space<vmem>>, vector<128x512xf32>
    %cst = arith.constant dense<0.000000e+00> : vector<8x512xf32>
    %11 = tpu.matmul %3, %10, %cst {dimension_numbers = #tpu.dot_dimension_numbers<[1], [0], [0], [1], [0, 0, 1, 1], [], []>} : vector<8x128xf32>, vector<128x512xf32>, vector<8x512xf32> -> vector<8x512xf32>
    %12 = arith.addf %9, %11 : vector<8x512xf32>
    %13 = vector.extract_strided_slice %8 {offsets = [8, 0], sizes = [8, 512], strides = [1, 1]} : vector<16x512xf32> to vector<8x512xf32>
    %c0_13 = arith.constant 0 : index
    %c0_14 = arith.constant 0 : index
    %14 = vector.load %arg3[%c0_13, %c0_14] : memref<128x512xf32, #tpu.memory_space<vmem>>, vector<128x512xf32>
    %cst_15 = arith.constant dense<0.000000e+00> : vector<8x512xf32>
    %15 = tpu.matmul %5, %14, %cst_15 {dimension_numbers = #tpu.dot_dimension_numbers<[1], [0], [0], [1], [0, 0, 1, 1], [], []>} : vector<8x128xf32>, vector<128x512xf32>, vector<8x512xf32> -> vector<8x512xf32>
    %16 = arith.addf %13, %15 : vector<8x512xf32>
    %17 = vector.extract_strided_slice %12 {offsets = [0, 0], sizes = [8, 128], strides = [1, 1]} : vector<8x512xf32> to vector<8x128xf32>
    %cst_16 = arith.constant 5.000000e-01 : f32
    %18 = vector.broadcast %cst_16 : f32 to vector<8x128xf32>
    %19 = arith.mulf %18, %17 : vector<8x128xf32>
    %20 = math.tanh %19 : vector<8x128xf32>
    %cst_17 = arith.constant 5.000000e-01 : f32
    %21 = vector.broadcast %cst_17 : f32 to vector<8x128xf32>
    %22 = arith.mulf %21, %20 : vector<8x128xf32>
    %cst_18 = arith.constant 5.000000e-01 : f32
    %23 = vector.broadcast %cst_18 : f32 to vector<8x128xf32>
    %24 = arith.addf %22, %23 : vector<8x128xf32>
    %25 = vector.extract_strided_slice %12 {offsets = [0, 128], sizes = [8, 128], strides = [1, 1]} : vector<8x512xf32> to vector<8x128xf32>
    %cst_19 = arith.constant 5.000000e-01 : f32
    %26 = vector.broadcast %cst_19 : f32 to vector<8x128xf32>
    %27 = arith.mulf %26, %25 : vector<8x128xf32>
    %28 = math.tanh %27 : vector<8x128xf32>
    %cst_20 = arith.constant 5.000000e-01 : f32
    %29 = vector.broadcast %cst_20 : f32 to vector<8x128xf32>
    %30 = arith.mulf %29, %28 : vector<8x128xf32>
    %cst_21 = arith.constant 5.000000e-01 : f32
    %31 = vector.broadcast %cst_21 : f32 to vector<8x128xf32>
    %32 = arith.addf %30, %31 : vector<8x128xf32>
    %33 = vector.extract_strided_slice %12 {offsets = [0, 256], sizes = [8, 128], strides = [1, 1]} : vector<8x512xf32> to vector<8x128xf32>
    %34 = math.tanh %33 : vector<8x128xf32>
    %35 = vector.extract_strided_slice %12 {offsets = [0, 384], sizes = [8, 128], strides = [1, 1]} : vector<8x512xf32> to vector<8x128xf32>
    %cst_22 = arith.constant 5.000000e-01 : f32
    %36 = vector.broadcast %cst_22 : f32 to vector<8x128xf32>
    %37 = arith.mulf %36, %35 : vector<8x128xf32>
    %38 = math.tanh %37 : vector<8x128xf32>
    %cst_23 = arith.constant 5.000000e-01 : f32
    %39 = vector.broadcast %cst_23 : f32 to vector<8x128xf32>
    %40 = arith.mulf %39, %38 : vector<8x128xf32>
    %cst_24 = arith.constant 5.000000e-01 : f32
    %41 = vector.broadcast %cst_24 : f32 to vector<8x128xf32>
    %42 = arith.addf %40, %41 : vector<8x128xf32>
    %43 = arith.mulf %32, %4 : vector<8x128xf32>
    %44 = arith.mulf %24, %34 : vector<8x128xf32>
    %45 = arith.addf %43, %44 : vector<8x128xf32>
    %46 = math.tanh %45 : vector<8x128xf32>
    %47 = arith.mulf %42, %46 : vector<8x128xf32>
    %48 = vector.extract_strided_slice %16 {offsets = [0, 0], sizes = [8, 128], strides = [1, 1]} : vector<8x512xf32> to vector<8x128xf32>
    %cst_25 = arith.constant 5.000000e-01 : f32
    %49 = vector.broadcast %cst_25 : f32 to vector<8x128xf32>
    %50 = arith.mulf %49, %48 : vector<8x128xf32>
    %51 = math.tanh %50 : vector<8x128xf32>
    %cst_26 = arith.constant 5.000000e-01 : f32
    %52 = vector.broadcast %cst_26 : f32 to vector<8x128xf32>
    %53 = arith.mulf %52, %51 : vector<8x128xf32>
    %cst_27 = arith.constant 5.000000e-01 : f32
    %54 = vector.broadcast %cst_27 : f32 to vector<8x128xf32>
    %55 = arith.addf %53, %54 : vector<8x128xf32>
    %56 = vector.extract_strided_slice %16 {offsets = [0, 128], sizes = [8, 128], strides = [1, 1]} : vector<8x512xf32> to vector<8x128xf32>
    %cst_28 = arith.constant 5.000000e-01 : f32
    %57 = vector.broadcast %cst_28 : f32 to vector<8x128xf32>
    %58 = arith.mulf %57, %56 : vector<8x128xf32>
    %59 = math.tanh %58 : vector<8x128xf32>
    %cst_29 = arith.constant 5.000000e-01 : f32
    %60 = vector.broadcast %cst_29 : f32 to vector<8x128xf32>
    %61 = arith.mulf %60, %59 : vector<8x128xf32>
    %cst_30 = arith.constant 5.000000e-01 : f32
    %62 = vector.broadcast %cst_30 : f32 to vector<8x128xf32>
    %63 = arith.addf %61, %62 : vector<8x128xf32>
    %64 = vector.extract_strided_slice %16 {offsets = [0, 256], sizes = [8, 128], strides = [1, 1]} : vector<8x512xf32> to vector<8x128xf32>
    %65 = math.tanh %64 : vector<8x128xf32>
    %66 = vector.extract_strided_slice %16 {offsets = [0, 384], sizes = [8, 128], strides = [1, 1]} : vector<8x512xf32> to vector<8x128xf32>
    %cst_31 = arith.constant 5.000000e-01 : f32
    %67 = vector.broadcast %cst_31 : f32 to vector<8x128xf32>
    %68 = arith.mulf %67, %66 : vector<8x128xf32>
    %69 = math.tanh %68 : vector<8x128xf32>
    %cst_32 = arith.constant 5.000000e-01 : f32
    %70 = vector.broadcast %cst_32 : f32 to vector<8x128xf32>
    %71 = arith.mulf %70, %69 : vector<8x128xf32>
    %cst_33 = arith.constant 5.000000e-01 : f32
    %72 = vector.broadcast %cst_33 : f32 to vector<8x128xf32>
    %73 = arith.addf %71, %72 : vector<8x128xf32>
    %74 = arith.mulf %63, %6 : vector<8x128xf32>
    %75 = arith.mulf %55, %65 : vector<8x128xf32>
    %76 = arith.addf %74, %75 : vector<8x128xf32>
    %77 = math.tanh %76 : vector<8x128xf32>
    %78 = arith.mulf %73, %77 : vector<8x128xf32>
    %c0_34 = arith.constant 0 : index
    %c0_35 = arith.constant 0 : index
    %c0_36 = arith.constant 0 : index
    %79 = vector.load %arg4[%c0_34, %c0_35, %c0_36] : memref<8x16x128xf32, #tpu.memory_space<vmem>>, vector<1x8x128xf32>
    %80 = vector.shape_cast %79 : vector<1x8x128xf32> to vector<8x128xf32>
    %81 = vector.shape_cast %47 : vector<8x128xf32> to vector<1x8x128xf32>
    tpu.vector_store %arg4[%c0_34, %c0_35, %c0_36], %81 {strides = array<i32>} : memref<8x16x128xf32, #tpu.memory_space<vmem>>, vector<1x8x128xf32>,
    %c0_37 = arith.constant 0 : index
    %c8 = arith.constant 8 : index
    %c0_38 = arith.constant 0 : index
    %82 = vector.load %arg4[%c0_37, %c8, %c0_38] : memref<8x16x128xf32, #tpu.memory_space<vmem>>, vector<1x8x128xf32>
    %83 = vector.shape_cast %82 : vector<1x8x128xf32> to vector<8x128xf32>
    %84 = vector.shape_cast %78 : vector<8x128xf32> to vector<1x8x128xf32>
    tpu.vector_store %arg4[%c0_37, %c8, %c0_38], %84 {strides = array<i32>} : memref<8x16x128xf32, #tpu.memory_space<vmem>>, vector<1x8x128xf32>,
    %c1 = arith.constant 1 : index
    %c0_39 = arith.constant 0 : index
    %c0_40 = arith.constant 0 : index
    %85 = vector.load %arg2[%c1, %c0_39, %c0_40] : memref<8x16x512xf32, #tpu.memory_space<vmem>>, vector<1x16x512xf32>
    %86 = vector.shape_cast %85 : vector<1x16x512xf32> to vector<16x512xf32>
    %87 = vector.extract_strided_slice %86 {offsets = [0, 0], sizes = [8, 512], strides = [1, 1]} : vector<16x512xf32> to vector<8x512xf32>
    %c0_41 = arith.constant 0 : index
    %c0_42 = arith.constant 0 : index
    %88 = vector.load %arg3[%c0_41, %c0_42] : memref<128x512xf32, #tpu.memory_space<vmem>>, vector<128x512xf32>
    %cst_43 = arith.constant dense<0.000000e+00> : vector<8x512xf32>
    %89 = tpu.matmul %47, %88, %cst_43 {dimension_numbers = #tpu.dot_dimension_numbers<[1], [0], [0], [1], [0, 0, 1, 1], [], []>} : vector<8x128xf32>, vector<128x512xf32>, vector<8x512xf32> -> vector<8x512xf32>
    %90 = arith.addf %87, %89 : vector<8x512xf32>
    %91 = vector.extract_strided_slice %86 {offsets = [8, 0], sizes = [8, 512], strides = [1, 1]} : vector<16x512xf32> to vector<8x512xf32>
    %c0_44 = arith.constant 0 : index
    %c0_45 = arith.constant 0 : index
    %92 = vector.load %arg3[%c0_44, %c0_45] : memref<128x512xf32, #tpu.memory_space<vmem>>, vector<128x512xf32>
    %cst_46 = arith.constant dense<0.000000e+00> : vector<8x512xf32>
    %93 = tpu.matmul %78, %92, %cst_46 {dimension_numbers = #tpu.dot_dimension_numbers<[1], [0], [0], [1], [0, 0, 1, 1], [], []>} : vector<8x128xf32>, vector<128x512xf32>, vector<8x512xf32> -> vector<8x512xf32>
    %94 = arith.addf %91, %93 : vector<8x512xf32>
    %95 = vector.extract_strided_slice %90 {offsets = [0, 0], sizes = [8, 128], strides = [1, 1]} : vector<8x512xf32> to vector<8x128xf32>
    %cst_47 = arith.constant 5.000000e-01 : f32
    %96 = vector.broadcast %cst_47 : f32 to vector<8x128xf32>
    %97 = arith.mulf %96, %95 : vector<8x128xf32>
    %98 = math.tanh %97 : vector<8x128xf32>
    %cst_48 = arith.constant 5.000000e-01 : f32
    %99 = vector.broadcast %cst_48 : f32 to vector<8x128xf32>
    %100 = arith.mulf %99, %98 : vector<8x128xf32>
    %cst_49 = arith.constant 5.000000e-01 : f32
    %101 = vector.broadcast %cst_49 : f32 to vector<8x128xf32>
    %102 = arith.addf %100, %101 : vector<8x128xf32>
    %103 = vector.extract_strided_slice %90 {offsets = [0, 128], sizes = [8, 128], strides = [1, 1]} : vector<8x512xf32> to vector<8x128xf32>
    %cst_50 = arith.constant 5.000000e-01 : f32
    %104 = vector.broadcast %cst_50 : f32 to vector<8x128xf32>
    %105 = arith.mulf %104, %103 : vector<8x128xf32>
    %106 = math.tanh %105 : vector<8x128xf32>
    %cst_51 = arith.constant 5.000000e-01 : f32
    %107 = vector.broadcast %cst_51 : f32 to vector<8x128xf32>
    %108 = arith.mulf %107, %106 : vector<8x128xf32>
    %cst_52 = arith.constant 5.000000e-01 : f32
    %109 = vector.broadcast %cst_52 : f32 to vector<8x128xf32>
    %110 = arith.addf %108, %109 : vector<8x128xf32>
    %111 = vector.extract_strided_slice %90 {offsets = [0, 256], sizes = [8, 128], strides = [1, 1]} : vector<8x512xf32> to vector<8x128xf32>
    %112 = math.tanh %111 : vector<8x128xf32>
    %113 = vector.extract_strided_slice %90 {offsets = [0, 384], sizes = [8, 128], strides = [1, 1]} : vector<8x512xf32> to vector<8x128xf32>
    %cst_53 = arith.constant 5.000000e-01 : f32
    %114 = vector.broadcast %cst_53 : f32 to vector<8x128xf32>
    %115 = arith.mulf %114, %113 : vector<8x128xf32>
    %116 = math.tanh %115 : vector<8x128xf32>
    %cst_54 = arith.constant 5.000000e-01 : f32
    %117 = vector.broadcast %cst_54 : f32 to vector<8x128xf32>
    %118 = arith.mulf %117, %116 : vector<8x128xf32>
    %cst_55 = arith.constant 5.000000e-01 : f32
    %119 = vector.broadcast %cst_55 : f32 to vector<8x128xf32>
    %120 = arith.addf %118, %119 : vector<8x128xf32>
    %121 = arith.mulf %110, %45 : vector<8x128xf32>
    %122 = arith.mulf %102, %112 : vector<8x128xf32>
    %123 = arith.addf %121, %122 : vector<8x128xf32>
    %124 = math.tanh %123 : vector<8x128xf32>
    %125 = arith.mulf %120, %124 : vector<8x128xf32>
    %126 = vector.extract_strided_slice %94 {offsets = [0, 0], sizes = [8, 128], strides = [1, 1]} : vector<8x512xf32> to vector<8x128xf32>
    %cst_56 = arith.constant 5.000000e-01 : f32
    %127 = vector.broadcast %cst_56 : f32 to vector<8x128xf32>
    %128 = arith.mulf %127, %126 : vector<8x128xf32>
    %129 = math.tanh %128 : vector<8x128xf32>
    %cst_57 = arith.constant 5.000000e-01 : f32
    %130 = vector.broadcast %cst_57 : f32 to vector<8x128xf32>
    %131 = arith.mulf %130, %129 : vector<8x128xf32>
    %cst_58 = arith.constant 5.000000e-01 : f32
    %132 = vector.broadcast %cst_58 : f32 to vector<8x128xf32>
    %133 = arith.addf %131, %132 : vector<8x128xf32>
    %134 = vector.extract_strided_slice %94 {offsets = [0, 128], sizes = [8, 128], strides = [1, 1]} : vector<8x512xf32> to vector<8x128xf32>
    %cst_59 = arith.constant 5.000000e-01 : f32
    %135 = vector.broadcast %cst_59 : f32 to vector<8x128xf32>
    %136 = arith.mulf %135, %134 : vector<8x128xf32>
    %137 = math.tanh %136 : vector<8x128xf32>
    %cst_60 = arith.constant 5.000000e-01 : f32
    %138 = vector.broadcast %cst_60 : f32 to vector<8x128xf32>
    %139 = arith.mulf %138, %137 : vector<8x128xf32>
    %cst_61 = arith.constant 5.000000e-01 : f32
    %140 = vector.broadcast %cst_61 : f32 to vector<8x128xf32>
    %141 = arith.addf %139, %140 : vector<8x128xf32>
    %142 = vector.extract_strided_slice %94 {offsets = [0, 256], sizes = [8, 128], strides = [1, 1]} : vector<8x512xf32> to vector<8x128xf32>
    %143 = math.tanh %142 : vector<8x128xf32>
    %144 = vector.extract_strided_slice %94 {offsets = [0, 384], sizes = [8, 128], strides = [1, 1]} : vector<8x512xf32> to vector<8x128xf32>
    %cst_62 = arith.constant 5.000000e-01 : f32
    %145 = vector.broadcast %cst_62 : f32 to vector<8x128xf32>
    %146 = arith.mulf %145, %144 : vector<8x128xf32>
    %147 = math.tanh %146 : vector<8x128xf32>
    %cst_63 = arith.constant 5.000000e-01 : f32
    %148 = vector.broadcast %cst_63 : f32 to vector<8x128xf32>
    %149 = arith.mulf %148, %147 : vector<8x128xf32>
    %cst_64 = arith.constant 5.000000e-01 : f32
    %150 = vector.broadcast %cst_64 : f32 to vector<8x128xf32>
    %151 = arith.addf %149, %150 : vector<8x128xf32>
    %152 = arith.mulf %141, %76 : vector<8x128xf32>
    %153 = arith.mulf %133, %143 : vector<8x128xf32>
    %154 = arith.addf %152, %153 : vector<8x128xf32>
    %155 = math.tanh %154 : vector<8x128xf32>
    %156 = arith.mulf %151, %155 : vector<8x128xf32>
    %c1_65 = arith.constant 1 : index
    %c0_66 = arith.constant 0 : index
    %c0_67 = arith.constant 0 : index
    %157 = vector.load %arg4[%c1_65, %c0_66, %c0_67] : memref<8x16x128xf32, #tpu.memory_space<vmem>>, vector<1x8x128xf32>
    %158 = vector.shape_cast %157 : vector<1x8x128xf32> to vector<8x128xf32>
    %159 = vector.shape_cast %125 : vector<8x128xf32> to vector<1x8x128xf32>
    tpu.vector_store %arg4[%c1_65, %c0_66, %c0_67], %159 {strides = array<i32>} : memref<8x16x128xf32, #tpu.memory_space<vmem>>, vector<1x8x128xf32>,
    %c1_68 = arith.constant 1 : index
    %c8_69 = arith.constant 8 : index
    %c0_70 = arith.constant 0 : index
    %160 = vector.load %arg4[%c1_68, %c8_69, %c0_70] : memref<8x16x128xf32, #tpu.memory_space<vmem>>, vector<1x8x128xf32>
    %161 = vector.shape_cast %160 : vector<1x8x128xf32> to vector<8x128xf32>
    %162 = vector.shape_cast %156 : vector<8x128xf32> to vector<1x8x128xf32>
    tpu.vector_store %arg4[%c1_68, %c8_69, %c0_70], %162 {strides = array<i32>} : memref<8x16x128xf32, #tpu.memory_space<vmem>>, vector<1x8x128xf32>,
    %c2 = arith.constant 2 : index
    %c0_71 = arith.constant 0 : index
    %c0_72 = arith.constant 0 : index
    %163 = vector.load %arg2[%c2, %c0_71, %c0_72] : memref<8x16x512xf32, #tpu.memory_space<vmem>>, vector<1x16x512xf32>
    %164 = vector.shape_cast %163 : vector<1x16x512xf32> to vector<16x512xf32>
    %165 = vector.extract_strided_slice %164 {offsets = [0, 0], sizes = [8, 512], strides = [1, 1]} : vector<16x512xf32> to vector<8x512xf32>
    %c0_73 = arith.constant 0 : index
    %c0_74 = arith.constant 0 : index
    %166 = vector.load %arg3[%c0_73, %c0_74] : memref<128x512xf32, #tpu.memory_space<vmem>>, vector<128x512xf32>
    %cst_75 = arith.constant dense<0.000000e+00> : vector<8x512xf32>
    %167 = tpu.matmul %125, %166, %cst_75 {dimension_numbers = #tpu.dot_dimension_numbers<[1], [0], [0], [1], [0, 0, 1, 1], [], []>} : vector<8x128xf32>, vector<128x512xf32>, vector<8x512xf32> -> vector<8x512xf32>
    %168 = arith.addf %165, %167 : vector<8x512xf32>
    %169 = vector.extract_strided_slice %164 {offsets = [8, 0], sizes = [8, 512], strides = [1, 1]} : vector<16x512xf32> to vector<8x512xf32>
    %c0_76 = arith.constant 0 : index
    %c0_77 = arith.constant 0 : index
    %170 = vector.load %arg3[%c0_76, %c0_77] : memref<128x512xf32, #tpu.memory_space<vmem>>, vector<128x512xf32>
    %cst_78 = arith.constant dense<0.000000e+00> : vector<8x512xf32>
    %171 = tpu.matmul %156, %170, %cst_78 {dimension_numbers = #tpu.dot_dimension_numbers<[1], [0], [0], [1], [0, 0, 1, 1], [], []>} : vector<8x128xf32>, vector<128x512xf32>, vector<8x512xf32> -> vector<8x512xf32>
    %172 = arith.addf %169, %171 : vector<8x512xf32>
    %173 = vector.extract_strided_slice %168 {offsets = [0, 0], sizes = [8, 128], strides = [1, 1]} : vector<8x512xf32> to vector<8x128xf32>
    %cst_79 = arith.constant 5.000000e-01 : f32
    %174 = vector.broadcast %cst_79 : f32 to vector<8x128xf32>
    %175 = arith.mulf %174, %173 : vector<8x128xf32>
    %176 = math.tanh %175 : vector<8x128xf32>
    %cst_80 = arith.constant 5.000000e-01 : f32
    %177 = vector.broadcast %cst_80 : f32 to vector<8x128xf32>
    %178 = arith.mulf %177, %176 : vector<8x128xf32>
    %cst_81 = arith.constant 5.000000e-01 : f32
    %179 = vector.broadcast %cst_81 : f32 to vector<8x128xf32>
    %180 = arith.addf %178, %179 : vector<8x128xf32>
    %181 = vector.extract_strided_slice %168 {offsets = [0, 128], sizes = [8, 128], strides = [1, 1]} : vector<8x512xf32> to vector<8x128xf32>
    %cst_82 = arith.constant 5.000000e-01 : f32
    %182 = vector.broadcast %cst_82 : f32 to vector<8x128xf32>
    %183 = arith.mulf %182, %181 : vector<8x128xf32>
    %184 = math.tanh %183 : vector<8x128xf32>
    %cst_83 = arith.constant 5.000000e-01 : f32
    %185 = vector.broadcast %cst_83 : f32 to vector<8x128xf32>
    %186 = arith.mulf %185, %184 : vector<8x128xf32>
    %cst_84 = arith.constant 5.000000e-01 : f32
    %187 = vector.broadcast %cst_84 : f32 to vector<8x128xf32>
    %188 = arith.addf %186, %187 : vector<8x128xf32>
    %189 = vector.extract_strided_slice %168 {offsets = [0, 256], sizes = [8, 128], strides = [1, 1]} : vector<8x512xf32> to vector<8x128xf32>
    %190 = math.tanh %189 : vector<8x128xf32>
    %191 = vector.extract_strided_slice %168 {offsets = [0, 384], sizes = [8, 128], strides = [1, 1]} : vector<8x512xf32> to vector<8x128xf32>
    %cst_85 = arith.constant 5.000000e-01 : f32
    %192 = vector.broadcast %cst_85 : f32 to vector<8x128xf32>
    %193 = arith.mulf %192, %191 : vector<8x128xf32>
    %194 = math.tanh %193 : vector<8x128xf32>
    %cst_86 = arith.constant 5.000000e-01 : f32
    %195 = vector.broadcast %cst_86 : f32 to vector<8x128xf32>
    %196 = arith.mulf %195, %194 : vector<8x128xf32>
    %cst_87 = arith.constant 5.000000e-01 : f32
    %197 = vector.broadcast %cst_87 : f32 to vector<8x128xf32>
    %198 = arith.addf %196, %197 : vector<8x128xf32>
    %199 = arith.mulf %188, %123 : vector<8x128xf32>
    %200 = arith.mulf %180, %190 : vector<8x128xf32>
    %201 = arith.addf %199, %200 : vector<8x128xf32>
    %202 = math.tanh %201 : vector<8x128xf32>
    %203 = arith.mulf %198, %202 : vector<8x128xf32>
    %204 = vector.extract_strided_slice %172 {offsets = [0, 0], sizes = [8, 128], strides = [1, 1]} : vector<8x512xf32> to vector<8x128xf32>
    %cst_88 = arith.constant 5.000000e-01 : f32
    %205 = vector.broadcast %cst_88 : f32 to vector<8x128xf32>
    %206 = arith.mulf %205, %204 : vector<8x128xf32>
    %207 = math.tanh %206 : vector<8x128xf32>
    %cst_89 = arith.constant 5.000000e-01 : f32
    %208 = vector.broadcast %cst_89 : f32 to vector<8x128xf32>
    %209 = arith.mulf %208, %207 : vector<8x128xf32>
    %cst_90 = arith.constant 5.000000e-01 : f32
    %210 = vector.broadcast %cst_90 : f32 to vector<8x128xf32>
    %211 = arith.addf %209, %210 : vector<8x128xf32>
    %212 = vector.extract_strided_slice %172 {offsets = [0, 128], sizes = [8, 128], strides = [1, 1]} : vector<8x512xf32> to vector<8x128xf32>
    %cst_91 = arith.constant 5.000000e-01 : f32
    %213 = vector.broadcast %cst_91 : f32 to vector<8x128xf32>
    %214 = arith.mulf %213, %212 : vector<8x128xf32>
    %215 = math.tanh %214 : vector<8x128xf32>
    %cst_92 = arith.constant 5.000000e-01 : f32
    %216 = vector.broadcast %cst_92 : f32 to vector<8x128xf32>
    %217 = arith.mulf %216, %215 : vector<8x128xf32>
    %cst_93 = arith.constant 5.000000e-01 : f32
    %218 = vector.broadcast %cst_93 : f32 to vector<8x128xf32>
    %219 = arith.addf %217, %218 : vector<8x128xf32>
    %220 = vector.extract_strided_slice %172 {offsets = [0, 256], sizes = [8, 128], strides = [1, 1]} : vector<8x512xf32> to vector<8x128xf32>
    %221 = math.tanh %220 : vector<8x128xf32>
    %222 = vector.extract_strided_slice %172 {offsets = [0, 384], sizes = [8, 128], strides = [1, 1]} : vector<8x512xf32> to vector<8x128xf32>
    %cst_94 = arith.constant 5.000000e-01 : f32
    %223 = vector.broadcast %cst_94 : f32 to vector<8x128xf32>
    %224 = arith.mulf %223, %222 : vector<8x128xf32>
    %225 = math.tanh %224 : vector<8x128xf32>
    %cst_95 = arith.constant 5.000000e-01 : f32
    %226 = vector.broadcast %cst_95 : f32 to vector<8x128xf32>
    %227 = arith.mulf %226, %225 : vector<8x128xf32>
    %cst_96 = arith.constant 5.000000e-01 : f32
    %228 = vector.broadcast %cst_96 : f32 to vector<8x128xf32>
    %229 = arith.addf %227, %228 : vector<8x128xf32>
    %230 = arith.mulf %219, %154 : vector<8x128xf32>
    %231 = arith.mulf %211, %221 : vector<8x128xf32>
    %232 = arith.addf %230, %231 : vector<8x128xf32>
    %233 = math.tanh %232 : vector<8x128xf32>
    %234 = arith.mulf %229, %233 : vector<8x128xf32>
    %c2_97 = arith.constant 2 : index
    %c0_98 = arith.constant 0 : index
    %c0_99 = arith.constant 0 : index
    %235 = vector.load %arg4[%c2_97, %c0_98, %c0_99] : memref<8x16x128xf32, #tpu.memory_space<vmem>>, vector<1x8x128xf32>
    %236 = vector.shape_cast %235 : vector<1x8x128xf32> to vector<8x128xf32>
    %237 = vector.shape_cast %203 : vector<8x128xf32> to vector<1x8x128xf32>
    tpu.vector_store %arg4[%c2_97, %c0_98, %c0_99], %237 {strides = array<i32>} : memref<8x16x128xf32, #tpu.memory_space<vmem>>, vector<1x8x128xf32>,
    %c2_100 = arith.constant 2 : index
    %c8_101 = arith.constant 8 : index
    %c0_102 = arith.constant 0 : index
    %238 = vector.load %arg4[%c2_100, %c8_101, %c0_102] : memref<8x16x128xf32, #tpu.memory_space<vmem>>, vector<1x8x128xf32>
    %239 = vector.shape_cast %238 : vector<1x8x128xf32> to vector<8x128xf32>
    %240 = vector.shape_cast %234 : vector<8x128xf32> to vector<1x8x128xf32>
    tpu.vector_store %arg4[%c2_100, %c8_101, %c0_102], %240 {strides = array<i32>} : memref<8x16x128xf32, #tpu.memory_space<vmem>>, vector<1x8x128xf32>,
    %c3 = arith.constant 3 : index
    %c0_103 = arith.constant 0 : index
    %c0_104 = arith.constant 0 : index
    %241 = vector.load %arg2[%c3, %c0_103, %c0_104] : memref<8x16x512xf32, #tpu.memory_space<vmem>>, vector<1x16x512xf32>
    %242 = vector.shape_cast %241 : vector<1x16x512xf32> to vector<16x512xf32>
    %243 = vector.extract_strided_slice %242 {offsets = [0, 0], sizes = [8, 512], strides = [1, 1]} : vector<16x512xf32> to vector<8x512xf32>
    %c0_105 = arith.constant 0 : index
    %c0_106 = arith.constant 0 : index
    %244 = vector.load %arg3[%c0_105, %c0_106] : memref<128x512xf32, #tpu.memory_space<vmem>>, vector<128x512xf32>
    %cst_107 = arith.constant dense<0.000000e+00> : vector<8x512xf32>
    %245 = tpu.matmul %203, %244, %cst_107 {dimension_numbers = #tpu.dot_dimension_numbers<[1], [0], [0], [1], [0, 0, 1, 1], [], []>} : vector<8x128xf32>, vector<128x512xf32>, vector<8x512xf32> -> vector<8x512xf32>
    %246 = arith.addf %243, %245 : vector<8x512xf32>
    %247 = vector.extract_strided_slice %242 {offsets = [8, 0], sizes = [8, 512], strides = [1, 1]} : vector<16x512xf32> to vector<8x512xf32>
    %c0_108 = arith.constant 0 : index
    %c0_109 = arith.constant 0 : index
    %248 = vector.load %arg3[%c0_108, %c0_109] : memref<128x512xf32, #tpu.memory_space<vmem>>, vector<128x512xf32>
    %cst_110 = arith.constant dense<0.000000e+00> : vector<8x512xf32>
    %249 = tpu.matmul %234, %248, %cst_110 {dimension_numbers = #tpu.dot_dimension_numbers<[1], [0], [0], [1], [0, 0, 1, 1], [], []>} : vector<8x128xf32>, vector<128x512xf32>, vector<8x512xf32> -> vector<8x512xf32>
    %250 = arith.addf %247, %249 : vector<8x512xf32>
    %251 = vector.extract_strided_slice %246 {offsets = [0, 0], sizes = [8, 128], strides = [1, 1]} : vector<8x512xf32> to vector<8x128xf32>
    %cst_111 = arith.constant 5.000000e-01 : f32
    %252 = vector.broadcast %cst_111 : f32 to vector<8x128xf32>
    %253 = arith.mulf %252, %251 : vector<8x128xf32>
    %254 = math.tanh %253 : vector<8x128xf32>
    %cst_112 = arith.constant 5.000000e-01 : f32
    %255 = vector.broadcast %cst_112 : f32 to vector<8x128xf32>
    %256 = arith.mulf %255, %254 : vector<8x128xf32>
    %cst_113 = arith.constant 5.000000e-01 : f32
    %257 = vector.broadcast %cst_113 : f32 to vector<8x128xf32>
    %258 = arith.addf %256, %257 : vector<8x128xf32>
    %259 = vector.extract_strided_slice %246 {offsets = [0, 128], sizes = [8, 128], strides = [1, 1]} : vector<8x512xf32> to vector<8x128xf32>
    %cst_114 = arith.constant 5.000000e-01 : f32
    %260 = vector.broadcast %cst_114 : f32 to vector<8x128xf32>
    %261 = arith.mulf %260, %259 : vector<8x128xf32>
    %262 = math.tanh %261 : vector<8x128xf32>
    %cst_115 = arith.constant 5.000000e-01 : f32
    %263 = vector.broadcast %cst_115 : f32 to vector<8x128xf32>
    %264 = arith.mulf %263, %262 : vector<8x128xf32>
    %cst_116 = arith.constant 5.000000e-01 : f32
    %265 = vector.broadcast %cst_116 : f32 to vector<8x128xf32>
    %266 = arith.addf %264, %265 : vector<8x128xf32>
    %267 = vector.extract_strided_slice %246 {offsets = [0, 256], sizes = [8, 128], strides = [1, 1]} : vector<8x512xf32> to vector<8x128xf32>
    %268 = math.tanh %267 : vector<8x128xf32>
    %269 = vector.extract_strided_slice %246 {offsets = [0, 384], sizes = [8, 128], strides = [1, 1]} : vector<8x512xf32> to vector<8x128xf32>
    %cst_117 = arith.constant 5.000000e-01 : f32
    %270 = vector.broadcast %cst_117 : f32 to vector<8x128xf32>
    %271 = arith.mulf %270, %269 : vector<8x128xf32>
    %272 = math.tanh %271 : vector<8x128xf32>
    %cst_118 = arith.constant 5.000000e-01 : f32
    %273 = vector.broadcast %cst_118 : f32 to vector<8x128xf32>
    %274 = arith.mulf %273, %272 : vector<8x128xf32>
    %cst_119 = arith.constant 5.000000e-01 : f32
    %275 = vector.broadcast %cst_119 : f32 to vector<8x128xf32>
    %276 = arith.addf %274, %275 : vector<8x128xf32>
    %277 = arith.mulf %266, %201 : vector<8x128xf32>
    %278 = arith.mulf %258, %268 : vector<8x128xf32>
    %279 = arith.addf %277, %278 : vector<8x128xf32>
    %280 = math.tanh %279 : vector<8x128xf32>
    %281 = arith.mulf %276, %280 : vector<8x128xf32>
    %282 = vector.extract_strided_slice %250 {offsets = [0, 0], sizes = [8, 128], strides = [1, 1]} : vector<8x512xf32> to vector<8x128xf32>
    %cst_120 = arith.constant 5.000000e-01 : f32
    %283 = vector.broadcast %cst_120 : f32 to vector<8x128xf32>
    %284 = arith.mulf %283, %282 : vector<8x128xf32>
    %285 = math.tanh %284 : vector<8x128xf32>
    %cst_121 = arith.constant 5.000000e-01 : f32
    %286 = vector.broadcast %cst_121 : f32 to vector<8x128xf32>
    %287 = arith.mulf %286, %285 : vector<8x128xf32>
    %cst_122 = arith.constant 5.000000e-01 : f32
    %288 = vector.broadcast %cst_122 : f32 to vector<8x128xf32>
    %289 = arith.addf %287, %288 : vector<8x128xf32>
    %290 = vector.extract_strided_slice %250 {offsets = [0, 128], sizes = [8, 128], strides = [1, 1]} : vector<8x512xf32> to vector<8x128xf32>
    %cst_123 = arith.constant 5.000000e-01 : f32
    %291 = vector.broadcast %cst_123 : f32 to vector<8x128xf32>
    %292 = arith.mulf %291, %290 : vector<8x128xf32>
    %293 = math.tanh %292 : vector<8x128xf32>
    %cst_124 = arith.constant 5.000000e-01 : f32
    %294 = vector.broadcast %cst_124 : f32 to vector<8x128xf32>
    %295 = arith.mulf %294, %293 : vector<8x128xf32>
    %cst_125 = arith.constant 5.000000e-01 : f32
    %296 = vector.broadcast %cst_125 : f32 to vector<8x128xf32>
    %297 = arith.addf %295, %296 : vector<8x128xf32>
    %298 = vector.extract_strided_slice %250 {offsets = [0, 256], sizes = [8, 128], strides = [1, 1]} : vector<8x512xf32> to vector<8x128xf32>
    %299 = math.tanh %298 : vector<8x128xf32>
    %300 = vector.extract_strided_slice %250 {offsets = [0, 384], sizes = [8, 128], strides = [1, 1]} : vector<8x512xf32> to vector<8x128xf32>
    %cst_126 = arith.constant 5.000000e-01 : f32
    %301 = vector.broadcast %cst_126 : f32 to vector<8x128xf32>
    %302 = arith.mulf %301, %300 : vector<8x128xf32>
    %303 = math.tanh %302 : vector<8x128xf32>
    %cst_127 = arith.constant 5.000000e-01 : f32
    %304 = vector.broadcast %cst_127 : f32 to vector<8x128xf32>
    %305 = arith.mulf %304, %303 : vector<8x128xf32>
    %cst_128 = arith.constant 5.000000e-01 : f32
    %306 = vector.broadcast %cst_128 : f32 to vector<8x128xf32>
    %307 = arith.addf %305, %306 : vector<8x128xf32>
    %308 = arith.mulf %297, %232 : vector<8x128xf32>
    %309 = arith.mulf %289, %299 : vector<8x128xf32>
    %310 = arith.addf %308, %309 : vector<8x128xf32>
    %311 = math.tanh %310 : vector<8x128xf32>
    %312 = arith.mulf %307, %311 : vector<8x128xf32>
    %c3_129 = arith.constant 3 : index
    %c0_130 = arith.constant 0 : index
    %c0_131 = arith.constant 0 : index
    %313 = vector.load %arg4[%c3_129, %c0_130, %c0_131] : memref<8x16x128xf32, #tpu.memory_space<vmem>>, vector<1x8x128xf32>
    %314 = vector.shape_cast %313 : vector<1x8x128xf32> to vector<8x128xf32>
    %315 = vector.shape_cast %281 : vector<8x128xf32> to vector<1x8x128xf32>
    tpu.vector_store %arg4[%c3_129, %c0_130, %c0_131], %315 {strides = array<i32>} : memref<8x16x128xf32, #tpu.memory_space<vmem>>, vector<1x8x128xf32>,
    %c3_132 = arith.constant 3 : index
    %c8_133 = arith.constant 8 : index
    %c0_134 = arith.constant 0 : index
    %316 = vector.load %arg4[%c3_132, %c8_133, %c0_134] : memref<8x16x128xf32, #tpu.memory_space<vmem>>, vector<1x8x128xf32>
    %317 = vector.shape_cast %316 : vector<1x8x128xf32> to vector<8x128xf32>
    %318 = vector.shape_cast %312 : vector<8x128xf32> to vector<1x8x128xf32>
    tpu.vector_store %arg4[%c3_132, %c8_133, %c0_134], %318 {strides = array<i32>} : memref<8x16x128xf32, #tpu.memory_space<vmem>>, vector<1x8x128xf32>,
    %c4 = arith.constant 4 : index
    %c0_135 = arith.constant 0 : index
    %c0_136 = arith.constant 0 : index
    %319 = vector.load %arg2[%c4, %c0_135, %c0_136] : memref<8x16x512xf32, #tpu.memory_space<vmem>>, vector<1x16x512xf32>
    %320 = vector.shape_cast %319 : vector<1x16x512xf32> to vector<16x512xf32>
    %321 = vector.extract_strided_slice %320 {offsets = [0, 0], sizes = [8, 512], strides = [1, 1]} : vector<16x512xf32> to vector<8x512xf32>
    %c0_137 = arith.constant 0 : index
    %c0_138 = arith.constant 0 : index
    %322 = vector.load %arg3[%c0_137, %c0_138] : memref<128x512xf32, #tpu.memory_space<vmem>>, vector<128x512xf32>
    %cst_139 = arith.constant dense<0.000000e+00> : vector<8x512xf32>
    %323 = tpu.matmul %281, %322, %cst_139 {dimension_numbers = #tpu.dot_dimension_numbers<[1], [0], [0], [1], [0, 0, 1, 1], [], []>} : vector<8x128xf32>, vector<128x512xf32>, vector<8x512xf32> -> vector<8x512xf32>
    %324 = arith.addf %321, %323 : vector<8x512xf32>
    %325 = vector.extract_strided_slice %320 {offsets = [8, 0], sizes = [8, 512], strides = [1, 1]} : vector<16x512xf32> to vector<8x512xf32>
    %c0_140 = arith.constant 0 : index
    %c0_141 = arith.constant 0 : index
    %326 = vector.load %arg3[%c0_140, %c0_141] : memref<128x512xf32, #tpu.memory_space<vmem>>, vector<128x512xf32>
    %cst_142 = arith.constant dense<0.000000e+00> : vector<8x512xf32>
    %327 = tpu.matmul %312, %326, %cst_142 {dimension_numbers = #tpu.dot_dimension_numbers<[1], [0], [0], [1], [0, 0, 1, 1], [], []>} : vector<8x128xf32>, vector<128x512xf32>, vector<8x512xf32> -> vector<8x512xf32>
    %328 = arith.addf %325, %327 : vector<8x512xf32>
    %329 = vector.extract_strided_slice %324 {offsets = [0, 0], sizes = [8, 128], strides = [1, 1]} : vector<8x512xf32> to vector<8x128xf32>
    %cst_143 = arith.constant 5.000000e-01 : f32
    %330 = vector.broadcast %cst_143 : f32 to vector<8x128xf32>
    %331 = arith.mulf %330, %329 : vector<8x128xf32>
    %332 = math.tanh %331 : vector<8x128xf32>
    %cst_144 = arith.constant 5.000000e-01 : f32
    %333 = vector.broadcast %cst_144 : f32 to vector<8x128xf32>
    %334 = arith.mulf %333, %332 : vector<8x128xf32>
    %cst_145 = arith.constant 5.000000e-01 : f32
    %335 = vector.broadcast %cst_145 : f32 to vector<8x128xf32>
    %336 = arith.addf %334, %335 : vector<8x128xf32>
    %337 = vector.extract_strided_slice %324 {offsets = [0, 128], sizes = [8, 128], strides = [1, 1]} : vector<8x512xf32> to vector<8x128xf32>
    %cst_146 = arith.constant 5.000000e-01 : f32
    %338 = vector.broadcast %cst_146 : f32 to vector<8x128xf32>
    %339 = arith.mulf %338, %337 : vector<8x128xf32>
    %340 = math.tanh %339 : vector<8x128xf32>
    %cst_147 = arith.constant 5.000000e-01 : f32
    %341 = vector.broadcast %cst_147 : f32 to vector<8x128xf32>
    %342 = arith.mulf %341, %340 : vector<8x128xf32>
    %cst_148 = arith.constant 5.000000e-01 : f32
    %343 = vector.broadcast %cst_148 : f32 to vector<8x128xf32>
    %344 = arith.addf %342, %343 : vector<8x128xf32>
    %345 = vector.extract_strided_slice %324 {offsets = [0, 256], sizes = [8, 128], strides = [1, 1]} : vector<8x512xf32> to vector<8x128xf32>
    %346 = math.tanh %345 : vector<8x128xf32>
    %347 = vector.extract_strided_slice %324 {offsets = [0, 384], sizes = [8, 128], strides = [1, 1]} : vector<8x512xf32> to vector<8x128xf32>
    %cst_149 = arith.constant 5.000000e-01 : f32
    %348 = vector.broadcast %cst_149 : f32 to vector<8x128xf32>
    %349 = arith.mulf %348, %347 : vector<8x128xf32>
    %350 = math.tanh %349 : vector<8x128xf32>
    %cst_150 = arith.constant 5.000000e-01 : f32
    %351 = vector.broadcast %cst_150 : f32 to vector<8x128xf32>
    %352 = arith.mulf %351, %350 : vector<8x128xf32>
    %cst_151 = arith.constant 5.000000e-01 : f32
    %353 = vector.broadcast %cst_151 : f32 to vector<8x128xf32>
    %354 = arith.addf %352, %353 : vector<8x128xf32>
    %355 = arith.mulf %344, %279 : vector<8x128xf32>
    %356 = arith.mulf %336, %346 : vector<8x128xf32>
    %357 = arith.addf %355, %356 : vector<8x128xf32>
    %358 = math.tanh %357 : vector<8x128xf32>
    %359 = arith.mulf %354, %358 : vector<8x128xf32>
    %360 = vector.extract_strided_slice %328 {offsets = [0, 0], sizes = [8, 128], strides = [1, 1]} : vector<8x512xf32> to vector<8x128xf32>
    %cst_152 = arith.constant 5.000000e-01 : f32
    %361 = vector.broadcast %cst_152 : f32 to vector<8x128xf32>
    %362 = arith.mulf %361, %360 : vector<8x128xf32>
    %363 = math.tanh %362 : vector<8x128xf32>
    %cst_153 = arith.constant 5.000000e-01 : f32
    %364 = vector.broadcast %cst_153 : f32 to vector<8x128xf32>
    %365 = arith.mulf %364, %363 : vector<8x128xf32>
    %cst_154 = arith.constant 5.000000e-01 : f32
    %366 = vector.broadcast %cst_154 : f32 to vector<8x128xf32>
    %367 = arith.addf %365, %366 : vector<8x128xf32>
    %368 = vector.extract_strided_slice %328 {offsets = [0, 128], sizes = [8, 128], strides = [1, 1]} : vector<8x512xf32> to vector<8x128xf32>
    %cst_155 = arith.constant 5.000000e-01 : f32
    %369 = vector.broadcast %cst_155 : f32 to vector<8x128xf32>
    %370 = arith.mulf %369, %368 : vector<8x128xf32>
    %371 = math.tanh %370 : vector<8x128xf32>
    %cst_156 = arith.constant 5.000000e-01 : f32
    %372 = vector.broadcast %cst_156 : f32 to vector<8x128xf32>
    %373 = arith.mulf %372, %371 : vector<8x128xf32>
    %cst_157 = arith.constant 5.000000e-01 : f32
    %374 = vector.broadcast %cst_157 : f32 to vector<8x128xf32>
    %375 = arith.addf %373, %374 : vector<8x128xf32>
    %376 = vector.extract_strided_slice %328 {offsets = [0, 256], sizes = [8, 128], strides = [1, 1]} : vector<8x512xf32> to vector<8x128xf32>
    %377 = math.tanh %376 : vector<8x128xf32>
    %378 = vector.extract_strided_slice %328 {offsets = [0, 384], sizes = [8, 128], strides = [1, 1]} : vector<8x512xf32> to vector<8x128xf32>
    %cst_158 = arith.constant 5.000000e-01 : f32
    %379 = vector.broadcast %cst_158 : f32 to vector<8x128xf32>
    %380 = arith.mulf %379, %378 : vector<8x128xf32>
    %381 = math.tanh %380 : vector<8x128xf32>
    %cst_159 = arith.constant 5.000000e-01 : f32
    %382 = vector.broadcast %cst_159 : f32 to vector<8x128xf32>
    %383 = arith.mulf %382, %381 : vector<8x128xf32>
    %cst_160 = arith.constant 5.000000e-01 : f32
    %384 = vector.broadcast %cst_160 : f32 to vector<8x128xf32>
    %385 = arith.addf %383, %384 : vector<8x128xf32>
    %386 = arith.mulf %375, %310 : vector<8x128xf32>
    %387 = arith.mulf %367, %377 : vector<8x128xf32>
    %388 = arith.addf %386, %387 : vector<8x128xf32>
    %389 = math.tanh %388 : vector<8x128xf32>
    %390 = arith.mulf %385, %389 : vector<8x128xf32>
    %c4_161 = arith.constant 4 : index
    %c0_162 = arith.constant 0 : index
    %c0_163 = arith.constant 0 : index
    %391 = vector.load %arg4[%c4_161, %c0_162, %c0_163] : memref<8x16x128xf32, #tpu.memory_space<vmem>>, vector<1x8x128xf32>
    %392 = vector.shape_cast %391 : vector<1x8x128xf32> to vector<8x128xf32>
    %393 = vector.shape_cast %359 : vector<8x128xf32> to vector<1x8x128xf32>
    tpu.vector_store %arg4[%c4_161, %c0_162, %c0_163], %393 {strides = array<i32>} : memref<8x16x128xf32, #tpu.memory_space<vmem>>, vector<1x8x128xf32>,
    %c4_164 = arith.constant 4 : index
    %c8_165 = arith.constant 8 : index
    %c0_166 = arith.constant 0 : index
    %394 = vector.load %arg4[%c4_164, %c8_165, %c0_166] : memref<8x16x128xf32, #tpu.memory_space<vmem>>, vector<1x8x128xf32>
    %395 = vector.shape_cast %394 : vector<1x8x128xf32> to vector<8x128xf32>
    %396 = vector.shape_cast %390 : vector<8x128xf32> to vector<1x8x128xf32>
    tpu.vector_store %arg4[%c4_164, %c8_165, %c0_166], %396 {strides = array<i32>} : memref<8x16x128xf32, #tpu.memory_space<vmem>>, vector<1x8x128xf32>,
    %c5 = arith.constant 5 : index
    %c0_167 = arith.constant 0 : index
    %c0_168 = arith.constant 0 : index
    %397 = vector.load %arg2[%c5, %c0_167, %c0_168] : memref<8x16x512xf32, #tpu.memory_space<vmem>>, vector<1x16x512xf32>
    %398 = vector.shape_cast %397 : vector<1x16x512xf32> to vector<16x512xf32>
    %399 = vector.extract_strided_slice %398 {offsets = [0, 0], sizes = [8, 512], strides = [1, 1]} : vector<16x512xf32> to vector<8x512xf32>
    %c0_169 = arith.constant 0 : index
    %c0_170 = arith.constant 0 : index
    %400 = vector.load %arg3[%c0_169, %c0_170] : memref<128x512xf32, #tpu.memory_space<vmem>>, vector<128x512xf32>
    %cst_171 = arith.constant dense<0.000000e+00> : vector<8x512xf32>
    %401 = tpu.matmul %359, %400, %cst_171 {dimension_numbers = #tpu.dot_dimension_numbers<[1], [0], [0], [1], [0, 0, 1, 1], [], []>} : vector<8x128xf32>, vector<128x512xf32>, vector<8x512xf32> -> vector<8x512xf32>
    %402 = arith.addf %399, %401 : vector<8x512xf32>
    %403 = vector.extract_strided_slice %398 {offsets = [8, 0], sizes = [8, 512], strides = [1, 1]} : vector<16x512xf32> to vector<8x512xf32>
    %c0_172 = arith.constant 0 : index
    %c0_173 = arith.constant 0 : index
    %404 = vector.load %arg3[%c0_172, %c0_173] : memref<128x512xf32, #tpu.memory_space<vmem>>, vector<128x512xf32>
    %cst_174 = arith.constant dense<0.000000e+00> : vector<8x512xf32>
    %405 = tpu.matmul %390, %404, %cst_174 {dimension_numbers = #tpu.dot_dimension_numbers<[1], [0], [0], [1], [0, 0, 1, 1], [], []>} : vector<8x128xf32>, vector<128x512xf32>, vector<8x512xf32> -> vector<8x512xf32>
    %406 = arith.addf %403, %405 : vector<8x512xf32>
    %407 = vector.extract_strided_slice %402 {offsets = [0, 0], sizes = [8, 128], strides = [1, 1]} : vector<8x512xf32> to vector<8x128xf32>
    %cst_175 = arith.constant 5.000000e-01 : f32
    %408 = vector.broadcast %cst_175 : f32 to vector<8x128xf32>
    %409 = arith.mulf %408, %407 : vector<8x128xf32>
    %410 = math.tanh %409 : vector<8x128xf32>
    %cst_176 = arith.constant 5.000000e-01 : f32
    %411 = vector.broadcast %cst_176 : f32 to vector<8x128xf32>
    %412 = arith.mulf %411, %410 : vector<8x128xf32>
    %cst_177 = arith.constant 5.000000e-01 : f32
    %413 = vector.broadcast %cst_177 : f32 to vector<8x128xf32>
    %414 = arith.addf %412, %413 : vector<8x128xf32>
    %415 = vector.extract_strided_slice %402 {offsets = [0, 128], sizes = [8, 128], strides = [1, 1]} : vector<8x512xf32> to vector<8x128xf32>
    %cst_178 = arith.constant 5.000000e-01 : f32
    %416 = vector.broadcast %cst_178 : f32 to vector<8x128xf32>
    %417 = arith.mulf %416, %415 : vector<8x128xf32>
    %418 = math.tanh %417 : vector<8x128xf32>
    %cst_179 = arith.constant 5.000000e-01 : f32
    %419 = vector.broadcast %cst_179 : f32 to vector<8x128xf32>
    %420 = arith.mulf %419, %418 : vector<8x128xf32>
    %cst_180 = arith.constant 5.000000e-01 : f32
    %421 = vector.broadcast %cst_180 : f32 to vector<8x128xf32>
    %422 = arith.addf %420, %421 : vector<8x128xf32>
    %423 = vector.extract_strided_slice %402 {offsets = [0, 256], sizes = [8, 128], strides = [1, 1]} : vector<8x512xf32> to vector<8x128xf32>
    %424 = math.tanh %423 : vector<8x128xf32>
    %425 = vector.extract_strided_slice %402 {offsets = [0, 384], sizes = [8, 128], strides = [1, 1]} : vector<8x512xf32> to vector<8x128xf32>
    %cst_181 = arith.constant 5.000000e-01 : f32
    %426 = vector.broadcast %cst_181 : f32 to vector<8x128xf32>
    %427 = arith.mulf %426, %425 : vector<8x128xf32>
    %428 = math.tanh %427 : vector<8x128xf32>
    %cst_182 = arith.constant 5.000000e-01 : f32
    %429 = vector.broadcast %cst_182 : f32 to vector<8x128xf32>
    %430 = arith.mulf %429, %428 : vector<8x128xf32>
    %cst_183 = arith.constant 5.000000e-01 : f32
    %431 = vector.broadcast %cst_183 : f32 to vector<8x128xf32>
    %432 = arith.addf %430, %431 : vector<8x128xf32>
    %433 = arith.mulf %422, %357 : vector<8x128xf32>
    %434 = arith.mulf %414, %424 : vector<8x128xf32>
    %435 = arith.addf %433, %434 : vector<8x128xf32>
    %436 = math.tanh %435 : vector<8x128xf32>
    %437 = arith.mulf %432, %436 : vector<8x128xf32>
    %438 = vector.extract_strided_slice %406 {offsets = [0, 0], sizes = [8, 128], strides = [1, 1]} : vector<8x512xf32> to vector<8x128xf32>
    %cst_184 = arith.constant 5.000000e-01 : f32
    %439 = vector.broadcast %cst_184 : f32 to vector<8x128xf32>
    %440 = arith.mulf %439, %438 : vector<8x128xf32>
    %441 = math.tanh %440 : vector<8x128xf32>
    %cst_185 = arith.constant 5.000000e-01 : f32
    %442 = vector.broadcast %cst_185 : f32 to vector<8x128xf32>
    %443 = arith.mulf %442, %441 : vector<8x128xf32>
    %cst_186 = arith.constant 5.000000e-01 : f32
    %444 = vector.broadcast %cst_186 : f32 to vector<8x128xf32>
    %445 = arith.addf %443, %444 : vector<8x128xf32>
    %446 = vector.extract_strided_slice %406 {offsets = [0, 128], sizes = [8, 128], strides = [1, 1]} : vector<8x512xf32> to vector<8x128xf32>
    %cst_187 = arith.constant 5.000000e-01 : f32
    %447 = vector.broadcast %cst_187 : f32 to vector<8x128xf32>
    %448 = arith.mulf %447, %446 : vector<8x128xf32>
    %449 = math.tanh %448 : vector<8x128xf32>
    %cst_188 = arith.constant 5.000000e-01 : f32
    %450 = vector.broadcast %cst_188 : f32 to vector<8x128xf32>
    %451 = arith.mulf %450, %449 : vector<8x128xf32>
    %cst_189 = arith.constant 5.000000e-01 : f32
    %452 = vector.broadcast %cst_189 : f32 to vector<8x128xf32>
    %453 = arith.addf %451, %452 : vector<8x128xf32>
    %454 = vector.extract_strided_slice %406 {offsets = [0, 256], sizes = [8, 128], strides = [1, 1]} : vector<8x512xf32> to vector<8x128xf32>
    %455 = math.tanh %454 : vector<8x128xf32>
    %456 = vector.extract_strided_slice %406 {offsets = [0, 384], sizes = [8, 128], strides = [1, 1]} : vector<8x512xf32> to vector<8x128xf32>
    %cst_190 = arith.constant 5.000000e-01 : f32
    %457 = vector.broadcast %cst_190 : f32 to vector<8x128xf32>
    %458 = arith.mulf %457, %456 : vector<8x128xf32>
    %459 = math.tanh %458 : vector<8x128xf32>
    %cst_191 = arith.constant 5.000000e-01 : f32
    %460 = vector.broadcast %cst_191 : f32 to vector<8x128xf32>
    %461 = arith.mulf %460, %459 : vector<8x128xf32>
    %cst_192 = arith.constant 5.000000e-01 : f32
    %462 = vector.broadcast %cst_192 : f32 to vector<8x128xf32>
    %463 = arith.addf %461, %462 : vector<8x128xf32>
    %464 = arith.mulf %453, %388 : vector<8x128xf32>
    %465 = arith.mulf %445, %455 : vector<8x128xf32>
    %466 = arith.addf %464, %465 : vector<8x128xf32>
    %467 = math.tanh %466 : vector<8x128xf32>
    %468 = arith.mulf %463, %467 : vector<8x128xf32>
    %c5_193 = arith.constant 5 : index
    %c0_194 = arith.constant 0 : index
    %c0_195 = arith.constant 0 : index
    %469 = vector.load %arg4[%c5_193, %c0_194, %c0_195] : memref<8x16x128xf32, #tpu.memory_space<vmem>>, vector<1x8x128xf32>
    %470 = vector.shape_cast %469 : vector<1x8x128xf32> to vector<8x128xf32>
    %471 = vector.shape_cast %437 : vector<8x128xf32> to vector<1x8x128xf32>
    tpu.vector_store %arg4[%c5_193, %c0_194, %c0_195], %471 {strides = array<i32>} : memref<8x16x128xf32, #tpu.memory_space<vmem>>, vector<1x8x128xf32>,
    %c5_196 = arith.constant 5 : index
    %c8_197 = arith.constant 8 : index
    %c0_198 = arith.constant 0 : index
    %472 = vector.load %arg4[%c5_196, %c8_197, %c0_198] : memref<8x16x128xf32, #tpu.memory_space<vmem>>, vector<1x8x128xf32>
    %473 = vector.shape_cast %472 : vector<1x8x128xf32> to vector<8x128xf32>
    %474 = vector.shape_cast %468 : vector<8x128xf32> to vector<1x8x128xf32>
    tpu.vector_store %arg4[%c5_196, %c8_197, %c0_198], %474 {strides = array<i32>} : memref<8x16x128xf32, #tpu.memory_space<vmem>>, vector<1x8x128xf32>,
    %c6 = arith.constant 6 : index
    %c0_199 = arith.constant 0 : index
    %c0_200 = arith.constant 0 : index
    %475 = vector.load %arg2[%c6, %c0_199, %c0_200] : memref<8x16x512xf32, #tpu.memory_space<vmem>>, vector<1x16x512xf32>
    %476 = vector.shape_cast %475 : vector<1x16x512xf32> to vector<16x512xf32>
    %477 = vector.extract_strided_slice %476 {offsets = [0, 0], sizes = [8, 512], strides = [1, 1]} : vector<16x512xf32> to vector<8x512xf32>
    %c0_201 = arith.constant 0 : index
    %c0_202 = arith.constant 0 : index
    %478 = vector.load %arg3[%c0_201, %c0_202] : memref<128x512xf32, #tpu.memory_space<vmem>>, vector<128x512xf32>
    %cst_203 = arith.constant dense<0.000000e+00> : vector<8x512xf32>
    %479 = tpu.matmul %437, %478, %cst_203 {dimension_numbers = #tpu.dot_dimension_numbers<[1], [0], [0], [1], [0, 0, 1, 1], [], []>} : vector<8x128xf32>, vector<128x512xf32>, vector<8x512xf32> -> vector<8x512xf32>
    %480 = arith.addf %477, %479 : vector<8x512xf32>
    %481 = vector.extract_strided_slice %476 {offsets = [8, 0], sizes = [8, 512], strides = [1, 1]} : vector<16x512xf32> to vector<8x512xf32>
    %c0_204 = arith.constant 0 : index
    %c0_205 = arith.constant 0 : index
    %482 = vector.load %arg3[%c0_204, %c0_205] : memref<128x512xf32, #tpu.memory_space<vmem>>, vector<128x512xf32>
    %cst_206 = arith.constant dense<0.000000e+00> : vector<8x512xf32>
    %483 = tpu.matmul %468, %482, %cst_206 {dimension_numbers = #tpu.dot_dimension_numbers<[1], [0], [0], [1], [0, 0, 1, 1], [], []>} : vector<8x128xf32>, vector<128x512xf32>, vector<8x512xf32> -> vector<8x512xf32>
    %484 = arith.addf %481, %483 : vector<8x512xf32>
    %485 = vector.extract_strided_slice %480 {offsets = [0, 0], sizes = [8, 128], strides = [1, 1]} : vector<8x512xf32> to vector<8x128xf32>
    %cst_207 = arith.constant 5.000000e-01 : f32
    %486 = vector.broadcast %cst_207 : f32 to vector<8x128xf32>
    %487 = arith.mulf %486, %485 : vector<8x128xf32>
    %488 = math.tanh %487 : vector<8x128xf32>
    %cst_208 = arith.constant 5.000000e-01 : f32
    %489 = vector.broadcast %cst_208 : f32 to vector<8x128xf32>
    %490 = arith.mulf %489, %488 : vector<8x128xf32>
    %cst_209 = arith.constant 5.000000e-01 : f32
    %491 = vector.broadcast %cst_209 : f32 to vector<8x128xf32>
    %492 = arith.addf %490, %491 : vector<8x128xf32>
    %493 = vector.extract_strided_slice %480 {offsets = [0, 128], sizes = [8, 128], strides = [1, 1]} : vector<8x512xf32> to vector<8x128xf32>
    %cst_210 = arith.constant 5.000000e-01 : f32
    %494 = vector.broadcast %cst_210 : f32 to vector<8x128xf32>
    %495 = arith.mulf %494, %493 : vector<8x128xf32>
    %496 = math.tanh %495 : vector<8x128xf32>
    %cst_211 = arith.constant 5.000000e-01 : f32
    %497 = vector.broadcast %cst_211 : f32 to vector<8x128xf32>
    %498 = arith.mulf %497, %496 : vector<8x128xf32>
    %cst_212 = arith.constant 5.000000e-01 : f32
    %499 = vector.broadcast %cst_212 : f32 to vector<8x128xf32>
    %500 = arith.addf %498, %499 : vector<8x128xf32>
    %501 = vector.extract_strided_slice %480 {offsets = [0, 256], sizes = [8, 128], strides = [1, 1]} : vector<8x512xf32> to vector<8x128xf32>
    %502 = math.tanh %501 : vector<8x128xf32>
    %503 = vector.extract_strided_slice %480 {offsets = [0, 384], sizes = [8, 128], strides = [1, 1]} : vector<8x512xf32> to vector<8x128xf32>
    %cst_213 = arith.constant 5.000000e-01 : f32
    %504 = vector.broadcast %cst_213 : f32 to vector<8x128xf32>
    %505 = arith.mulf %504, %503 : vector<8x128xf32>
    %506 = math.tanh %505 : vector<8x128xf32>
    %cst_214 = arith.constant 5.000000e-01 : f32
    %507 = vector.broadcast %cst_214 : f32 to vector<8x128xf32>
    %508 = arith.mulf %507, %506 : vector<8x128xf32>
    %cst_215 = arith.constant 5.000000e-01 : f32
    %509 = vector.broadcast %cst_215 : f32 to vector<8x128xf32>
    %510 = arith.addf %508, %509 : vector<8x128xf32>
    %511 = arith.mulf %500, %435 : vector<8x128xf32>
    %512 = arith.mulf %492, %502 : vector<8x128xf32>
    %513 = arith.addf %511, %512 : vector<8x128xf32>
    %514 = math.tanh %513 : vector<8x128xf32>
    %515 = arith.mulf %510, %514 : vector<8x128xf32>
    %516 = vector.extract_strided_slice %484 {offsets = [0, 0], sizes = [8, 128], strides = [1, 1]} : vector<8x512xf32> to vector<8x128xf32>
    %cst_216 = arith.constant 5.000000e-01 : f32
    %517 = vector.broadcast %cst_216 : f32 to vector<8x128xf32>
    %518 = arith.mulf %517, %516 : vector<8x128xf32>
    %519 = math.tanh %518 : vector<8x128xf32>
    %cst_217 = arith.constant 5.000000e-01 : f32
    %520 = vector.broadcast %cst_217 : f32 to vector<8x128xf32>
    %521 = arith.mulf %520, %519 : vector<8x128xf32>
    %cst_218 = arith.constant 5.000000e-01 : f32
    %522 = vector.broadcast %cst_218 : f32 to vector<8x128xf32>
    %523 = arith.addf %521, %522 : vector<8x128xf32>
    %524 = vector.extract_strided_slice %484 {offsets = [0, 128], sizes = [8, 128], strides = [1, 1]} : vector<8x512xf32> to vector<8x128xf32>
    %cst_219 = arith.constant 5.000000e-01 : f32
    %525 = vector.broadcast %cst_219 : f32 to vector<8x128xf32>
    %526 = arith.mulf %525, %524 : vector<8x128xf32>
    %527 = math.tanh %526 : vector<8x128xf32>
    %cst_220 = arith.constant 5.000000e-01 : f32
    %528 = vector.broadcast %cst_220 : f32 to vector<8x128xf32>
    %529 = arith.mulf %528, %527 : vector<8x128xf32>
    %cst_221 = arith.constant 5.000000e-01 : f32
    %530 = vector.broadcast %cst_221 : f32 to vector<8x128xf32>
    %531 = arith.addf %529, %530 : vector<8x128xf32>
    %532 = vector.extract_strided_slice %484 {offsets = [0, 256], sizes = [8, 128], strides = [1, 1]} : vector<8x512xf32> to vector<8x128xf32>
    %533 = math.tanh %532 : vector<8x128xf32>
    %534 = vector.extract_strided_slice %484 {offsets = [0, 384], sizes = [8, 128], strides = [1, 1]} : vector<8x512xf32> to vector<8x128xf32>
    %cst_222 = arith.constant 5.000000e-01 : f32
    %535 = vector.broadcast %cst_222 : f32 to vector<8x128xf32>
    %536 = arith.mulf %535, %534 : vector<8x128xf32>
    %537 = math.tanh %536 : vector<8x128xf32>
    %cst_223 = arith.constant 5.000000e-01 : f32
    %538 = vector.broadcast %cst_223 : f32 to vector<8x128xf32>
    %539 = arith.mulf %538, %537 : vector<8x128xf32>
    %cst_224 = arith.constant 5.000000e-01 : f32
    %540 = vector.broadcast %cst_224 : f32 to vector<8x128xf32>
    %541 = arith.addf %539, %540 : vector<8x128xf32>
    %542 = arith.mulf %531, %466 : vector<8x128xf32>
    %543 = arith.mulf %523, %533 : vector<8x128xf32>
    %544 = arith.addf %542, %543 : vector<8x128xf32>
    %545 = math.tanh %544 : vector<8x128xf32>
    %546 = arith.mulf %541, %545 : vector<8x128xf32>
    %c6_225 = arith.constant 6 : index
    %c0_226 = arith.constant 0 : index
    %c0_227 = arith.constant 0 : index
    %547 = vector.load %arg4[%c6_225, %c0_226, %c0_227] : memref<8x16x128xf32, #tpu.memory_space<vmem>>, vector<1x8x128xf32>
    %548 = vector.shape_cast %547 : vector<1x8x128xf32> to vector<8x128xf32>
    %549 = vector.shape_cast %515 : vector<8x128xf32> to vector<1x8x128xf32>
    tpu.vector_store %arg4[%c6_225, %c0_226, %c0_227], %549 {strides = array<i32>} : memref<8x16x128xf32, #tpu.memory_space<vmem>>, vector<1x8x128xf32>,
    %c6_228 = arith.constant 6 : index
    %c8_229 = arith.constant 8 : index
    %c0_230 = arith.constant 0 : index
    %550 = vector.load %arg4[%c6_228, %c8_229, %c0_230] : memref<8x16x128xf32, #tpu.memory_space<vmem>>, vector<1x8x128xf32>
    %551 = vector.shape_cast %550 : vector<1x8x128xf32> to vector<8x128xf32>
    %552 = vector.shape_cast %546 : vector<8x128xf32> to vector<1x8x128xf32>
    tpu.vector_store %arg4[%c6_228, %c8_229, %c0_230], %552 {strides = array<i32>} : memref<8x16x128xf32, #tpu.memory_space<vmem>>, vector<1x8x128xf32>,
    %c7 = arith.constant 7 : index
    %c0_231 = arith.constant 0 : index
    %c0_232 = arith.constant 0 : index
    %553 = vector.load %arg2[%c7, %c0_231, %c0_232] : memref<8x16x512xf32, #tpu.memory_space<vmem>>, vector<1x16x512xf32>
    %554 = vector.shape_cast %553 : vector<1x16x512xf32> to vector<16x512xf32>
    %555 = vector.extract_strided_slice %554 {offsets = [0, 0], sizes = [8, 512], strides = [1, 1]} : vector<16x512xf32> to vector<8x512xf32>
    %c0_233 = arith.constant 0 : index
    %c0_234 = arith.constant 0 : index
    %556 = vector.load %arg3[%c0_233, %c0_234] : memref<128x512xf32, #tpu.memory_space<vmem>>, vector<128x512xf32>
    %cst_235 = arith.constant dense<0.000000e+00> : vector<8x512xf32>
    %557 = tpu.matmul %515, %556, %cst_235 {dimension_numbers = #tpu.dot_dimension_numbers<[1], [0], [0], [1], [0, 0, 1, 1], [], []>} : vector<8x128xf32>, vector<128x512xf32>, vector<8x512xf32> -> vector<8x512xf32>
    %558 = arith.addf %555, %557 : vector<8x512xf32>
    %559 = vector.extract_strided_slice %554 {offsets = [8, 0], sizes = [8, 512], strides = [1, 1]} : vector<16x512xf32> to vector<8x512xf32>
    %c0_236 = arith.constant 0 : index
    %c0_237 = arith.constant 0 : index
    %560 = vector.load %arg3[%c0_236, %c0_237] : memref<128x512xf32, #tpu.memory_space<vmem>>, vector<128x512xf32>
    %cst_238 = arith.constant dense<0.000000e+00> : vector<8x512xf32>
    %561 = tpu.matmul %546, %560, %cst_238 {dimension_numbers = #tpu.dot_dimension_numbers<[1], [0], [0], [1], [0, 0, 1, 1], [], []>} : vector<8x128xf32>, vector<128x512xf32>, vector<8x512xf32> -> vector<8x512xf32>
    %562 = arith.addf %559, %561 : vector<8x512xf32>
    %563 = vector.extract_strided_slice %558 {offsets = [0, 0], sizes = [8, 128], strides = [1, 1]} : vector<8x512xf32> to vector<8x128xf32>
    %cst_239 = arith.constant 5.000000e-01 : f32
    %564 = vector.broadcast %cst_239 : f32 to vector<8x128xf32>
    %565 = arith.mulf %564, %563 : vector<8x128xf32>
    %566 = math.tanh %565 : vector<8x128xf32>
    %cst_240 = arith.constant 5.000000e-01 : f32
    %567 = vector.broadcast %cst_240 : f32 to vector<8x128xf32>
    %568 = arith.mulf %567, %566 : vector<8x128xf32>
    %cst_241 = arith.constant 5.000000e-01 : f32
    %569 = vector.broadcast %cst_241 : f32 to vector<8x128xf32>
    %570 = arith.addf %568, %569 : vector<8x128xf32>
    %571 = vector.extract_strided_slice %558 {offsets = [0, 128], sizes = [8, 128], strides = [1, 1]} : vector<8x512xf32> to vector<8x128xf32>
    %cst_242 = arith.constant 5.000000e-01 : f32
    %572 = vector.broadcast %cst_242 : f32 to vector<8x128xf32>
    %573 = arith.mulf %572, %571 : vector<8x128xf32>
    %574 = math.tanh %573 : vector<8x128xf32>
    %cst_243 = arith.constant 5.000000e-01 : f32
    %575 = vector.broadcast %cst_243 : f32 to vector<8x128xf32>
    %576 = arith.mulf %575, %574 : vector<8x128xf32>
    %cst_244 = arith.constant 5.000000e-01 : f32
    %577 = vector.broadcast %cst_244 : f32 to vector<8x128xf32>
    %578 = arith.addf %576, %577 : vector<8x128xf32>
    %579 = vector.extract_strided_slice %558 {offsets = [0, 256], sizes = [8, 128], strides = [1, 1]} : vector<8x512xf32> to vector<8x128xf32>
    %580 = math.tanh %579 : vector<8x128xf32>
    %581 = vector.extract_strided_slice %558 {offsets = [0, 384], sizes = [8, 128], strides = [1, 1]} : vector<8x512xf32> to vector<8x128xf32>
    %cst_245 = arith.constant 5.000000e-01 : f32
    %582 = vector.broadcast %cst_245 : f32 to vector<8x128xf32>
    %583 = arith.mulf %582, %581 : vector<8x128xf32>
    %584 = math.tanh %583 : vector<8x128xf32>
    %cst_246 = arith.constant 5.000000e-01 : f32
    %585 = vector.broadcast %cst_246 : f32 to vector<8x128xf32>
    %586 = arith.mulf %585, %584 : vector<8x128xf32>
    %cst_247 = arith.constant 5.000000e-01 : f32
    %587 = vector.broadcast %cst_247 : f32 to vector<8x128xf32>
    %588 = arith.addf %586, %587 : vector<8x128xf32>
    %589 = arith.mulf %578, %513 : vector<8x128xf32>
    %590 = arith.mulf %570, %580 : vector<8x128xf32>
    %591 = arith.addf %589, %590 : vector<8x128xf32>
    %592 = math.tanh %591 : vector<8x128xf32>
    %593 = arith.mulf %588, %592 : vector<8x128xf32>
    %594 = vector.extract_strided_slice %562 {offsets = [0, 0], sizes = [8, 128], strides = [1, 1]} : vector<8x512xf32> to vector<8x128xf32>
    %cst_248 = arith.constant 5.000000e-01 : f32
    %595 = vector.broadcast %cst_248 : f32 to vector<8x128xf32>
    %596 = arith.mulf %595, %594 : vector<8x128xf32>
    %597 = math.tanh %596 : vector<8x128xf32>
    %cst_249 = arith.constant 5.000000e-01 : f32
    %598 = vector.broadcast %cst_249 : f32 to vector<8x128xf32>
    %599 = arith.mulf %598, %597 : vector<8x128xf32>
    %cst_250 = arith.constant 5.000000e-01 : f32
    %600 = vector.broadcast %cst_250 : f32 to vector<8x128xf32>
    %601 = arith.addf %599, %600 : vector<8x128xf32>
    %602 = vector.extract_strided_slice %562 {offsets = [0, 128], sizes = [8, 128], strides = [1, 1]} : vector<8x512xf32> to vector<8x128xf32>
    %cst_251 = arith.constant 5.000000e-01 : f32
    %603 = vector.broadcast %cst_251 : f32 to vector<8x128xf32>
    %604 = arith.mulf %603, %602 : vector<8x128xf32>
    %605 = math.tanh %604 : vector<8x128xf32>
    %cst_252 = arith.constant 5.000000e-01 : f32
    %606 = vector.broadcast %cst_252 : f32 to vector<8x128xf32>
    %607 = arith.mulf %606, %605 : vector<8x128xf32>
    %cst_253 = arith.constant 5.000000e-01 : f32
    %608 = vector.broadcast %cst_253 : f32 to vector<8x128xf32>
    %609 = arith.addf %607, %608 : vector<8x128xf32>
    %610 = vector.extract_strided_slice %562 {offsets = [0, 256], sizes = [8, 128], strides = [1, 1]} : vector<8x512xf32> to vector<8x128xf32>
    %611 = math.tanh %610 : vector<8x128xf32>
    %612 = vector.extract_strided_slice %562 {offsets = [0, 384], sizes = [8, 128], strides = [1, 1]} : vector<8x512xf32> to vector<8x128xf32>
    %cst_254 = arith.constant 5.000000e-01 : f32
    %613 = vector.broadcast %cst_254 : f32 to vector<8x128xf32>
    %614 = arith.mulf %613, %612 : vector<8x128xf32>
    %615 = math.tanh %614 : vector<8x128xf32>
    %cst_255 = arith.constant 5.000000e-01 : f32
    %616 = vector.broadcast %cst_255 : f32 to vector<8x128xf32>
    %617 = arith.mulf %616, %615 : vector<8x128xf32>
    %cst_256 = arith.constant 5.000000e-01 : f32
    %618 = vector.broadcast %cst_256 : f32 to vector<8x128xf32>
    %619 = arith.addf %617, %618 : vector<8x128xf32>
    %620 = arith.mulf %609, %544 : vector<8x128xf32>
    %621 = arith.mulf %601, %611 : vector<8x128xf32>
    %622 = arith.addf %620, %621 : vector<8x128xf32>
    %623 = math.tanh %622 : vector<8x128xf32>
    %624 = arith.mulf %619, %623 : vector<8x128xf32>
    %c7_257 = arith.constant 7 : index
    %c0_258 = arith.constant 0 : index
    %c0_259 = arith.constant 0 : index
    %625 = vector.load %arg4[%c7_257, %c0_258, %c0_259] : memref<8x16x128xf32, #tpu.memory_space<vmem>>, vector<1x8x128xf32>
    %626 = vector.shape_cast %625 : vector<1x8x128xf32> to vector<8x128xf32>
    %627 = vector.shape_cast %593 : vector<8x128xf32> to vector<1x8x128xf32>
    tpu.vector_store %arg4[%c7_257, %c0_258, %c0_259], %627 {strides = array<i32>} : memref<8x16x128xf32, #tpu.memory_space<vmem>>, vector<1x8x128xf32>,
    %c7_260 = arith.constant 7 : index
    %c8_261 = arith.constant 8 : index
    %c0_262 = arith.constant 0 : index
    %628 = vector.load %arg4[%c7_260, %c8_261, %c0_262] : memref<8x16x128xf32, #tpu.memory_space<vmem>>, vector<1x8x128xf32>
    %629 = vector.shape_cast %628 : vector<1x8x128xf32> to vector<8x128xf32>
    %630 = vector.shape_cast %624 : vector<8x128xf32> to vector<1x8x128xf32>
    tpu.vector_store %arg4[%c7_260, %c8_261, %c0_262], %630 {strides = array<i32>} : memref<8x16x128xf32, #tpu.memory_space<vmem>>, vector<1x8x128xf32>,
    %c0_263 = arith.constant 0 : index
    %c0_264 = arith.constant 0 : index
    %631 = vector.load %arg7[%c0_263, %c0_264] : memref<8x128xf32, #tpu.memory_space<vmem>>, vector<8x128xf32>
    tpu.vector_store %arg7[%c0_263, %c0_264], %593 {strides = array<i32>} : memref<8x128xf32, #tpu.memory_space<vmem>>, vector<8x128xf32>,
    %c0_265 = arith.constant 0 : index
    %c0_266 = arith.constant 0 : index
    %632 = vector.load %arg8[%c0_265, %c0_266] : memref<8x128xf32, #tpu.memory_space<vmem>>, vector<8x128xf32>
    tpu.vector_store %arg8[%c0_265, %c0_266], %591 {strides = array<i32>} : memref<8x128xf32, #tpu.memory_space<vmem>>, vector<8x128xf32>,
    %c0_267 = arith.constant 0 : index
    %c0_268 = arith.constant 0 : index
    %633 = vector.load %arg9[%c0_267, %c0_268] : memref<8x128xf32, #tpu.memory_space<vmem>>, vector<8x128xf32>
    tpu.vector_store %arg9[%c0_267, %c0_268], %624 {strides = array<i32>} : memref<8x128xf32, #tpu.memory_space<vmem>>, vector<8x128xf32>,
    %c0_269 = arith.constant 0 : index
    %c0_270 = arith.constant 0 : index
    %634 = vector.load %arg10[%c0_269, %c0_270] : memref<8x128xf32, #tpu.memory_space<vmem>>, vector<8x128xf32>
    tpu.vector_store %arg10[%c0_269, %c0_270], %622 {strides = array<i32>} : memref<8x128xf32, #tpu.memory_space<vmem>>, vector<8x128xf32>,
    %c0_i32_271 = arith.constant 0 : i32
    %635 = arith.cmpi eq, %arg1, %c0_i32_271 : i32
    %636 = arith.extui %635 : i1 to i32
    %c0_i32_272 = arith.constant 0 : i32
    %637 = arith.cmpi ne, %636, %c0_i32_272 : i32
    scf.if %637 {
      %c0_273 = arith.constant 0 : index
      %c0_274 = arith.constant 0 : index
      %638 = vector.load %arg5[%c0_273, %c0_274] : memref<16x128xf32, #tpu.memory_space<vmem>>, vector<8x128xf32>
      tpu.vector_store %arg5[%c0_273, %c0_274], %593 {strides = array<i32>} : memref<16x128xf32, #tpu.memory_space<vmem>>, vector<8x128xf32>,
      %c8_275 = arith.constant 8 : index
      %c0_276 = arith.constant 0 : index
      %639 = vector.load %arg5[%c8_275, %c0_276] : memref<16x128xf32, #tpu.memory_space<vmem>>, vector<8x128xf32>
      tpu.vector_store %arg5[%c8_275, %c0_276], %624 {strides = array<i32>} : memref<16x128xf32, #tpu.memory_space<vmem>>, vector<8x128xf32>,
      %c0_277 = arith.constant 0 : index
      %c0_278 = arith.constant 0 : index
      %640 = vector.load %arg6[%c0_277, %c0_278] : memref<16x128xf32, #tpu.memory_space<vmem>>, vector<8x128xf32>
      tpu.vector_store %arg6[%c0_277, %c0_278], %591 {strides = array<i32>} : memref<16x128xf32, #tpu.memory_space<vmem>>, vector<8x128xf32>,
      %c8_279 = arith.constant 8 : index
      %c0_280 = arith.constant 0 : index
      %641 = vector.load %arg6[%c8_279, %c0_280] : memref<16x128xf32, #tpu.memory_space<vmem>>, vector<8x128xf32>
      tpu.vector_store %arg6[%c8_279, %c0_280], %622 {strides = array<i32>} : memref<16x128xf32, #tpu.memory_space<vmem>>, vector<8x128xf32>,
    } else {
    }
    return
  }
  func.func @transform_0(%arg0: i32, %arg1: i32) -> (i32, i32, i32) {
    %c0_i32 = arith.constant 0 : i32
    %c0_i32_0 = arith.constant 0 : i32
    return %arg1, %arg0, %c0_i32 : i32, i32, i32
  }
  func.func @transform_1(%arg0: i32, %arg1: i32) -> (i32, i32) {
    %c0_i32 = arith.constant 0 : i32
    %c0_i32_0 = arith.constant 0 : i32
    %c0_i32_1 = arith.constant 0 : i32
    return %c0_i32, %c0_i32_0 : i32, i32
  }
  func.func @transform_2(%arg0: i32, %arg1: i32) -> (i32, i32, i32) {
    %c0_i32 = arith.constant 0 : i32
    %c0_i32_0 = arith.constant 0 : i32
    return %arg1, %arg0, %c0_i32 : i32, i32, i32
  }
  func.func @transform_3(%arg0: i32, %arg1: i32) -> (i32, i32) {
    %c0_i32 = arith.constant 0 : i32
    %c0_i32_0 = arith.constant 0 : i32
    return %arg0, %c0_i32 : i32, i32
  }
  func.func @transform_4(%arg0: i32, %arg1: i32) -> (i32, i32) {
    %c0_i32 = arith.constant 0 : i32
    %c0_i32_0 = arith.constant 0 : i32
    return %arg0, %c0_i32 : i32, i32
  }
}

</mosaic_0001>

<llo_original>
// kernel: tpu_custom_call.1
$region0: #{tpu_custom_call.1}
  #allocation0 [shape = 'u32[]', space=smem, size = 0x4, offset = 0x4, fixed_abs, tag = 'smem constant byte address 0x4 - core index']
  #allocation1 [shape = 'u32[144,128]{1,0:T(1,128)}', space=vmem, size = 0x12000, scoped, tag = 'internal scratch']
  #allocation2 [shape = 'f32[8,128]{1,0:T(8,128)}', space=vmem, size = 0x1000, scoped, tag = 'scratch operand']
  #allocation3 [shape = 'f32[8,128]{1,0:T(8,128)}', space=vmem, size = 0x1000, scoped, tag = 'scratch operand']
  #allocation4 [shape = 'f32[8,128]{1,0:T(8,128)}', space=vmem, size = 0x1000, scoped, tag = 'scratch operand']
  #allocation5 [shape = 'f32[8,128]{1,0:T(8,128)}', space=vmem, size = 0x1000, scoped, tag = 'scratch operand']
  %s0 = inlined_call_operand.hbm [shape: f32[8,16,512], index: 0, kind: input, shape index: {}]
  %s1 = inlined_call_operand.hbm [shape: f32[128,512], index: 1, kind: input, shape index: {}]
  %s2 = inlined_call_operand.hbm [shape: f32[8,16,128], index: 2, kind: output, shape index: {0}]
  %s3 = inlined_call_operand.hbm [shape: f32[16,128], index: 3, kind: output, shape index: {1}]
  %s4 = inlined_call_operand.hbm [shape: f32[16,128], index: 4, kind: output, shape index: {2}]
  %5 = xla_tuple %s2, %s3, %s4
  %s6 = sld [smem:[#allocation0]]
  $region50: #{tpu_custom_call.1} parent=0
    _
  %s8 = ssub.s32 1, %s6
  %s9 = scalar_select 0, %s8, %s6
  $region1: #{tpu_custom_call.1} parent=0
    #allocation6 [shape = 'u8[262144]{0}', space=vmem, size = 0x40000, scoped, tag = 'input window, operand 0, single buffered']
    #allocation7 [shape = 's32[1]{0}', space=sflag, size = 0x4, scoped, tag = 'scoped memory for tpu_custom_call.1']
    #allocation8 [shape = 's32[1]{0}', space=sflag, size = 0x4, scoped, tag = 'scoped memory for tpu_custom_call.1']
    #allocation9 [shape = 'u8[262144]{0}', space=vmem, size = 0x40000, scoped, tag = 'input window, operand 1, single buffered']
    #allocation10 [shape = 's32[1]{0}', space=sflag, size = 0x4, scoped, tag = 'scoped memory for tpu_custom_call.1']
    #allocation11 [shape = 'u8[65536]{0}', space=vmem, size = 0x10000, scoped, tag = 'output window, operand 0, single buffered']
    #allocation12 [shape = 'u8[8192]{0}', space=vmem, size = 0x2000, scoped, tag = 'output window, operand 1, single buffered']
    #allocation13 [shape = 's32[1]{0}', space=sflag, size = 0x4, scoped, tag = 'scoped memory for tpu_custom_call.1']
    #allocation14 [shape = 'u8[8192]{0}', space=vmem, size = 0x2000, scoped, tag = 'output window, operand 2, single buffered']
    %10 = vsyncpa [#allocation7], 0
    %11 = vsyncpa [#allocation10], 0
    %12 = vsyncpa [#allocation8], 0
    %13 = vsyncpa [#allocation13], 0
    // Predicated region
    $region2: #{tpu_custom_call.1} parent=1 // pred_check
      _
    $region3: #{tpu_custom_call.1} parent=1 // pred_check_branch
      %15 = sbr.rel (0) target = $region5
    $region4: #{tpu_custom_call.1} parent=1 // pred_region
      %s17 = ssub.s32 8192, 8192
      %18 = vsyncadd [#allocation7], %s17
      %s19 = sshll.u32 [#allocation6], 4
      %s20 = int_to_ptr.vmem [resolvable:$true] %s19
      %25 = dma.hbm_to_vmem [thread:$0]  %s0, 8192, %s20, [#allocation7], 512, 512, 32
    $region5: #{tpu_custom_call.1} parent=1 // pred_fallthru
      _
    // Predicated region
    $region6: #{tpu_custom_call.1} parent=1 // pred_check
      _
    $region7: #{tpu_custom_call.1} parent=1 // pred_check_branch
      %27 = sbr.rel (0) target = $region9
    $region8: #{tpu_custom_call.1} parent=1 // pred_region
      %s29 = ssub.s32 8192, 8192
      %30 = vsyncadd [#allocation10], %s29
      %s31 = sshll.u32 [#allocation9], 4
      %s32 = int_to_ptr.vmem [resolvable:$true] %s31
      %37 = dma.hbm_to_vmem [thread:$0]  %s1, 8192, %s32, [#allocation10], 512, 512, 32
    $region9: #{tpu_custom_call.1} parent=1 // pred_fallthru
      _
    // Predicated region
    $region10: #{tpu_custom_call.1} parent=1 // pred_check
      _
    $region11: #{tpu_custom_call.1} parent=1 // pred_check_branch
      %39 = sbr.rel (0) target = $region13
    $region12: #{tpu_custom_call.1} parent=1 // pred_region
      %40 = dma.done [#allocation7], 8192
    $region13: #{tpu_custom_call.1} parent=1 // pred_fallthru
      _
    // Predicated region
    $region14: #{tpu_custom_call.1} parent=1 // pred_check
      _
    $region15: #{tpu_custom_call.1} parent=1 // pred_check_branch
      %42 = sbr.rel (0) target = $region17
    $region16: #{tpu_custom_call.1} parent=1 // pred_region
      %43 = dma.done [#allocation10], 8192
    $region17: #{tpu_custom_call.1} parent=1 // pred_fallthru
      _
    %p44 = scmp.eq.s32.totalorder 0, 0
    // Predicated region
    $region18: #{tpu_custom_call.1} parent=1 // pred_check
      %p45 = pneg %p44
    $region19: #{tpu_custom_call.1} parent=1 // pred_check_branch
      %47 = sbr.rel (%p45) target = $region21
    $region20: #{tpu_custom_call.1} parent=1 // pred_region
      %48 = vst [vmem:[#allocation2] sm:$0xff] 0.0
      %49 = vst [vmem:[#allocation3] sm:$0xff] 0.0
      %50 = vst [vmem:[#allocation4] sm:$0xff] 0.0
      %51 = vst [vmem:[#allocation5] sm:$0xff] 0.0
    $region21: #{tpu_custom_call.1} parent=1 // pred_fallthru
      _
    %v52 = vld [vmem:[#allocation2] sm:$0xff]
    %v53 = vld [vmem:[#allocation3] sm:$0xff]
    %v54 = vld [vmem:[#allocation4] sm:$0xff]
    %v55 = vld [vmem:[#allocation5] sm:$0xff]
    %v56 = vld [vmem:[#allocation6] sm:$0xff]
    %v57 = vld [vmem:[#allocation6 + $0x8] sm:$0xff]
    %v58 = vld [vmem:[#allocation6 + $0x10] sm:$0xff]
    %v59 = vld [vmem:[#allocation6 + $0x18] sm:$0xff]
    %v60 = vld [vmem:[#allocation6 + $0x20] sm:$0xff]
    %v61 = vld [vmem:[#allocation6 + $0x28] sm:$0xff]
    %v62 = vld [vmem:[#allocation6 + $0x30] sm:$0xff]
    %v63 = vld [vmem:[#allocation6 + $0x38] sm:$0xff]
    %v64 = vld [vmem:[#allocation9] sm:$0xff]
    %v65 = vld [vmem:[#allocation9 + $0x8] sm:$0xff]
    %v66 = vld [vmem:[#allocation9 + $0x10] sm:$0xff]
    %v67 = vld [vmem:[#allocation9 + $0x18] sm:$0xff]
    %v68 = vld [vmem:[#allocation9 + $0x20] sm:$0xff]
    %v69 = vld [vmem:[#allocation9 + $0x28] sm:$0xff]
    %v70 = vld [vmem:[#allocation9 + $0x30] sm:$0xff]
    %v71 = vld [vmem:[#allocation9 + $0x38] sm:$0xff]
    %v72 = vld [vmem:[#allocation9 + $0x40] sm:$0xff]
    %v73 = vld [vmem:[#allocation9 + $0x48] sm:$0xff]
    %v74 = vld [vmem:[#allocation9 + $0x50] sm:$0xff]
    %v75 = vld [vmem:[#allocation9 + $0x58] sm:$0xff]
    %v76 = vld [vmem:[#allocation9 + $0x60] sm:$0xff]
    %v77 = vld [vmem:[#allocation9 + $0x68] sm:$0xff]
    %v78 = vld [vmem:[#allocation9 + $0x70] sm:$0xff]
    %v79 = vld [vmem:[#allocation9 + $0x78] sm:$0xff]
    %v80 = vld [vmem:[#allocation9 + $0x80] sm:$0xff]
    %v81 = vld [vmem:[#allocation9 + $0x88] sm:$0xff]
    %v82 = vld [vmem:[#allocation9 + $0x90] sm:$0xff]
    %v83 = vld [vmem:[#allocation9 + $0x98] sm:$0xff]
    %v84 = vld [vmem:[#allocation9 + $0xa0] sm:$0xff]
    %v85 = vld [vmem:[#allocation9 + $0xa8] sm:$0xff]
    %v86 = vld [vmem:[#allocation9 + $0xb0] sm:$0xff]
    %v87 = vld [vmem:[#allocation9 + $0xb8] sm:$0xff]
    %v88 = vld [vmem:[#allocation9 + $0xc0] sm:$0xff]
    %v89 = vld [vmem:[#allocation9 + $0xc8] sm:$0xff]
    %v90 = vld [vmem:[#allocation9 + $0xd0] sm:$0xff]
    %v91 = vld [vmem:[#allocation9 + $0xd8] sm:$0xff]
    %v92 = vld [vmem:[#allocation9 + $0xe0] sm:$0xff]
    %v93 = vld [vmem:[#allocation9 + $0xe8] sm:$0xff]
    %v94 = vld [vmem:[#allocation9 + $0xf0] sm:$0xff]
    %v95 = vld [vmem:[#allocation9 + $0xf8] sm:$0xff]
    %v96 = vld [vmem:[#allocation9 + $0x100] sm:$0xff]
    %v97 = vld [vmem:[#allocation9 + $0x108] sm:$0xff]
    %v98 = vld [vmem:[#allocation9 + $0x110] sm:$0xff]
    %v99 = vld [vmem:[#allocation9 + $0x118] sm:$0xff]
    %v100 = vld [vmem:[#allocation9 + $0x120] sm:$0xff]
    %v101 = vld [vmem:[#allocation9 + $0x128] sm:$0xff]
    %v102 = vld [vmem:[#allocation9 + $0x130] sm:$0xff]
    %v103 = vld [vmem:[#allocation9 + $0x138] sm:$0xff]
    %v104 = vld [vmem:[#allocation9 + $0x140] sm:$0xff]
    %v105 = vld [vmem:[#allocation9 + $0x148] sm:$0xff]
    %v106 = vld [vmem:[#allocation9 + $0x150] sm:$0xff]
    %v107 = vld [vmem:[#allocation9 + $0x158] sm:$0xff]
    %v108 = vld [vmem:[#allocation9 + $0x160] sm:$0xff]
    %v109 = vld [vmem:[#allocation9 + $0x168] sm:$0xff]
    %v110 = vld [vmem:[#allocation9 + $0x170] sm:$0xff]
    %v111 = vld [vmem:[#allocation9 + $0x178] sm:$0xff]
    %v112 = vld [vmem:[#allocation9 + $0x180] sm:$0xff]
    %v113 = vld [vmem:[#allocation9 + $0x188] sm:$0xff]
    %v114 = vld [vmem:[#allocation9 + $0x190] sm:$0xff]
    %v115 = vld [vmem:[#allocation9 + $0x198] sm:$0xff]
    %v116 = vld [vmem:[#allocation9 + $0x1a0] sm:$0xff]
    %v117 = vld [vmem:[#allocation9 + $0x1a8] sm:$0xff]
    %v118 = vld [vmem:[#allocation9 + $0x1b0] sm:$0xff]
    %v119 = vld [vmem:[#allocation9 + $0x1b8] sm:$0xff]
    %v120 = vld [vmem:[#allocation9 + $0x1c0] sm:$0xff]
    %v121 = vld [vmem:[#allocation9 + $0x1c8] sm:$0xff]
    %v122 = vld [vmem:[#allocation9 + $0x1d0] sm:$0xff]
    %v123 = vld [vmem:[#allocation9 + $0x1d8] sm:$0xff]
    %v124 = vld [vmem:[#allocation9 + $0x1e0] sm:$0xff]
    %v125 = vld [vmem:[#allocation9 + $0x1e8] sm:$0xff]
    %v126 = vld [vmem:[#allocation9 + $0x1f0] sm:$0xff]
    %v127 = vld [vmem:[#allocation9 + $0x1f8] sm:$0xff]
    %128 = vmatprep.subr.mxu0 %v65
    %129 = vmatpush1.msra.mxu0 %v64
    %130 = vmatprep.subr.mxu0 %v69
    %131 = vmatpush1.msra.mxu0 %v68
    %132 = vmatprep.subr.mxu0 %v73
    %133 = vmatpush1.msra.mxu0 %v72
    %134 = vmatprep.subr.mxu0 %v77
    %135 = vmatpush1.msra.mxu0 %v76
    %136 = vmatprep.subr.mxu0 %v81
    %137 = vmatpush1.msra.mxu0 %v80
    %138 = vmatprep.subr.mxu0 %v85
    %139 = vmatpush1.msra.mxu0 %v84
    %140 = vmatprep.subr.mxu0 %v89
    %141 = vmatpush1.msra.mxu0 %v88
    %142 = vmatprep.subr.mxu0 %v93
    %143 = vmatpush1.msra.mxu0 %v92
    %144 = vmatprep.subr.mxu0 %v97
    %145 = vmatpush1.msra.mxu0 %v96
    %146 = vmatprep.subr.mxu0 %v101
    %147 = vmatpush1.msra.mxu0 %v100
    %148 = vmatprep.subr.mxu0 %v105
    %149 = vmatpush1.msra.mxu0 %v104
    %150 = vmatprep.subr.mxu0 %v109
    %151 = vmatpush1.msra.mxu0 %v108
    %152 = vmatprep.subr.mxu0 %v113
    %153 = vmatpush1.msra.mxu0 %v112
    %154 = vmatprep.subr.mxu0 %v117
    %155 = vmatpush1.msra.mxu0 %v116
    %156 = vmatprep.subr.mxu0 %v121
    %157 = vmatpush1.msra.mxu0 %v120
    %158 = vmatprep.subr.mxu0 %v125
    %159 = vmatpush1.msra.mxu0 %v124
    %160 = vmatprep.subr.mxu0 0.0
    %161 = vmatpush1.msra.mxu0 0.0
    %162 = vmatprep.subr.mxu0 0.0
    %163 = vmatpush1.msra.mxu0 0.0
    %164 = vmatprep.subr.mxu0 0.0
    %165 = vmatpush1.msra.mxu0 0.0
    %166 = vmatprep.subr.mxu0 0.0
    %167 = vmatpush1.msra.mxu0 0.0
    %168 = vmatprep.subr.mxu0 0.0
    %169 = vmatpush1.msra.mxu0 0.0
    %170 = vmatprep.subr.mxu0 0.0
    %171 = vmatpush1.msra.mxu0 0.0
    %172 = vmatprep.subr.mxu0 0.0
    %173 = vmatpush1.msra.mxu0 0.0
    %174 = vmatprep.subr.mxu0 0.0
    %175 = vmatpush1.msra.mxu0 0.0
    %176 = vmatprep.subr.mxu0 0.0
    %177 = vmatpush1.msra.mxu0 0.0
    %178 = vmatprep.subr.mxu0 0.0
    %179 = vmatpush1.msra.mxu0 0.0
    %180 = vmatprep.subr.mxu0 0.0
    %181 = vmatpush1.msra.mxu0 0.0
    %182 = vmatprep.subr.mxu0 0.0
    %183 = vmatpush1.msra.mxu0 0.0
    %184 = vmatprep.subr.mxu0 0.0
    %185 = vmatpush1.msra.mxu0 0.0
    %186 = vmatprep.subr.mxu0 0.0
    %187 = vmatpush1.msra.mxu0 0.0
    %188 = vmatprep.subr.mxu0 0.0
    %189 = vmatpush1.msra.mxu0 0.0
    %190 = vmatprep.subr.mxu0 0.0
    %191 = vmatpush1.msra.mxu0 0.0
    %192 = vmatprep.mubr.f32.mxu0 0.0
    %193 = vmatmul.mubr.f32.gmra.mrb[0].mxu0 %v52
    %v194 = vpop.f32.mrb[0].mxu0
    %v195 = vadd.f32 0.0, %v194
    %v196 = vpop.f32.mrb[0].mxu0
    %v197 = vadd.f32 0.0, %v196
    %198 = vdwg.mxu0
    %199 = vmatprep.subr.mxu0 %v67
    %200 = vmatpush1.msra.mxu0 %v66
    %201 = vmatprep.subr.mxu0 %v71
    %202 = vmatpush1.msra.mxu0 %v70
    %203 = vmatprep.subr.mxu0 %v75
    %204 = vmatpush1.msra.mxu0 %v74
    %205 = vmatprep.subr.mxu0 %v79
    %206 = vmatpush1.msra.mxu0 %v78
    %207 = vmatprep.subr.mxu0 %v83
    %208 = vmatpush1.msra.mxu0 %v82
    %209 = vmatprep.subr.mxu0 %v87
    %210 = vmatpush1.msra.mxu0 %v86
    %211 = vmatprep.subr.mxu0 %v91
    %212 = vmatpush1.msra.mxu0 %v90
    %213 = vmatprep.subr.mxu0 %v95
    %214 = vmatpush1.msra.mxu0 %v94
    %215 = vmatprep.subr.mxu0 %v99
    %216 = vmatpush1.msra.mxu0 %v98
    %217 = vmatprep.subr.mxu0 %v103
    %218 = vmatpush1.msra.mxu0 %v102
    %219 = vmatprep.subr.mxu0 %v107
    %220 = vmatpush1.msra.mxu0 %v106
    %221 = vmatprep.subr.mxu0 %v111
    %222 = vmatpush1.msra.mxu0 %v110
    %223 = vmatprep.subr.mxu0 %v115
    %224 = vmatpush1.msra.mxu0 %v114
    %225 = vmatprep.subr.mxu0 %v119
    %226 = vmatpush1.msra.mxu0 %v118
    %227 = vmatprep.subr.mxu0 %v123
    %228 = vmatpush1.msra.mxu0 %v122
    %229 = vmatprep.subr.mxu0 %v127
    %230 = vmatpush1.msra.mxu0 %v126
    %231 = vmatprep.subr.mxu0 0.0
    %232 = vmatpush1.msra.mxu0 0.0
    %233 = vmatprep.subr.mxu0 0.0
    %234 = vmatpush1.msra.mxu0 0.0
    %235 = vmatprep.subr.mxu0 0.0
    %236 = vmatpush1.msra.mxu0 0.0
    %237 = vmatprep.subr.mxu0 0.0
    %238 = vmatpush1.msra.mxu0 0.0
    %239 = vmatprep.subr.mxu0 0.0
    %240 = vmatpush1.msra.mxu0 0.0
    %241 = vmatprep.subr.mxu0 0.0
    %242 = vmatpush1.msra.mxu0 0.0
    %243 = vmatprep.subr.mxu0 0.0
    %244 = vmatpush1.msra.mxu0 0.0
    %245 = vmatprep.subr.mxu0 0.0
    %246 = vmatpush1.msra.mxu0 0.0
    %247 = vmatprep.subr.mxu0 0.0
    %248 = vmatpush1.msra.mxu0 0.0
    %249 = vmatprep.subr.mxu0 0.0
    %250 = vmatpush1.msra.mxu0 0.0
    %251 = vmatprep.subr.mxu0 0.0
    %252 = vmatpush1.msra.mxu0 0.0
    %253 = vmatprep.subr.mxu0 0.0
    %254 = vmatpush1.msra.mxu0 0.0
    %255 = vmatprep.subr.mxu0 0.0
    %256 = vmatpush1.msra.mxu0 0.0
    %257 = vmatprep.subr.mxu0 0.0
    %258 = vmatpush1.msra.mxu0 0.0
    %259 = vmatprep.subr.mxu0 0.0
    %260 = vmatpush1.msra.mxu0 0.0
    %261 = vmatprep.subr.mxu0 0.0
    %262 = vmatpush1.msra.mxu0 0.0
    %263 = vmatprep.mubr.f32.mxu0 0.0
    %264 = vmatmul.mubr.f32.gmra.mrb[0].mxu0 %v52
    %v265 = vpop.f32.mrb[0].mxu0
    %v266 = vadd.f32 0.0, %v265
    %v267 = vpop.f32.mrb[0].mxu0
    %v268 = vadd.f32 0.0, %v267
    %269 = vdwg.mxu0
    %v270 = vadd.f32 %v56, %v195
    %v271 = vadd.f32 %v57, %v197
    %v272 = vadd.f32 %v58, %v266
    %v273 = vadd.f32 %v59, %v268
    %274 = vmatprep.subr.mxu0 %v65
    %275 = vmatpush1.msra.mxu0 %v64
    %276 = vmatprep.subr.mxu0 %v69
    %277 = vmatpush1.msra.mxu0 %v68
    %278 = vmatprep.subr.mxu0 %v73
    %279 = vmatpush1.msra.mxu0 %v72
    %280 = vmatprep.subr.mxu0 %v77
    %281 = vmatpush1.msra.mxu0 %v76
    %282 = vmatprep.subr.mxu0 %v81
    %283 = vmatpush1.msra.mxu0 %v80
    %284 = vmatprep.subr.mxu0 %v85
    %285 = vmatpush1.msra.mxu0 %v84
    %286 = vmatprep.subr.mxu0 %v89
    %287 = vmatpush1.msra.mxu0 %v88
    %288 = vmatprep.subr.mxu0 %v93
    %289 = vmatpush1.msra.mxu0 %v92
    %290 = vmatprep.subr.mxu0 %v97
    %291 = vmatpush1.msra.mxu0 %v96
    %292 = vmatprep.subr.mxu0 %v101
    %293 = vmatpush1.msra.mxu0 %v100
    %294 = vmatprep.subr.mxu0 %v105
    %295 = vmatpush1.msra.mxu0 %v104
    %296 = vmatprep.subr.mxu0 %v109
    %297 = vmatpush1.msra.mxu0 %v108
    %298 = vmatprep.subr.mxu0 %v113
    %299 = vmatpush1.msra.mxu0 %v112
    %300 = vmatprep.subr.mxu0 %v117
    %301 = vmatpush1.msra.mxu0 %v116
    %302 = vmatprep.subr.mxu0 %v121
    %303 = vmatpush1.msra.mxu0 %v120
    %304 = vmatprep.subr.mxu0 %v125
    %305 = vmatpush1.msra.mxu0 %v124
    %306 = vmatprep.subr.mxu0 0.0
    %307 = vmatpush1.msra.mxu0 0.0
    %308 = vmatprep.subr.mxu0 0.0
    %309 = vmatpush1.msra.mxu0 0.0
    %310 = vmatprep.subr.mxu0 0.0
    %311 = vmatpush1.msra.mxu0 0.0
    %312 = vmatprep.subr.mxu0 0.0
    %313 = vmatpush1.msra.mxu0 0.0
    %314 = vmatprep.subr.mxu0 0.0
    %315 = vmatpush1.msra.mxu0 0.0
    %316 = vmatprep.subr.mxu0 0.0
    %317 = vmatpush1.msra.mxu0 0.0
    %318 = vmatprep.subr.mxu0 0.0
    %319 = vmatpush1.msra.mxu0 0.0
    %320 = vmatprep.subr.mxu0 0.0
    %321 = vmatpush1.msra.mxu0 0.0
    %322 = vmatprep.subr.mxu0 0.0
    %323 = vmatpush1.msra.mxu0 0.0
    %324 = vmatprep.subr.mxu0 0.0
    %325 = vmatpush1.msra.mxu0 0.0
    %326 = vmatprep.subr.mxu0 0.0
    %327 = vmatpush1.msra.mxu0 0.0
    %328 = vmatprep.subr.mxu0 0.0
    %329 = vmatpush1.msra.mxu0 0.0
    %330 = vmatprep.subr.mxu0 0.0
    %331 = vmatpush1.msra.mxu0 0.0
    %332 = vmatprep.subr.mxu0 0.0
    %333 = vmatpush1.msra.mxu0 0.0
    %334 = vmatprep.subr.mxu0 0.0
    %335 = vmatpush1.msra.mxu0 0.0
    %336 = vmatprep.subr.mxu0 0.0
    %337 = vmatpush1.msra.mxu0 0.0
    %338 = vmatprep.mubr.f32.mxu0 0.0
    %339 = vmatmul.mubr.f32.gmra.mrb[0].mxu0 %v54
    %v340 = vpop.f32.mrb[0].mxu0
    %v341 = vadd.f32 0.0, %v340
    %v342 = vpop.f32.mrb[0].mxu0
    %v343 = vadd.f32 0.0, %v342
    %344 = vdwg.mxu0
    %345 = vmatprep.subr.mxu0 %v67
    %346 = vmatpush1.msra.mxu0 %v66
    %347 = vmatprep.subr.mxu0 %v71
    %348 = vmatpush1.msra.mxu0 %v70
    %349 = vmatprep.subr.mxu0 %v75
    %350 = vmatpush1.msra.mxu0 %v74
    %351 = vmatprep.subr.mxu0 %v79
    %352 = vmatpush1.msra.mxu0 %v78
    %353 = vmatprep.subr.mxu0 %v83
    %354 = vmatpush1.msra.mxu0 %v82
    %355 = vmatprep.subr.mxu0 %v87
    %356 = vmatpush1.msra.mxu0 %v86
    %357 = vmatprep.subr.mxu0 %v91
    %358 = vmatpush1.msra.mxu0 %v90
    %359 = vmatprep.subr.mxu0 %v95
    %360 = vmatpush1.msra.mxu0 %v94
    %361 = vmatprep.subr.mxu0 %v99
    %362 = vmatpush1.msra.mxu0 %v98
    %363 = vmatprep.subr.mxu0 %v103
    %364 = vmatpush1.msra.mxu0 %v102
    %365 = vmatprep.subr.mxu0 %v107
    %366 = vmatpush1.msra.mxu0 %v106
    %367 = vmatprep.subr.mxu0 %v111
    %368 = vmatpush1.msra.mxu0 %v110
    %369 = vmatprep.subr.mxu0 %v115
    %370 = vmatpush1.msra.mxu0 %v114
    %371 = vmatprep.subr.mxu0 %v119
    %372 = vmatpush1.msra.mxu0 %v118
    %373 = vmatprep.subr.mxu0 %v123
    %374 = vmatpush1.msra.mxu0 %v122
    %375 = vmatprep.subr.mxu0 %v127
    %376 = vmatpush1.msra.mxu0 %v126
    %377 = vmatprep.subr.mxu0 0.0
    %378 = vmatpush1.msra.mxu0 0.0
    %379 = vmatprep.subr.mxu0 0.0
    %380 = vmatpush1.msra.mxu0 0.0
    %381 = vmatprep.subr.mxu0 0.0
    %382 = vmatpush1.msra.mxu0 0.0
    %383 = vmatprep.subr.mxu0 0.0
    %384 = vmatpush1.msra.mxu0 0.0
    %385 = vmatprep.subr.mxu0 0.0
    %386 = vmatpush1.msra.mxu0 0.0
    %387 = vmatprep.subr.mxu0 0.0
    %388 = vmatpush1.msra.mxu0 0.0
    %389 = vmatprep.subr.mxu0 0.0
    %390 = vmatpush1.msra.mxu0 0.0
    %391 = vmatprep.subr.mxu0 0.0
    %392 = vmatpush1.msra.mxu0 0.0
    %393 = vmatprep.subr.mxu0 0.0
    %394 = vmatpush1.msra.mxu0 0.0
    %395 = vmatprep.subr.mxu0 0.0
    %396 = vmatpush1.msra.mxu0 0.0
    %397 = vmatprep.subr.mxu0 0.0
    %398 = vmatpush1.msra.mxu0 0.0
    %399 = vmatprep.subr.mxu0 0.0
    %400 = vmatpush1.msra.mxu0 0.0
    %401 = vmatprep.subr.mxu0 0.0
    %402 = vmatpush1.msra.mxu0 0.0
    %403 = vmatprep.subr.mxu0 0.0
    %404 = vmatpush1.msra.mxu0 0.0
    %405 = vmatprep.subr.mxu0 0.0
    %406 = vmatpush1.msra.mxu0 0.0
    %407 = vmatprep.subr.mxu0 0.0
    %408 = vmatpush1.msra.mxu0 0.0
    %409 = vmatprep.mubr.f32.mxu0 0.0
    %410 = vmatmul.mubr.f32.gmra.mrb[0].mxu0 %v54
    %v411 = vpop.f32.mrb[0].mxu0
    %v412 = vadd.f32 0.0, %v411
    %v413 = vpop.f32.mrb[0].mxu0
    %v414 = vadd.f32 0.0, %v413
    %415 = vdwg.mxu0
    %v416 = vadd.f32 %v60, %v341
    %v417 = vadd.f32 %v61, %v343
    %v418 = vadd.f32 %v62, %v412
    %v419 = vadd.f32 %v63, %v414
    %v420 = vmul.f32 %v270, 0.5
    %v421 = vtanh.pop %v420
    %v422 = vmul.f32 %v421, 0.5
    %v423 = vadd.f32 %v422, 0.5
    %v424 = vmul.f32 %v271, 0.5
    %v425 = vtanh.pop %v424
    %v426 = vmul.f32 %v425, 0.5
    %v427 = vadd.f32 %v426, 0.5
    %v428 = vtanh.pop %v272
    %v429 = vmul.f32 %v273, 0.5
    %v430 = vtanh.pop %v429
    %v431 = vmul.f32 %v430, 0.5
    %v432 = vadd.f32 %v431, 0.5
    %v433 = vmul.f32 %v427, %v53
    %v434 = vmul.f32 %v423, %v428
    %v435 = vadd.f32 %v433, %v434
    %v436 = vtanh.pop %v435
    %v437 = vmul.f32 %v432, %v436
    %v438 = vmul.f32 %v416, 0.5
    %v439 = vtanh.pop %v438
    %v440 = vmul.f32 %v439, 0.5
    %v441 = vadd.f32 %v440, 0.5
    %v442 = vmul.f32 %v417, 0.5
    %v443 = vtanh.pop %v442
    %v444 = vmul.f32 %v443, 0.5
    %v445 = vadd.f32 %v444, 0.5
    %v446 = vtanh.pop %v418
    %v447 = vmul.f32 %v419, 0.5
    %v448 = vtanh.pop %v447
    %v449 = vmul.f32 %v448, 0.5
    %v450 = vadd.f32 %v449, 0.5
    %v451 = vmul.f32 %v445, %v55
    %v452 = vmul.f32 %v441, %v446
    %v453 = vadd.f32 %v451, %v452
    %v454 = vtanh.pop %v453
    %v455 = vmul.f32 %v450, %v454
    %456 = vst [vmem:[#allocation11] sm:$0xff] %v437
    %457 = vst [vmem:[#allocation11 + $0x8] sm:$0xff] %v455
    %s458 = scalar_lea.vmem [#allocation6], 64
    %v459 = vld [vmem:[%s458] sm:$0xff]
    %v460 = vld [vmem:[%s458 + $0x8] sm:$0xff]
    %v461 = vld [vmem:[%s458 + $0x10] sm:$0xff]
    %v462 = vld [vmem:[%s458 + $0x18] sm:$0xff]
    %v463 = vld [vmem:[%s458 + $0x20] sm:$0xff]
    %v464 = vld [vmem:[%s458 + $0x28] sm:$0xff]
    %v465 = vld [vmem:[%s458 + $0x30] sm:$0xff]
    %v466 = vld [vmem:[%s458 + $0x38] sm:$0xff]
    %v467 = vld [vmem:[#allocation9] sm:$0xff]
    %v468 = vld [vmem:[#allocation9 + $0x8] sm:$0xff]
    %v469 = vld [vmem:[#allocation9 + $0x10] sm:$0xff]
    %v470 = vld [vmem:[#allocation9 + $0x18] sm:$0xff]
    %v471 = vld [vmem:[#allocation9 + $0x20] sm:$0xff]
    %v472 = vld [vmem:[#allocation9 + $0x28] sm:$0xff]
    %v473 = vld [vmem:[#allocation9 + $0x30] sm:$0xff]
    %v474 = vld [vmem:[#allocation9 + $0x38] sm:$0xff]
    %v475 = vld [vmem:[#allocation9 + $0x40] sm:$0xff]
    %v476 = vld [vmem:[#allocation9 + $0x48] sm:$0xff]
    %v477 = vld [vmem:[#allocation9 + $0x50] sm:$0xff]
    %v478 = vld [vmem:[#allocation9 + $0x58] sm:$0xff]
    %v479 = vld [vmem:[#allocation9 + $0x60] sm:$0xff]
    %v480 = vld [vmem:[#allocation9 + $0x68] sm:$0xff]
    %v481 = vld [vmem:[#allocation9 + $0x70] sm:$0xff]
    %v482 = vld [vmem:[#allocation9 + $0x78] sm:$0xff]
    %v483 = vld [vmem:[#allocation9 + $0x80] sm:$0xff]
    %v484 = vld [vmem:[#allocation9 + $0x88] sm:$0xff]
    %v485 = vld [vmem:[#allocation9 + $0x90] sm:$0xff]
    %v486 = vld [vmem:[#allocation9 + $0x98] sm:$0xff]
    %v487 = vld [vmem:[#allocation9 + $0xa0] sm:$0xff]
    %v488 = vld [vmem:[#allocation9 + $0xa8] sm:$0xff]
    %v489 = vld [vmem:[#allocation9 + $0xb0] sm:$0xff]
    %v490 = vld [vmem:[#allocation9 + $0xb8] sm:$0xff]
    %v491 = vld [vmem:[#allocation9 + $0xc0] sm:$0xff]
    %v492 = vld [vmem:[#allocation9 + $0xc8] sm:$0xff]
    %v493 = vld [vmem:[#allocation9 + $0xd0] sm:$0xff]
    %v494 = vld [vmem:[#allocation9 + $0xd8] sm:$0xff]
    %v495 = vld [vmem:[#allocation9 + $0xe0] sm:$0xff]
    %v496 = vld [vmem:[#allocation9 + $0xe8] sm:$0xff]
    %v497 = vld [vmem:[#allocation9 + $0xf0] sm:$0xff]
    %v498 = vld [vmem:[#allocation9 + $0xf8] sm:$0xff]
    %v499 = vld [vmem:[#allocation9 + $0x100] sm:$0xff]
    %v500 = vld [vmem:[#allocation9 + $0x108] sm:$0xff]
    %v501 = vld [vmem:[#allocation9 + $0x110] sm:$0xff]
    %v502 = vld [vmem:[#allocation9 + $0x118] sm:$0xff]
    %v503 = vld [vmem:[#allocation9 + $0x120] sm:$0xff]
    %v504 = vld [vmem:[#allocation9 + $0x128] sm:$0xff]
    %v505 = vld [vmem:[#allocation9 + $0x130] sm:$0xff]
    %v506 = vld [vmem:[#allocation9 + $0x138] sm:$0xff]
    %v507 = vld [vmem:[#allocation9 + $0x140] sm:$0xff]
    %v508 = vld [vmem:[#allocation9 + $0x148] sm:$0xff]
    %v509 = vld [vmem:[#allocation9 + $0x150] sm:$0xff]
    %v510 = vld [vmem:[#allocation9 + $0x158] sm:$0xff]
    %v511 = vld [vmem:[#allocation9 + $0x160] sm:$0xff]
    %v512 = vld [vmem:[#allocation9 + $0x168] sm:$0xff]
    %v513 = vld [vmem:[#allocation9 + $0x170] sm:$0xff]
    %v514 = vld [vmem:[#allocation9 + $0x178] sm:$0xff]
    %v515 = vld [vmem:[#allocation9 + $0x180] sm:$0xff]
    %v516 = vld [vmem:[#allocation9 + $0x188] sm:$0xff]
    %v517 = vld [vmem:[#allocation9 + $0x190] sm:$0xff]
    %v518 = vld [vmem:[#allocation9 + $0x198] sm:$0xff]
    %v519 = vld [vmem:[#allocation9 + $0x1a0] sm:$0xff]
    %v520 = vld [vmem:[#allocation9 + $0x1a8] sm:$0xff]
    %v521 = vld [vmem:[#allocation9 + $0x1b0] sm:$0xff]
    %v522 = vld [vmem:[#allocation9 + $0x1b8] sm:$0xff]
    %v523 = vld [vmem:[#allocation9 + $0x1c0] sm:$0xff]
    %v524 = vld [vmem:[#allocation9 + $0x1c8] sm:$0xff]
    %v525 = vld [vmem:[#allocation9 + $0x1d0] sm:$0xff]
    %v526 = vld [vmem:[#allocation9 + $0x1d8] sm:$0xff]
    %v527 = vld [vmem:[#allocation9 + $0x1e0] sm:$0xff]
    %v528 = vld [vmem:[#allocation9 + $0x1e8] sm:$0xff]
    %v529 = vld [vmem:[#allocation9 + $0x1f0] sm:$0xff]
    %v530 = vld [vmem:[#allocation9 + $0x1f8] sm:$0xff]
    %531 = vmatprep.subr.mxu0 %v468
    %532 = vmatpush1.msra.mxu0 %v467
    %533 = vmatprep.subr.mxu0 %v472
    %534 = vmatpush1.msra.mxu0 %v471
    %535 = vmatprep.subr.mxu0 %v476
    %536 = vmatpush1.msra.mxu0 %v475
    %537 = vmatprep.subr.mxu0 %v480
    %538 = vmatpush1.msra.mxu0 %v479
    %539 = vmatprep.subr.mxu0 %v484
    %540 = vmatpush1.msra.mxu0 %v483
    %541 = vmatprep.subr.mxu0 %v488
    %542 = vmatpush1.msra.mxu0 %v487
    %543 = vmatprep.subr.mxu0 %v492
    %544 = vmatpush1.msra.mxu0 %v491
    %545 = vmatprep.subr.mxu0 %v496
    %546 = vmatpush1.msra.mxu0 %v495
    %547 = vmatprep.subr.mxu0 %v500
    %548 = vmatpush1.msra.mxu0 %v499
    %549 = vmatprep.subr.mxu0 %v504
    %550 = vmatpush1.msra.mxu0 %v503
    %551 = vmatprep.subr.mxu0 %v508
    %552 = vmatpush1.msra.mxu0 %v507
    %553 = vmatprep.subr.mxu0 %v512
    %554 = vmatpush1.msra.mxu0 %v511
    %555 = vmatprep.subr.mxu0 %v516
    %556 = vmatpush1.msra.mxu0 %v515
    %557 = vmatprep.subr.mxu0 %v520
    %558 = vmatpush1.msra.mxu0 %v519
    %559 = vmatprep.subr.mxu0 %v524
    %560 = vmatpush1.msra.mxu0 %v523
    %561 = vmatprep.subr.mxu0 %v528
    %562 = vmatpush1.msra.mxu0 %v527
    %563 = vmatprep.subr.mxu0 0.0
    %564 = vmatpush1.msra.mxu0 0.0
    %565 = vmatprep.subr.mxu0 0.0
    %566 = vmatpush1.msra.mxu0 0.0
    %567 = vmatprep.subr.mxu0 0.0
    %568 = vmatpush1.msra.mxu0 0.0
    %569 = vmatprep.subr.mxu0 0.0
    %570 = vmatpush1.msra.mxu0 0.0
    %571 = vmatprep.subr.mxu0 0.0
    %572 = vmatpush1.msra.mxu0 0.0
    %573 = vmatprep.subr.mxu0 0.0
    %574 = vmatpush1.msra.mxu0 0.0
    %575 = vmatprep.subr.mxu0 0.0
    %576 = vmatpush1.msra.mxu0 0.0
    %577 = vmatprep.subr.mxu0 0.0
    %578 = vmatpush1.msra.mxu0 0.0
    %579 = vmatprep.subr.mxu0 0.0
    %580 = vmatpush1.msra.mxu0 0.0
    %581 = vmatprep.subr.mxu0 0.0
    %582 = vmatpush1.msra.mxu0 0.0
    %583 = vmatprep.subr.mxu0 0.0
    %584 = vmatpush1.msra.mxu0 0.0
    %585 = vmatprep.subr.mxu0 0.0
    %586 = vmatpush1.msra.mxu0 0.0
    %587 = vmatprep.subr.mxu0 0.0
    %588 = vmatpush1.msra.mxu0 0.0
    %589 = vmatprep.subr.mxu0 0.0
    %590 = vmatpush1.msra.mxu0 0.0
    %591 = vmatprep.subr.mxu0 0.0
    %592 = vmatpush1.msra.mxu0 0.0
    %593 = vmatprep.subr.mxu0 0.0
    %594 = vmatpush1.msra.mxu0 0.0
    %595 = vmatprep.mubr.f32.mxu0 0.0
    %596 = vmatmul.mubr.f32.gmra.mrb[0].mxu0 %v437
    %v597 = vpop.f32.mrb[0].mxu0
    %v598 = vadd.f32 0.0, %v597
    %v599 = vpop.f32.mrb[0].mxu0
    %v600 = vadd.f32 0.0, %v599
    %601 = vdwg.mxu0
    %602 = vmatprep.subr.mxu0 %v470
    %603 = vmatpush1.msra.mxu0 %v469
    %604 = vmatprep.subr.mxu0 %v474
    %605 = vmatpush1.msra.mxu0 %v473
    %606 = vmatprep.subr.mxu0 %v478
    %607 = vmatpush1.msra.mxu0 %v477
    %608 = vmatprep.subr.mxu0 %v482
    %609 = vmatpush1.msra.mxu0 %v481
    %610 = vmatprep.subr.mxu0 %v486
    %611 = vmatpush1.msra.mxu0 %v485
    %612 = vmatprep.subr.mxu0 %v490
    %613 = vmatpush1.msra.mxu0 %v489
    %614 = vmatprep.subr.mxu0 %v494
    %615 = vmatpush1.msra.mxu0 %v493
    %616 = vmatprep.subr.mxu0 %v498
    %617 = vmatpush1.msra.mxu0 %v497
    %618 = vmatprep.subr.mxu0 %v502
    %619 = vmatpush1.msra.mxu0 %v501
    %620 = vmatprep.subr.mxu0 %v506
    %621 = vmatpush1.msra.mxu0 %v505
    %622 = vmatprep.subr.mxu0 %v510
    %623 = vmatpush1.msra.mxu0 %v509
    %624 = vmatprep.subr.mxu0 %v514
    %625 = vmatpush1.msra.mxu0 %v513
    %626 = vmatprep.subr.mxu0 %v518
    %627 = vmatpush1.msra.mxu0 %v517
    %628 = vmatprep.subr.mxu0 %v522
    %629 = vmatpush1.msra.mxu0 %v521
    %630 = vmatprep.subr.mxu0 %v526
    %631 = vmatpush1.msra.mxu0 %v525
    %632 = vmatprep.subr.mxu0 %v530
    %633 = vmatpush1.msra.mxu0 %v529
    %634 = vmatprep.subr.mxu0 0.0
    %635 = vmatpush1.msra.mxu0 0.0
    %636 = vmatprep.subr.mxu0 0.0
    %637 = vmatpush1.msra.mxu0 0.0
    %638 = vmatprep.subr.mxu0 0.0
    %639 = vmatpush1.msra.mxu0 0.0
    %640 = vmatprep.subr.mxu0 0.0
    %641 = vmatpush1.msra.mxu0 0.0
    %642 = vmatprep.subr.mxu0 0.0
    %643 = vmatpush1.msra.mxu0 0.0
    %644 = vmatprep.subr.mxu0 0.0
    %645 = vmatpush1.msra.mxu0 0.0
    %646 = vmatprep.subr.mxu0 0.0
    %647 = vmatpush1.msra.mxu0 0.0
    %648 = vmatprep.subr.mxu0 0.0
    %649 = vmatpush1.msra.mxu0 0.0
    %650 = vmatprep.subr.mxu0 0.0
    %651 = vmatpush1.msra.mxu0 0.0
    %652 = vmatprep.subr.mxu0 0.0
    %653 = vmatpush1.msra.mxu0 0.0
    %654 = vmatprep.subr.mxu0 0.0
    %655 = vmatpush1.msra.mxu0 0.0
    %656 = vmatprep.subr.mxu0 0.0
    %657 = vmatpush1.msra.mxu0 0.0
    %658 = vmatprep.subr.mxu0 0.0
    %659 = vmatpush1.msra.mxu0 0.0
    %660 = vmatprep.subr.mxu0 0.0
    %661 = vmatpush1.msra.mxu0 0.0
    %662 = vmatprep.subr.mxu0 0.0
    %663 = vmatpush1.msra.mxu0 0.0
    %664 = vmatprep.subr.mxu0 0.0
    %665 = vmatpush1.msra.mxu0 0.0
    %666 = vmatprep.mubr.f32.mxu0 0.0
    %667 = vmatmul.mubr.f32.gmra.mrb[0].mxu0 %v437
    %v668 = vpop.f32.mrb[0].mxu0
    %v669 = vadd.f32 0.0, %v668
    %v670 = vpop.f32.mrb[0].mxu0
    %v671 = vadd.f32 0.0, %v670
    %672 = vdwg.mxu0
    %v673 = vadd.f32 %v459, %v598
    %v674 = vadd.f32 %v460, %v600
    %v675 = vadd.f32 %v461, %v669
    %v676 = vadd.f32 %v462, %v671
    %677 = vmatprep.subr.mxu0 %v468
    %678 = vmatpush1.msra.mxu0 %v467
    %679 = vmatprep.subr.mxu0 %v472
    %680 = vmatpush1.msra.mxu0 %v471
    %681 = vmatprep.subr.mxu0 %v476
    %682 = vmatpush1.msra.mxu0 %v475
    %683 = vmatprep.subr.mxu0 %v480
    %684 = vmatpush1.msra.mxu0 %v479
    %685 = vmatprep.subr.mxu0 %v484
    %686 = vmatpush1.msra.mxu0 %v483
    %687 = vmatprep.subr.mxu0 %v488
    %688 = vmatpush1.msra.mxu0 %v487
    %689 = vmatprep.subr.mxu0 %v492
    %690 = vmatpush1.msra.mxu0 %v491
    %691 = vmatprep.subr.mxu0 %v496
    %692 = vmatpush1.msra.mxu0 %v495
    %693 = vmatprep.subr.mxu0 %v500
    %694 = vmatpush1.msra.mxu0 %v499
    %695 = vmatprep.subr.mxu0 %v504
    %696 = vmatpush1.msra.mxu0 %v503
    %697 = vmatprep.subr.mxu0 %v508
    %698 = vmatpush1.msra.mxu0 %v507
    %699 = vmatprep.subr.mxu0 %v512
    %700 = vmatpush1.msra.mxu0 %v511
    %701 = vmatprep.subr.mxu0 %v516
    %702 = vmatpush1.msra.mxu0 %v515
    %703 = vmatprep.subr.mxu0 %v520
    %704 = vmatpush1.msra.mxu0 %v519
    %705 = vmatprep.subr.mxu0 %v524
    %706 = vmatpush1.msra.mxu0 %v523
    %707 = vmatprep.subr.mxu0 %v528
    %708 = vmatpush1.msra.mxu0 %v527
    %709 = vmatprep.subr.mxu0 0.0
    %710 = vmatpush1.msra.mxu0 0.0
    %711 = vmatprep.subr.mxu0 0.0
    %712 = vmatpush1.msra.mxu0 0.0
    %713 = vmatprep.subr.mxu0 0.0
    %714 = vmatpush1.msra.mxu0 0.0
    %715 = vmatprep.subr.mxu0 0.0
    %716 = vmatpush1.msra.mxu0 0.0
    %717 = vmatprep.subr.mxu0 0.0
    %718 = vmatpush1.msra.mxu0 0.0
    %719 = vmatprep.subr.mxu0 0.0
    %720 = vmatpush1.msra.mxu0 0.0
    %721 = vmatprep.subr.mxu0 0.0
    %722 = vmatpush1.msra.mxu0 0.0
    %723 = vmatprep.subr.mxu0 0.0
    %724 = vmatpush1.msra.mxu0 0.0
    %725 = vmatprep.subr.mxu0 0.0
    %726 = vmatpush1.msra.mxu0 0.0
    %727 = vmatprep.subr.mxu0 0.0
    %728 = vmatpush1.msra.mxu0 0.0
    %729 = vmatprep.subr.mxu0 0.0
    %730 = vmatpush1.msra.mxu0 0.0
    %731 = vmatprep.subr.mxu0 0.0
    %732 = vmatpush1.msra.mxu0 0.0
    %733 = vmatprep.subr.mxu0 0.0
    %734 = vmatpush1.msra.mxu0 0.0
    %735 = vmatprep.subr.mxu0 0.0
    %736 = vmatpush1.msra.mxu0 0.0
    %737 = vmatprep.subr.mxu0 0.0
    %738 = vmatpush1.msra.mxu0 0.0
    %739 = vmatprep.subr.mxu0 0.0
    %740 = vmatpush1.msra.mxu0 0.0
    %741 = vmatprep.mubr.f32.mxu0 0.0
    %742 = vmatmul.mubr.f32.gmra.mrb[0].mxu0 %v455
    %v743 = vpop.f32.mrb[0].mxu0
    %v744 = vadd.f32 0.0, %v743
    %v745 = vpop.f32.mrb[0].mxu0
    %v746 = vadd.f32 0.0, %v745
    %747 = vdwg.mxu0
    %748 = vmatprep.subr.mxu0 %v470
    %749 = vmatpush1.msra.mxu0 %v469
    %750 = vmatprep.subr.mxu0 %v474
    %751 = vmatpush1.msra.mxu0 %v473
    %752 = vmatprep.subr.mxu0 %v478
    %753 = vmatpush1.msra.mxu0 %v477
    %754 = vmatprep.subr.mxu0 %v482
    %755 = vmatpush1.msra.mxu0 %v481
    %756 = vmatprep.subr.mxu0 %v486
    %757 = vmatpush1.msra.mxu0 %v485
    %758 = vmatprep.subr.mxu0 %v490
    %759 = vmatpush1.msra.mxu0 %v489
    %760 = vmatprep.subr.mxu0 %v494
    %761 = vmatpush1.msra.mxu0 %v493
    %762 = vmatprep.subr.mxu0 %v498
    %763 = vmatpush1.msra.mxu0 %v497
    %764 = vmatprep.subr.mxu0 %v502
    %765 = vmatpush1.msra.mxu0 %v501
    %766 = vmatprep.subr.mxu0 %v506
    %767 = vmatpush1.msra.mxu0 %v505
    %768 = vmatprep.subr.mxu0 %v510
    %769 = vmatpush1.msra.mxu0 %v509
    %770 = vmatprep.subr.mxu0 %v514
    %771 = vmatpush1.msra.mxu0 %v513
    %772 = vmatprep.subr.mxu0 %v518
    %773 = vmatpush1.msra.mxu0 %v517
    %774 = vmatprep.subr.mxu0 %v522
    %775 = vmatpush1.msra.mxu0 %v521
    %776 = vmatprep.subr.mxu0 %v526
    %777 = vmatpush1.msra.mxu0 %v525
    %778 = vmatprep.subr.mxu0 %v530
    %779 = vmatpush1.msra.mxu0 %v529
    %780 = vmatprep.subr.mxu0 0.0
    %781 = vmatpush1.msra.mxu0 0.0
    %782 = vmatprep.subr.mxu0 0.0
    %783 = vmatpush1.msra.mxu0 0.0
    %784 = vmatprep.subr.mxu0 0.0
    %785 = vmatpush1.msra.mxu0 0.0
    %786 = vmatprep.subr.mxu0 0.0
    %787 = vmatpush1.msra.mxu0 0.0
    %788 = vmatprep.subr.mxu0 0.0
    %789 = vmatpush1.msra.mxu0 0.0
    %790 = vmatprep.subr.mxu0 0.0
    %791 = vmatpush1.msra.mxu0 0.0
    %792 = vmatprep.subr.mxu0 0.0
    %793 = vmatpush1.msra.mxu0 0.0
    %794 = vmatprep.subr.mxu0 0.0
    %795 = vmatpush1.msra.mxu0 0.0
    %796 = vmatprep.subr.mxu0 0.0
    %797 = vmatpush1.msra.mxu0 0.0
    %798 = vmatprep.subr.mxu0 0.0
    %799 = vmatpush1.msra.mxu0 0.0
    %800 = vmatprep.subr.mxu0 0.0
    %801 = vmatpush1.msra.mxu0 0.0
    %802 = vmatprep.subr.mxu0 0.0
    %803 = vmatpush1.msra.mxu0 0.0
    %804 = vmatprep.subr.mxu0 0.0
    %805 = vmatpush1.msra.mxu0 0.0
    %806 = vmatprep.subr.mxu0 0.0
    %807 = vmatpush1.msra.mxu0 0.0
    %808 = vmatprep.subr.mxu0 0.0
    %809 = vmatpush1.msra.mxu0 0.0
    %810 = vmatprep.subr.mxu0 0.0
    %811 = vmatpush1.msra.mxu0 0.0
    %812 = vmatprep.mubr.f32.mxu0 0.0
    %813 = vmatmul.mubr.f32.gmra.mrb[0].mxu0 %v455
    %v814 = vpop.f32.mrb[0].mxu0
    %v815 = vadd.f32 0.0, %v814
    %v816 = vpop.f32.mrb[0].mxu0
    %v817 = vadd.f32 0.0, %v816
    %818 = vdwg.mxu0
    %v819 = vadd.f32 %v463, %v744
    %v820 = vadd.f32 %v464, %v746
    %v821 = vadd.f32 %v465, %v815
    %v822 = vadd.f32 %v466, %v817
    %v823 = vmul.f32 %v673, 0.5
    %v824 = vtanh.pop %v823
    %v825 = vmul.f32 %v824, 0.5
    %v826 = vadd.f32 %v825, 0.5
    %v827 = vmul.f32 %v674, 0.5
    %v828 = vtanh.pop %v827
    %v829 = vmul.f32 %v828, 0.5
    %v830 = vadd.f32 %v829, 0.5
    %v831 = vtanh.pop %v675
    %v832 = vmul.f32 %v676, 0.5
    %v833 = vtanh.pop %v832
    %v834 = vmul.f32 %v833, 0.5
    %v835 = vadd.f32 %v834, 0.5
    %v836 = vmul.f32 %v830, %v435
    %v837 = vmul.f32 %v826, %v831
    %v838 = vadd.f32 %v836, %v837
    %v839 = vtanh.pop %v838
    %v840 = vmul.f32 %v835, %v839
    %v841 = vmul.f32 %v819, 0.5
    %v842 = vtanh.pop %v841
    %v843 = vmul.f32 %v842, 0.5
    %v844 = vadd.f32 %v843, 0.5
    %v845 = vmul.f32 %v820, 0.5
    %v846 = vtanh.pop %v845
    %v847 = vmul.f32 %v846, 0.5
    %v848 = vadd.f32 %v847, 0.5
    %v849 = vtanh.pop %v821
    %v850 = vmul.f32 %v822, 0.5
    %v851 = vtanh.pop %v850
    %v852 = vmul.f32 %v851, 0.5
    %v853 = vadd.f32 %v852, 0.5
    %v854 = vmul.f32 %v848, %v453
    %v855 = vmul.f32 %v844, %v849
    %v856 = vadd.f32 %v854, %v855
    %v857 = vtanh.pop %v856
    %v858 = vmul.f32 %v853, %v857
    %s859 = scalar_lea.vmem [#allocation11], 16
    %860 = vst [vmem:[%s859] sm:$0xff] %v840
    %861 = vst [vmem:[%s859 + $0x8] sm:$0xff] %v858
    %s862 = scalar_lea.vmem [#allocation6], 128
    %v863 = vld [vmem:[%s862] sm:$0xff]
    %v864 = vld [vmem:[%s862 + $0x8] sm:$0xff]
    %v865 = vld [vmem:[%s862 + $0x10] sm:$0xff]
    %v866 = vld [vmem:[%s862 + $0x18] sm:$0xff]
    %v867 = vld [vmem:[%s862 + $0x20] sm:$0xff]
    %v868 = vld [vmem:[%s862 + $0x28] sm:$0xff]
    %v869 = vld [vmem:[%s862 + $0x30] sm:$0xff]
    %v870 = vld [vmem:[%s862 + $0x38] sm:$0xff]
    %v871 = vld [vmem:[#allocation9] sm:$0xff]
    %v872 = vld [vmem:[#allocation9 + $0x8] sm:$0xff]
    %v873 = vld [vmem:[#allocation9 + $0x10] sm:$0xff]
    %v874 = vld [vmem:[#allocation9 + $0x18] sm:$0xff]
    %v875 = vld [vmem:[#allocation9 + $0x20] sm:$0xff]
    %v876 = vld [vmem:[#allocation9 + $0x28] sm:$0xff]
    %v877 = vld [vmem:[#allocation9 + $0x30] sm:$0xff]
    %v878 = vld [vmem:[#allocation9 + $0x38] sm:$0xff]
    %v879 = vld [vmem:[#allocation9 + $0x40] sm:$0xff]
    %v880 = vld [vmem:[#allocation9 + $0x48] sm:$0xff]
    %v881 = vld [vmem:[#allocation9 + $0x50] sm:$0xff]
    %v882 = vld [vmem:[#allocation9 + $0x58] sm:$0xff]
    %v883 = vld [vmem:[#allocation9 + $0x60] sm:$0xff]
    %v884 = vld [vmem:[#allocation9 + $0x68] sm:$0xff]
    %v885 = vld [vmem:[#allocation9 + $0x70] sm:$0xff]
    %v886 = vld [vmem:[#allocation9 + $0x78] sm:$0xff]
    %v887 = vld [vmem:[#allocation9 + $0x80] sm:$0xff]
    %v888 = vld [vmem:[#allocation9 + $0x88] sm:$0xff]
    %v889 = vld [vmem:[#allocation9 + $0x90] sm:$0xff]
    %v890 = vld [vmem:[#allocation9 + $0x98] sm:$0xff]
    %v891 = vld [vmem:[#allocation9 + $0xa0] sm:$0xff]
    %v892 = vld [vmem:[#allocation9 + $0xa8] sm:$0xff]
    %v893 = vld [vmem:[#allocation9 + $0xb0] sm:$0xff]
    %v894 = vld [vmem:[#allocation9 + $0xb8] sm:$0xff]
    %v895 = vld [vmem:[#allocation9 + $0xc0] sm:$0xff]
    %v896 = vld [vmem:[#allocation9 + $0xc8] sm:$0xff]
    %v897 = vld [vmem:[#allocation9 + $0xd0] sm:$0xff]
    %v898 = vld [vmem:[#allocation9 + $0xd8] sm:$0xff]
    %v899 = vld [vmem:[#allocation9 + $0xe0] sm:$0xff]
    %v900 = vld [vmem:[#allocation9 + $0xe8] sm:$0xff]
    %v901 = vld [vmem:[#allocation9 + $0xf0] sm:$0xff]
    %v902 = vld [vmem:[#allocation9 + $0xf8] sm:$0xff]
    %v903 = vld [vmem:[#allocation9 + $0x100] sm:$0xff]
    %v904 = vld [vmem:[#allocation9 + $0x108] sm:$0xff]
    %v905 = vld [vmem:[#allocation9 + $0x110] sm:$0xff]
    %v906 = vld [vmem:[#allocation9 + $0x118] sm:$0xff]
    %v907 = vld [vmem:[#allocation9 + $0x120] sm:$0xff]
    %v908 = vld [vmem:[#allocation9 + $0x128] sm:$0xff]
    %v909 = vld [vmem:[#allocation9 + $0x130] sm:$0xff]
    %v910 = vld [vmem:[#allocation9 + $0x138] sm:$0xff]
    %v911 = vld [vmem:[#allocation9 + $0x140] sm:$0xff]
    %v912 = vld [vmem:[#allocation9 + $0x148] sm:$0xff]
    %v913 = vld [vmem:[#allocation9 + $0x150] sm:$0xff]
    %v914 = vld [vmem:[#allocation9 + $0x158] sm:$0xff]
    %v915 = vld [vmem:[#allocation9 + $0x160] sm:$0xff]
    %v916 = vld [vmem:[#allocation9 + $0x168] sm:$0xff]
    %v917 = vld [vmem:[#allocation9 + $0x170] sm:$0xff]
    %v918 = vld [vmem:[#allocation9 + $0x178] sm:$0xff]
    %v919 = vld [vmem:[#allocation9 + $0x180] sm:$0xff]
    %v920 = vld [vmem:[#allocation9 + $0x188] sm:$0xff]
    %v921 = vld [vmem:[#allocation9 + $0x190] sm:$0xff]
    %v922 = vld [vmem:[#allocation9 + $0x198] sm:$0xff]
    %v923 = vld [vmem:[#allocation9 + $0x1a0] sm:$0xff]
    %v924 = vld [vmem:[#allocation9 + $0x1a8] sm:$0xff]
    %v925 = vld [vmem:[#allocation9 + $0x1b0] sm:$0xff]
    %v926 = vld [vmem:[#allocation9 + $0x1b8] sm:$0xff]
    %v927 = vld [vmem:[#allocation9 + $0x1c0] sm:$0xff]
    %v928 = vld [vmem:[#allocation9 + $0x1c8] sm:$0xff]
    %v929 = vld [vmem:[#allocation9 + $0x1d0] sm:$0xff]
    %v930 = vld [vmem:[#allocation9 + $0x1d8] sm:$0xff]
    %v931 = vld [vmem:[#allocation9 + $0x1e0] sm:$0xff]
    %v932 = vld [vmem:[#allocation9 + $0x1e8] sm:$0xff]
    %v933 = vld [vmem:[#allocation9 + $0x1f0] sm:$0xff]
    %v934 = vld [vmem:[#allocation9 + $0x1f8] sm:$0xff]
    %935 = vmatprep.subr.mxu0 %v872
    %936 = vmatpush1.msra.mxu0 %v871
    %937 = vmatprep.subr.mxu0 %v876
    %938 = vmatpush1.msra.mxu0 %v875
    %939 = vmatprep.subr.mxu0 %v880
    %940 = vmatpush1.msra.mxu0 %v879
    %941 = vmatprep.subr.mxu0 %v884
    %942 = vmatpush1.msra.mxu0 %v883
    %943 = vmatprep.subr.mxu0 %v888
    %944 = vmatpush1.msra.mxu0 %v887
    %945 = vmatprep.subr.mxu0 %v892
    %946 = vmatpush1.msra.mxu0 %v891
    %947 = vmatprep.subr.mxu0 %v896
    %948 = vmatpush1.msra.mxu0 %v895
    %949 = vmatprep.subr.mxu0 %v900
    %950 = vmatpush1.msra.mxu0 %v899
    %951 = vmatprep.subr.mxu0 %v904
    %952 = vmatpush1.msra.mxu0 %v903
    %953 = vmatprep.subr.mxu0 %v908
    %954 = vmatpush1.msra.mxu0 %v907
    %955 = vmatprep.subr.mxu0 %v912
    %956 = vmatpush1.msra.mxu0 %v911
    %957 = vmatprep.subr.mxu0 %v916
    %958 = vmatpush1.msra.mxu0 %v915
    %959 = vmatprep.subr.mxu0 %v920
    %960 = vmatpush1.msra.mxu0 %v919
    %961 = vmatprep.subr.mxu0 %v924
    %962 = vmatpush1.msra.mxu0 %v923
    %963 = vmatprep.subr.mxu0 %v928
    %964 = vmatpush1.msra.mxu0 %v927
    %965 = vmatprep.subr.mxu0 %v932
    %966 = vmatpush1.msra.mxu0 %v931
    %967 = vmatprep.subr.mxu0 0.0
    %968 = vmatpush1.msra.mxu0 0.0
    %969 = vmatprep.subr.mxu0 0.0
    %970 = vmatpush1.msra.mxu0 0.0
    %971 = vmatprep.subr.mxu0 0.0
    %972 = vmatpush1.msra.mxu0 0.0
    %973 = vmatprep.subr.mxu0 0.0
    %974 = vmatpush1.msra.mxu0 0.0
    %975 = vmatprep.subr.mxu0 0.0
    %976 = vmatpush1.msra.mxu0 0.0
    %977 = vmatprep.subr.mxu0 0.0
    %978 = vmatpush1.msra.mxu0 0.0
    %979 = vmatprep.subr.mxu0 0.0
    %980 = vmatpush1.msra.mxu0 0.0
    %981 = vmatprep.subr.mxu0 0.0
    %982 = vmatpush1.msra.mxu0 0.0
    %983 = vmatprep.subr.mxu0 0.0
    %984 = vmatpush1.msra.mxu0 0.0
    %985 = vmatprep.subr.mxu0 0.0
    %986 = vmatpush1.msra.mxu0 0.0
    %987 = vmatprep.subr.mxu0 0.0
    %988 = vmatpush1.msra.mxu0 0.0
    %989 = vmatprep.subr.mxu0 0.0
    %990 = vmatpush1.msra.mxu0 0.0
    %991 = vmatprep.subr.mxu0 0.0
    %992 = vmatpush1.msra.mxu0 0.0
    %993 = vmatprep.subr.mxu0 0.0
    %994 = vmatpush1.msra.mxu0 0.0
    %995 = vmatprep.subr.mxu0 0.0
    %996 = vmatpush1.msra.mxu0 0.0
    %997 = vmatprep.subr.mxu0 0.0
    %998 = vmatpush1.msra.mxu0 0.0
    %999 = vmatprep.mubr.f32.mxu0 0.0
    %1000 = vmatmul.mubr.f32.gmra.mrb[0].mxu0 %v840
    %v1001 = vpop.f32.mrb[0].mxu0
    %v1002 = vadd.f32 0.0, %v1001
    %v1003 = vpop.f32.mrb[0].mxu0
    %v1004 = vadd.f32 0.0, %v1003
    %1005 = vdwg.mxu0
    %1006 = vmatprep.subr.mxu0 %v874
    %1007 = vmatpush1.msra.mxu0 %v873
    %1008 = vmatprep.subr.mxu0 %v878
    %1009 = vmatpush1.msra.mxu0 %v877
    %1010 = vmatprep.subr.mxu0 %v882
    %1011 = vmatpush1.msra.mxu0 %v881
    %1012 = vmatprep.subr.mxu0 %v886
    %1013 = vmatpush1.msra.mxu0 %v885
    %1014 = vmatprep.subr.mxu0 %v890
    %1015 = vmatpush1.msra.mxu0 %v889
    %1016 = vmatprep.subr.mxu0 %v894
    %1017 = vmatpush1.msra.mxu0 %v893
    %1018 = vmatprep.subr.mxu0 %v898
    %1019 = vmatpush1.msra.mxu0 %v897
    %1020 = vmatprep.subr.mxu0 %v902
    %1021 = vmatpush1.msra.mxu0 %v901
    %1022 = vmatprep.subr.mxu0 %v906
    %1023 = vmatpush1.msra.mxu0 %v905
    %1024 = vmatprep.subr.mxu0 %v910
    %1025 = vmatpush1.msra.mxu0 %v909
    %1026 = vmatprep.subr.mxu0 %v914
    %1027 = vmatpush1.msra.mxu0 %v913
    %1028 = vmatprep.subr.mxu0 %v918
    %1029 = vmatpush1.msra.mxu0 %v917
    %1030 = vmatprep.subr.mxu0 %v922
    %1031 = vmatpush1.msra.mxu0 %v921
    %1032 = vmatprep.subr.mxu0 %v926
    %1033 = vmatpush1.msra.mxu0 %v925
    %1034 = vmatprep.subr.mxu0 %v930
    %1035 = vmatpush1.msra.mxu0 %v929
    %1036 = vmatprep.subr.mxu0 %v934
    %1037 = vmatpush1.msra.mxu0 %v933
    %1038 = vmatprep.subr.mxu0 0.0
    %1039 = vmatpush1.msra.mxu0 0.0
    %1040 = vmatprep.subr.mxu0 0.0
    %1041 = vmatpush1.msra.mxu0 0.0
    %1042 = vmatprep.subr.mxu0 0.0
    %1043 = vmatpush1.msra.mxu0 0.0
    %1044 = vmatprep.subr.mxu0 0.0
    %1045 = vmatpush1.msra.mxu0 0.0
    %1046 = vmatprep.subr.mxu0 0.0
    %1047 = vmatpush1.msra.mxu0 0.0
    %1048 = vmatprep.subr.mxu0 0.0
    %1049 = vmatpush1.msra.mxu0 0.0
    %1050 = vmatprep.subr.mxu0 0.0
    %1051 = vmatpush1.msra.mxu0 0.0
    %1052 = vmatprep.subr.mxu0 0.0
    %1053 = vmatpush1.msra.mxu0 0.0
    %1054 = vmatprep.subr.mxu0 0.0
    %1055 = vmatpush1.msra.mxu0 0.0
    %1056 = vmatprep.subr.mxu0 0.0
    %1057 = vmatpush1.msra.mxu0 0.0
    %1058 = vmatprep.subr.mxu0 0.0
    %1059 = vmatpush1.msra.mxu0 0.0
    %1060 = vmatprep.subr.mxu0 0.0
    %1061 = vmatpush1.msra.mxu0 0.0
    %1062 = vmatprep.subr.mxu0 0.0
    %1063 = vmatpush1.msra.mxu0 0.0
    %1064 = vmatprep.subr.mxu0 0.0
    %1065 = vmatpush1.msra.mxu0 0.0
    %1066 = vmatprep.subr.mxu0 0.0
    %1067 = vmatpush1.msra.mxu0 0.0
    %1068 = vmatprep.subr.mxu0 0.0
    %1069 = vmatpush1.msra.mxu0 0.0
    %1070 = vmatprep.mubr.f32.mxu0 0.0
    %1071 = vmatmul.mubr.f32.gmra.mrb[0].mxu0 %v840
    %v1072 = vpop.f32.mrb[0].mxu0
    %v1073 = vadd.f32 0.0, %v1072
    %v1074 = vpop.f32.mrb[0].mxu0
    %v1075 = vadd.f32 0.0, %v1074
    %1076 = vdwg.mxu0
    %v1077 = vadd.f32 %v863, %v1002
    %v1078 = vadd.f32 %v864, %v1004
    %v1079 = vadd.f32 %v865, %v1073
    %v1080 = vadd.f32 %v866, %v1075
    %1081 = vmatprep.subr.mxu0 %v872
    %1082 = vmatpush1.msra.mxu0 %v871
    %1083 = vmatprep.subr.mxu0 %v876
    %1084 = vmatpush1.msra.mxu0 %v875
    %1085 = vmatprep.subr.mxu0 %v880
    %1086 = vmatpush1.msra.mxu0 %v879
    %1087 = vmatprep.subr.mxu0 %v884
    %1088 = vmatpush1.msra.mxu0 %v883
    %1089 = vmatprep.subr.mxu0 %v888
    %1090 = vmatpush1.msra.mxu0 %v887
    %1091 = vmatprep.subr.mxu0 %v892
    %1092 = vmatpush1.msra.mxu0 %v891
    %1093 = vmatprep.subr.mxu0 %v896
    %1094 = vmatpush1.msra.mxu0 %v895
    %1095 = vmatprep.subr.mxu0 %v900
    %1096 = vmatpush1.msra.mxu0 %v899
    %1097 = vmatprep.subr.mxu0 %v904
    %1098 = vmatpush1.msra.mxu0 %v903
    %1099 = vmatprep.subr.mxu0 %v908
    %1100 = vmatpush1.msra.mxu0 %v907
    %1101 = vmatprep.subr.mxu0 %v912
    %1102 = vmatpush1.msra.mxu0 %v911
    %1103 = vmatprep.subr.mxu0 %v916
    %1104 = vmatpush1.msra.mxu0 %v915
    %1105 = vmatprep.subr.mxu0 %v920
    %1106 = vmatpush1.msra.mxu0 %v919
    %1107 = vmatprep.subr.mxu0 %v924
    %1108 = vmatpush1.msra.mxu0 %v923
    %1109 = vmatprep.subr.mxu0 %v928
    %1110 = vmatpush1.msra.mxu0 %v927
    %1111 = vmatprep.subr.mxu0 %v932
    %1112 = vmatpush1.msra.mxu0 %v931
    %1113 = vmatprep.subr.mxu0 0.0
    %1114 = vmatpush1.msra.mxu0 0.0
    %1115 = vmatprep.subr.mxu0 0.0
    %1116 = vmatpush1.msra.mxu0 0.0
    %1117 = vmatprep.subr.mxu0 0.0
    %1118 = vmatpush1.msra.mxu0 0.0
    %1119 = vmatprep.subr.mxu0 0.0
    %1120 = vmatpush1.msra.mxu0 0.0
    %1121 = vmatprep.subr.mxu0 0.0
    %1122 = vmatpush1.msra.mxu0 0.0
    %1123 = vmatprep.subr.mxu0 0.0
    %1124 = vmatpush1.msra.mxu0 0.0
    %1125 = vmatprep.subr.mxu0 0.0
    %1126 = vmatpush1.msra.mxu0 0.0
    %1127 = vmatprep.subr.mxu0 0.0
    %1128 = vmatpush1.msra.mxu0 0.0
    %1129 = vmatprep.subr.mxu0 0.0
    %1130 = vmatpush1.msra.mxu0 0.0
    %1131 = vmatprep.subr.mxu0 0.0
    %1132 = vmatpush1.msra.mxu0 0.0
    %1133 = vmatprep.subr.mxu0 0.0
    %1134 = vmatpush1.msra.mxu0 0.0
    %1135 = vmatprep.subr.mxu0 0.0
    %1136 = vmatpush1.msra.mxu0 0.0
    %1137 = vmatprep.subr.mxu0 0.0
    %1138 = vmatpush1.msra.mxu0 0.0
    %1139 = vmatprep.subr.mxu0 0.0
    %1140 = vmatpush1.msra.mxu0 0.0
    %1141 = vmatprep.subr.mxu0 0.0
    %1142 = vmatpush1.msra.mxu0 0.0
    %1143 = vmatprep.subr.mxu0 0.0
    %1144 = vmatpush1.msra.mxu0 0.0
    %1145 = vmatprep.mubr.f32.mxu0 0.0
    %1146 = vmatmul.mubr.f32.gmra.mrb[0].mxu0 %v858
    %v1147 = vpop.f32.mrb[0].mxu0
    %v1148 = vadd.f32 0.0, %v1147
    %v1149 = vpop.f32.mrb[0].mxu0
    %v1150 = vadd.f32 0.0, %v1149
    %1151 = vdwg.mxu0
    %1152 = vmatprep.subr.mxu0 %v874
    %1153 = vmatpush1.msra.mxu0 %v873
    %1154 = vmatprep.subr.mxu0 %v878
    %1155 = vmatpush1.msra.mxu0 %v877
    %1156 = vmatprep.subr.mxu0 %v882
    %1157 = vmatpush1.msra.mxu0 %v881
    %1158 = vmatprep.subr.mxu0 %v886
    %1159 = vmatpush1.msra.mxu0 %v885
    %1160 = vmatprep.subr.mxu0 %v890
    %1161 = vmatpush1.msra.mxu0 %v889
    %1162 = vmatprep.subr.mxu0 %v894
    %1163 = vmatpush1.msra.mxu0 %v893
    %1164 = vmatprep.subr.mxu0 %v898
    %1165 = vmatpush1.msra.mxu0 %v897
    %1166 = vmatprep.subr.mxu0 %v902
    %1167 = vmatpush1.msra.mxu0 %v901
    %1168 = vmatprep.subr.mxu0 %v906
    %1169 = vmatpush1.msra.mxu0 %v905
    %1170 = vmatprep.subr.mxu0 %v910
    %1171 = vmatpush1.msra.mxu0 %v909
    %1172 = vmatprep.subr.mxu0 %v914
    %1173 = vmatpush1.msra.mxu0 %v913
    %1174 = vmatprep.subr.mxu0 %v918
    %1175 = vmatpush1.msra.mxu0 %v917
    %1176 = vmatprep.subr.mxu0 %v922
    %1177 = vmatpush1.msra.mxu0 %v921
    %1178 = vmatprep.subr.mxu0 %v926
    %1179 = vmatpush1.msra.mxu0 %v925
    %1180 = vmatprep.subr.mxu0 %v930
    %1181 = vmatpush1.msra.mxu0 %v929
    %1182 = vmatprep.subr.mxu0 %v934
    %1183 = vmatpush1.msra.mxu0 %v933
    %1184 = vmatprep.subr.mxu0 0.0
    %1185 = vmatpush1.msra.mxu0 0.0
    %1186 = vmatprep.subr.mxu0 0.0
    %1187 = vmatpush1.msra.mxu0 0.0
    %1188 = vmatprep.subr.mxu0 0.0
    %1189 = vmatpush1.msra.mxu0 0.0
    %1190 = vmatprep.subr.mxu0 0.0
    %1191 = vmatpush1.msra.mxu0 0.0
    %1192 = vmatprep.subr.mxu0 0.0
    %1193 = vmatpush1.msra.mxu0 0.0
    %1194 = vmatprep.subr.mxu0 0.0
    %1195 = vmatpush1.msra.mxu0 0.0
    %1196 = vmatprep.subr.mxu0 0.0
    %1197 = vmatpush1.msra.mxu0 0.0
    %1198 = vmatprep.subr.mxu0 0.0
    %1199 = vmatpush1.msra.mxu0 0.0
    %1200 = vmatprep.subr.mxu0 0.0
    %1201 = vmatpush1.msra.mxu0 0.0
    %1202 = vmatprep.subr.mxu0 0.0
    %1203 = vmatpush1.msra.mxu0 0.0
    %1204 = vmatprep.subr.mxu0 0.0
    %1205 = vmatpush1.msra.mxu0 0.0
    %1206 = vmatprep.subr.mxu0 0.0
    %1207 = vmatpush1.msra.mxu0 0.0
    %1208 = vmatprep.subr.mxu0 0.0
    %1209 = vmatpush1.msra.mxu0 0.0
    %1210 = vmatprep.subr.mxu0 0.0
    %1211 = vmatpush1.msra.mxu0 0.0
    %1212 = vmatprep.subr.mxu0 0.0
    %1213 = vmatpush1.msra.mxu0 0.0
    %1214 = vmatprep.subr.mxu0 0.0
    %1215 = vmatpush1.msra.mxu0 0.0
    %1216 = vmatprep.mubr.f32.mxu0 0.0
    %1217 = vmatmul.mubr.f32.gmra.mrb[0].mxu0 %v858
    %v1218 = vpop.f32.mrb[0].mxu0
    %v1219 = vadd.f32 0.0, %v1218
    %v1220 = vpop.f32.mrb[0].mxu0
    %v1221 = vadd.f32 0.0, %v1220
    %1222 = vdwg.mxu0
    %v1223 = vadd.f32 %v867, %v1148
    %v1224 = vadd.f32 %v868, %v1150
    %v1225 = vadd.f32 %v869, %v1219
    %v1226 = vadd.f32 %v870, %v1221
    %v1227 = vmul.f32 %v1077, 0.5
    %v1228 = vtanh.pop %v1227
    %v1229 = vmul.f32 %v1228, 0.5
    %v1230 = vadd.f32 %v1229, 0.5
    %v1231 = vmul.f32 %v1078, 0.5
    %v1232 = vtanh.pop %v1231
    %v1233 = vmul.f32 %v1232, 0.5
    %v1234 = vadd.f32 %v1233, 0.5
    %v1235 = vtanh.pop %v1079
    %v1236 = vmul.f32 %v1080, 0.5
    %v1237 = vtanh.pop %v1236
    %v1238 = vmul.f32 %v1237, 0.5
    %v1239 = vadd.f32 %v1238, 0.5
    %v1240 = vmul.f32 %v1234, %v838
    %v1241 = vmul.f32 %v1230, %v1235
    %v1242 = vadd.f32 %v1240, %v1241
    %v1243 = vtanh.pop %v1242
    %v1244 = vmul.f32 %v1239, %v1243
    %v1245 = vmul.f32 %v1223, 0.5
    %v1246 = vtanh.pop %v1245
    %v1247 = vmul.f32 %v1246, 0.5
    %v1248 = vadd.f32 %v1247, 0.5
    %v1249 = vmul.f32 %v1224, 0.5
    %v1250 = vtanh.pop %v1249
    %v1251 = vmul.f32 %v1250, 0.5
    %v1252 = vadd.f32 %v1251, 0.5
    %v1253 = vtanh.pop %v1225
    %v1254 = vmul.f32 %v1226, 0.5
    %v1255 = vtanh.pop %v1254
    %v1256 = vmul.f32 %v1255, 0.5
    %v1257 = vadd.f32 %v1256, 0.5
    %v1258 = vmul.f32 %v1252, %v856
    %v1259 = vmul.f32 %v1248, %v1253
    %v1260 = vadd.f32 %v1258, %v1259
    %v1261 = vtanh.pop %v1260
    %v1262 = vmul.f32 %v1257, %v1261
    %s1263 = scalar_lea.vmem [#allocation11], 32
    %1264 = vst [vmem:[%s1263] sm:$0xff] %v1244
    %1265 = vst [vmem:[%s1263 + $0x8] sm:$0xff] %v1262
    %s1266 = scalar_lea.vmem [#allocation6], 192
    %v1267 = vld [vmem:[%s1266] sm:$0xff]
    %v1268 = vld [vmem:[%s1266 + $0x8] sm:$0xff]
    %v1269 = vld [vmem:[%s1266 + $0x10] sm:$0xff]
    %v1270 = vld [vmem:[%s1266 + $0x18] sm:$0xff]
    %v1271 = vld [vmem:[%s1266 + $0x20] sm:$0xff]
    %v1272 = vld [vmem:[%s1266 + $0x28] sm:$0xff]
    %v1273 = vld [vmem:[%s1266 + $0x30] sm:$0xff]
    %v1274 = vld [vmem:[%s1266 + $0x38] sm:$0xff]
    %v1275 = vld [vmem:[#allocation9] sm:$0xff]
    %v1276 = vld [vmem:[#allocation9 + $0x8] sm:$0xff]
    %v1277 = vld [vmem:[#allocation9 + $0x10] sm:$0xff]
    %v1278 = vld [vmem:[#allocation9 + $0x18] sm:$0xff]
    %v1279 = vld [vmem:[#allocation9 + $0x20] sm:$0xff]
    %v1280 = vld [vmem:[#allocation9 + $0x28] sm:$0xff]
    %v1281 = vld [vmem:[#allocation9 + $0x30] sm:$0xff]
    %v1282 = vld [vmem:[#allocation9 + $0x38] sm:$0xff]
    %v1283 = vld [vmem:[#allocation9 + $0x40] sm:$0xff]
    %v1284 = vld [vmem:[#allocation9 + $0x48] sm:$0xff]
    %v1285 = vld [vmem:[#allocation9 + $0x50] sm:$0xff]
    %v1286 = vld [vmem:[#allocation9 + $0x58] sm:$0xff]
    %v1287 = vld [vmem:[#allocation9 + $0x60] sm:$0xff]
    %v1288 = vld [vmem:[#allocation9 + $0x68] sm:$0xff]
    %v1289 = vld [vmem:[#allocation9 + $0x70] sm:$0xff]
    %v1290 = vld [vmem:[#allocation9 + $0x78] sm:$0xff]
    %v1291 = vld [vmem:[#allocation9 + $0x80] sm:$0xff]
    %v1292 = vld [vmem:[#allocation9 + $0x88] sm:$0xff]
    %v1293 = vld [vmem:[#allocation9 + $0x90] sm:$0xff]
    %v1294 = vld [vmem:[#allocation9 + $0x98] sm:$0xff]
    %v1295 = vld [vmem:[#allocation9 + $0xa0] sm:$0xff]
    %v1296 = vld [vmem:[#allocation9 + $0xa8] sm:$0xff]
    %v1297 = vld [vmem:[#allocation9 + $0xb0] sm:$0xff]
    %v1298 = vld [vmem:[#allocation9 + $0xb8] sm:$0xff]
    %v1299 = vld [vmem:[#allocation9 + $0xc0] sm:$0xff]
    %v1300 = vld [vmem:[#allocation9 + $0xc8] sm:$0xff]
    %v1301 = vld [vmem:[#allocation9 + $0xd0] sm:$0xff]
    %v1302 = vld [vmem:[#allocation9 + $0xd8] sm:$0xff]
    %v1303 = vld [vmem:[#allocation9 + $0xe0] sm:$0xff]
    %v1304 = vld [vmem:[#allocation9 + $0xe8] sm:$0xff]
    %v1305 = vld [vmem:[#allocation9 + $0xf0] sm:$0xff]
    %v1306 = vld [vmem:[#allocation9 + $0xf8] sm:$0xff]
    %v1307 = vld [vmem:[#allocation9 + $0x100] sm:$0xff]
    %v1308 = vld [vmem:[#allocation9 + $0x108] sm:$0xff]
    %v1309 = vld [vmem:[#allocation9 + $0x110] sm:$0xff]
    %v1310 = vld [vmem:[#allocation9 + $0x118] sm:$0xff]
    %v1311 = vld [vmem:[#allocation9 + $0x120] sm:$0xff]
    %v1312 = vld [vmem:[#allocation9 + $0x128] sm:$0xff]
    %v1313 = vld [vmem:[#allocation9 + $0x130] sm:$0xff]
    %v1314 = vld [vmem:[#allocation9 + $0x138] sm:$0xff]
    %v1315 = vld [vmem:[#allocation9 + $0x140] sm:$0xff]
    %v1316 = vld [vmem:[#allocation9 + $0x148] sm:$0xff]
    %v1317 = vld [vmem:[#allocation9 + $0x150] sm:$0xff]
    %v1318 = vld [vmem:[#allocation9 + $0x158] sm:$0xff]
    %v1319 = vld [vmem:[#allocation9 + $0x160] sm:$0xff]
    %v1320 = vld [vmem:[#allocation9 + $0x168] sm:$0xff]
    %v1321 = vld [vmem:[#allocation9 + $0x170] sm:$0xff]
    %v1322 = vld [vmem:[#allocation9 + $0x178] sm:$0xff]
    %v1323 = vld [vmem:[#allocation9 + $0x180] sm:$0xff]
    %v1324 = vld [vmem:[#allocation9 + $0x188] sm:$0xff]
    %v1325 = vld [vmem:[#allocation9 + $0x190] sm:$0xff]
    %v1326 = vld [vmem:[#allocation9 + $0x198] sm:$0xff]
    %v1327 = vld [vmem:[#allocation9 + $0x1a0] sm:$0xff]
    %v1328 = vld [vmem:[#allocation9 + $0x1a8] sm:$0xff]
    %v1329 = vld [vmem:[#allocation9 + $0x1b0] sm:$0xff]
    %v1330 = vld [vmem:[#allocation9 + $0x1b8] sm:$0xff]
    %v1331 = vld [vmem:[#allocation9 + $0x1c0] sm:$0xff]
    %v1332 = vld [vmem:[#allocation9 + $0x1c8] sm:$0xff]
    %v1333 = vld [vmem:[#allocation9 + $0x1d0] sm:$0xff]
    %v1334 = vld [vmem:[#allocation9 + $0x1d8] sm:$0xff]
    %v1335 = vld [vmem:[#allocation9 + $0x1e0] sm:$0xff]
    %v1336 = vld [vmem:[#allocation9 + $0x1e8] sm:$0xff]
    %v1337 = vld [vmem:[#allocation9 + $0x1f0] sm:$0xff]
    %v1338 = vld [vmem:[#allocation9 + $0x1f8] sm:$0xff]
    %1339 = vmatprep.subr.mxu0 %v1276
    %1340 = vmatpush1.msra.mxu0 %v1275
    %1341 = vmatprep.subr.mxu0 %v1280
    %1342 = vmatpush1.msra.mxu0 %v1279
    %1343 = vmatprep.subr.mxu0 %v1284
    %1344 = vmatpush1.msra.mxu0 %v1283
    %1345 = vmatprep.subr.mxu0 %v1288
    %1346 = vmatpush1.msra.mxu0 %v1287
    %1347 = vmatprep.subr.mxu0 %v1292
    %1348 = vmatpush1.msra.mxu0 %v1291
    %1349 = vmatprep.subr.mxu0 %v1296
    %1350 = vmatpush1.msra.mxu0 %v1295
    %1351 = vmatprep.subr.mxu0 %v1300
    %1352 = vmatpush1.msra.mxu0 %v1299
    %1353 = vmatprep.subr.mxu0 %v1304
    %1354 = vmatpush1.msra.mxu0 %v1303
    %1355 = vmatprep.subr.mxu0 %v1308
    %1356 = vmatpush1.msra.mxu0 %v1307
    %1357 = vmatprep.subr.mxu0 %v1312
    %1358 = vmatpush1.msra.mxu0 %v1311
    %1359 = vmatprep.subr.mxu0 %v1316
    %1360 = vmatpush1.msra.mxu0 %v1315
    %1361 = vmatprep.subr.mxu0 %v1320
    %1362 = vmatpush1.msra.mxu0 %v1319
    %1363 = vmatprep.subr.mxu0 %v1324
    %1364 = vmatpush1.msra.mxu0 %v1323
    %1365 = vmatprep.subr.mxu0 %v1328
    %1366 = vmatpush1.msra.mxu0 %v1327
    %1367 = vmatprep.subr.mxu0 %v1332
    %1368 = vmatpush1.msra.mxu0 %v1331
    %1369 = vmatprep.subr.mxu0 %v1336
    %1370 = vmatpush1.msra.mxu0 %v1335
    %1371 = vmatprep.subr.mxu0 0.0
    %1372 = vmatpush1.msra.mxu0 0.0
    %1373 = vmatprep.subr.mxu0 0.0
    %1374 = vmatpush1.msra.mxu0 0.0
    %1375 = vmatprep.subr.mxu0 0.0
    %1376 = vmatpush1.msra.mxu0 0.0
    %1377 = vmatprep.subr.mxu0 0.0
    %1378 = vmatpush1.msra.mxu0 0.0
    %1379 = vmatprep.subr.mxu0 0.0
    %1380 = vmatpush1.msra.mxu0 0.0
    %1381 = vmatprep.subr.mxu0 0.0
    %1382 = vmatpush1.msra.mxu0 0.0
    %1383 = vmatprep.subr.mxu0 0.0
    %1384 = vmatpush1.msra.mxu0 0.0
    %1385 = vmatprep.subr.mxu0 0.0
    %1386 = vmatpush1.msra.mxu0 0.0
    %1387 = vmatprep.subr.mxu0 0.0
    %1388 = vmatpush1.msra.mxu0 0.0
    %1389 = vmatprep.subr.mxu0 0.0
    %1390 = vmatpush1.msra.mxu0 0.0
    %1391 = vmatprep.subr.mxu0 0.0
    %1392 = vmatpush1.msra.mxu0 0.0
    %1393 = vmatprep.subr.mxu0 0.0
    %1394 = vmatpush1.msra.mxu0 0.0
    %1395 = vmatprep.subr.mxu0 0.0
    %1396 = vmatpush1.msra.mxu0 0.0
    %1397 = vmatprep.subr.mxu0 0.0
    %1398 = vmatpush1.msra.mxu0 0.0
    %1399 = vmatprep.subr.mxu0 0.0
    %1400 = vmatpush1.msra.mxu0 0.0
    %1401 = vmatprep.subr.mxu0 0.0
    %1402 = vmatpush1.msra.mxu0 0.0
    %1403 = vmatprep.mubr.f32.mxu0 0.0
    %1404 = vmatmul.mubr.f32.gmra.mrb[0].mxu0 %v1244
    %v1405 = vpop.f32.mrb[0].mxu0
    %v1406 = vadd.f32 0.0, %v1405
    %v1407 = vpop.f32.mrb[0].mxu0
    %v1408 = vadd.f32 0.0, %v1407
    %1409 = vdwg.mxu0
    %1410 = vmatprep.subr.mxu0 %v1278
    %1411 = vmatpush1.msra.mxu0 %v1277
    %1412 = vmatprep.subr.mxu0 %v1282
    %1413 = vmatpush1.msra.mxu0 %v1281
    %1414 = vmatprep.subr.mxu0 %v1286
    %1415 = vmatpush1.msra.mxu0 %v1285
    %1416 = vmatprep.subr.mxu0 %v1290
    %1417 = vmatpush1.msra.mxu0 %v1289
    %1418 = vmatprep.subr.mxu0 %v1294
    %1419 = vmatpush1.msra.mxu0 %v1293
    %1420 = vmatprep.subr.mxu0 %v1298
    %1421 = vmatpush1.msra.mxu0 %v1297
    %1422 = vmatprep.subr.mxu0 %v1302
    %1423 = vmatpush1.msra.mxu0 %v1301
    %1424 = vmatprep.subr.mxu0 %v1306
    %1425 = vmatpush1.msra.mxu0 %v1305
    %1426 = vmatprep.subr.mxu0 %v1310
    %1427 = vmatpush1.msra.mxu0 %v1309
    %1428 = vmatprep.subr.mxu0 %v1314
    %1429 = vmatpush1.msra.mxu0 %v1313
    %1430 = vmatprep.subr.mxu0 %v1318
    %1431 = vmatpush1.msra.mxu0 %v1317
    %1432 = vmatprep.subr.mxu0 %v1322
    %1433 = vmatpush1.msra.mxu0 %v1321
    %1434 = vmatprep.subr.mxu0 %v1326
    %1435 = vmatpush1.msra.mxu0 %v1325
    %1436 = vmatprep.subr.mxu0 %v1330
    %1437 = vmatpush1.msra.mxu0 %v1329
    %1438 = vmatprep.subr.mxu0 %v1334
    %1439 = vmatpush1.msra.mxu0 %v1333
    %1440 = vmatprep.subr.mxu0 %v1338
    %1441 = vmatpush1.msra.mxu0 %v1337
    %1442 = vmatprep.subr.mxu0 0.0
    %1443 = vmatpush1.msra.mxu0 0.0
    %1444 = vmatprep.subr.mxu0 0.0
    %1445 = vmatpush1.msra.mxu0 0.0
    %1446 = vmatprep.subr.mxu0 0.0
    %1447 = vmatpush1.msra.mxu0 0.0
    %1448 = vmatprep.subr.mxu0 0.0
    %1449 = vmatpush1.msra.mxu0 0.0
    %1450 = vmatprep.subr.mxu0 0.0
    %1451 = vmatpush1.msra.mxu0 0.0
    %1452 = vmatprep.subr.mxu0 0.0
    %1453 = vmatpush1.msra.mxu0 0.0
    %1454 = vmatprep.subr.mxu0 0.0
    %1455 = vmatpush1.msra.mxu0 0.0
    %1456 = vmatprep.subr.mxu0 0.0
    %1457 = vmatpush1.msra.mxu0 0.0
    %1458 = vmatprep.subr.mxu0 0.0
    %1459 = vmatpush1.msra.mxu0 0.0
    %1460 = vmatprep.subr.mxu0 0.0
    %1461 = vmatpush1.msra.mxu0 0.0
    %1462 = vmatprep.subr.mxu0 0.0
    %1463 = vmatpush1.msra.mxu0 0.0
    %1464 = vmatprep.subr.mxu0 0.0
    %1465 = vmatpush1.msra.mxu0 0.0
    %1466 = vmatprep.subr.mxu0 0.0
    %1467 = vmatpush1.msra.mxu0 0.0
    %1468 = vmatprep.subr.mxu0 0.0
    %1469 = vmatpush1.msra.mxu0 0.0
    %1470 = vmatprep.subr.mxu0 0.0
    %1471 = vmatpush1.msra.mxu0 0.0
    %1472 = vmatprep.subr.mxu0 0.0
    %1473 = vmatpush1.msra.mxu0 0.0
    %1474 = vmatprep.mubr.f32.mxu0 0.0
    %1475 = vmatmul.mubr.f32.gmra.mrb[0].mxu0 %v1244
    %v1476 = vpop.f32.mrb[0].mxu0
    %v1477 = vadd.f32 0.0, %v1476
    %v1478 = vpop.f32.mrb[0].mxu0
    %v1479 = vadd.f32 0.0, %v1478
    %1480 = vdwg.mxu0
    %v1481 = vadd.f32 %v1267, %v1406
    %v1482 = vadd.f32 %v1268, %v1408
    %v1483 = vadd.f32 %v1269, %v1477
    %v1484 = vadd.f32 %v1270, %v1479
    %1485 = vmatprep.subr.mxu0 %v1276
    %1486 = vmatpush1.msra.mxu0 %v1275
    %1487 = vmatprep.subr.mxu0 %v1280
    %1488 = vmatpush1.msra.mxu0 %v1279
    %1489 = vmatprep.subr.mxu0 %v1284
    %1490 = vmatpush1.msra.mxu0 %v1283
    %1491 = vmatprep.subr.mxu0 %v1288
    %1492 = vmatpush1.msra.mxu0 %v1287
    %1493 = vmatprep.subr.mxu0 %v1292
    %1494 = vmatpush1.msra.mxu0 %v1291
    %1495 = vmatprep.subr.mxu0 %v1296
    %1496 = vmatpush1.msra.mxu0 %v1295
    %1497 = vmatprep.subr.mxu0 %v1300
    %1498 = vmatpush1.msra.mxu0 %v1299
    %1499 = vmatprep.subr.mxu0 %v1304
    %1500 = vmatpush1.msra.mxu0 %v1303
    %1501 = vmatprep.subr.mxu0 %v1308
    %1502 = vmatpush1.msra.mxu0 %v1307
    %1503 = vmatprep.subr.mxu0 %v1312
    %1504 = vmatpush1.msra.mxu0 %v1311
    %1505 = vmatprep.subr.mxu0 %v1316
    %1506 = vmatpush1.msra.mxu0 %v1315
    %1507 = vmatprep.subr.mxu0 %v1320
    %1508 = vmatpush1.msra.mxu0 %v1319
    %1509 = vmatprep.subr.mxu0 %v1324
    %1510 = vmatpush1.msra.mxu0 %v1323
    %1511 = vmatprep.subr.mxu0 %v1328
    %1512 = vmatpush1.msra.mxu0 %v1327
    %1513 = vmatprep.subr.mxu0 %v1332
    %1514 = vmatpush1.msra.mxu0 %v1331
    %1515 = vmatprep.subr.mxu0 %v1336
    %1516 = vmatpush1.msra.mxu0 %v1335
    %1517 = vmatprep.subr.mxu0 0.0
    %1518 = vmatpush1.msra.mxu0 0.0
    %1519 = vmatprep.subr.mxu0 0.0
    %1520 = vmatpush1.msra.mxu0 0.0
    %1521 = vmatprep.subr.mxu0 0.0
    %1522 = vmatpush1.msra.mxu0 0.0
    %1523 = vmatprep.subr.mxu0 0.0
    %1524 = vmatpush1.msra.mxu0 0.0
    %1525 = vmatprep.subr.mxu0 0.0
    %1526 = vmatpush1.msra.mxu0 0.0
    %1527 = vmatprep.subr.mxu0 0.0
    %1528 = vmatpush1.msra.mxu0 0.0
    %1529 = vmatprep.subr.mxu0 0.0
    %1530 = vmatpush1.msra.mxu0 0.0
    %1531 = vmatprep.subr.mxu0 0.0
    %1532 = vmatpush1.msra.mxu0 0.0
    %1533 = vmatprep.subr.mxu0 0.0
    %1534 = vmatpush1.msra.mxu0 0.0
    %1535 = vmatprep.subr.mxu0 0.0
    %1536 = vmatpush1.msra.mxu0 0.0
    %1537 = vmatprep.subr.mxu0 0.0
    %1538 = vmatpush1.msra.mxu0 0.0
    %1539 = vmatprep.subr.mxu0 0.0
    %1540 = vmatpush1.msra.mxu0 0.0
    %1541 = vmatprep.subr.mxu0 0.0
    %1542 = vmatpush1.msra.mxu0 0.0
    %1543 = vmatprep.subr.mxu0 0.0
    %1544 = vmatpush1.msra.mxu0 0.0
    %1545 = vmatprep.subr.mxu0 0.0
    %1546 = vmatpush1.msra.mxu0 0.0
    %1547 = vmatprep.subr.mxu0 0.0
    %1548 = vmatpush1.msra.mxu0 0.0
    %1549 = vmatprep.mubr.f32.mxu0 0.0
    %1550 = vmatmul.mubr.f32.gmra.mrb[0].mxu0 %v1262
    %v1551 = vpop.f32.mrb[0].mxu0
    %v1552 = vadd.f32 0.0, %v1551
    %v1553 = vpop.f32.mrb[0].mxu0
    %v1554 = vadd.f32 0.0, %v1553
    %1555 = vdwg.mxu0
    %1556 = vmatprep.subr.mxu0 %v1278
    %1557 = vmatpush1.msra.mxu0 %v1277
    %1558 = vmatprep.subr.mxu0 %v1282
    %1559 = vmatpush1.msra.mxu0 %v1281
    %1560 = vmatprep.subr.mxu0 %v1286
    %1561 = vmatpush1.msra.mxu0 %v1285
    %1562 = vmatprep.subr.mxu0 %v1290
    %1563 = vmatpush1.msra.mxu0 %v1289
    %1564 = vmatprep.subr.mxu0 %v1294
    %1565 = vmatpush1.msra.mxu0 %v1293
    %1566 = vmatprep.subr.mxu0 %v1298
    %1567 = vmatpush1.msra.mxu0 %v1297
    %1568 = vmatprep.subr.mxu0 %v1302
    %1569 = vmatpush1.msra.mxu0 %v1301
    %1570 = vmatprep.subr.mxu0 %v1306
    %1571 = vmatpush1.msra.mxu0 %v1305
    %1572 = vmatprep.subr.mxu0 %v1310
    %1573 = vmatpush1.msra.mxu0 %v1309
    %1574 = vmatprep.subr.mxu0 %v1314
    %1575 = vmatpush1.msra.mxu0 %v1313
    %1576 = vmatprep.subr.mxu0 %v1318
    %1577 = vmatpush1.msra.mxu0 %v1317
    %1578 = vmatprep.subr.mxu0 %v1322
    %1579 = vmatpush1.msra.mxu0 %v1321
    %1580 = vmatprep.subr.mxu0 %v1326
    %1581 = vmatpush1.msra.mxu0 %v1325
    %1582 = vmatprep.subr.mxu0 %v1330
    %1583 = vmatpush1.msra.mxu0 %v1329
    %1584 = vmatprep.subr.mxu0 %v1334
    %1585 = vmatpush1.msra.mxu0 %v1333
    %1586 = vmatprep.subr.mxu0 %v1338
    %1587 = vmatpush1.msra.mxu0 %v1337
    %1588 = vmatprep.subr.mxu0 0.0
    %1589 = vmatpush1.msra.mxu0 0.0
    %1590 = vmatprep.subr.mxu0 0.0
    %1591 = vmatpush1.msra.mxu0 0.0
    %1592 = vmatprep.subr.mxu0 0.0
    %1593 = vmatpush1.msra.mxu0 0.0
    %1594 = vmatprep.subr.mxu0 0.0
    %1595 = vmatpush1.msra.mxu0 0.0
    %1596 = vmatprep.subr.mxu0 0.0
    %1597 = vmatpush1.msra.mxu0 0.0
    %1598 = vmatprep.subr.mxu0 0.0
    %1599 = vmatpush1.msra.mxu0 0.0
    %1600 = vmatprep.subr.mxu0 0.0
    %1601 = vmatpush1.msra.mxu0 0.0
    %1602 = vmatprep.subr.mxu0 0.0
    %1603 = vmatpush1.msra.mxu0 0.0
    %1604 = vmatprep.subr.mxu0 0.0
    %1605 = vmatpush1.msra.mxu0 0.0
    %1606 = vmatprep.subr.mxu0 0.0
    %1607 = vmatpush1.msra.mxu0 0.0
    %1608 = vmatprep.subr.mxu0 0.0
    %1609 = vmatpush1.msra.mxu0 0.0
    %1610 = vmatprep.subr.mxu0 0.0
    %1611 = vmatpush1.msra.mxu0 0.0
    %1612 = vmatprep.subr.mxu0 0.0
    %1613 = vmatpush1.msra.mxu0 0.0
    %1614 = vmatprep.subr.mxu0 0.0
    %1615 = vmatpush1.msra.mxu0 0.0
    %1616 = vmatprep.subr.mxu0 0.0
    %1617 = vmatpush1.msra.mxu0 0.0
    %1618 = vmatprep.subr.mxu0 0.0
    %1619 = vmatpush1.msra.mxu0 0.0
    %1620 = vmatprep.mubr.f32.mxu0 0.0
    %1621 = vmatmul.mubr.f32.gmra.mrb[0].mxu0 %v1262
    %v1622 = vpop.f32.mrb[0].mxu0
    %v1623 = vadd.f32 0.0, %v1622
    %v1624 = vpop.f32.mrb[0].mxu0
    %v1625 = vadd.f32 0.0, %v1624
    %1626 = vdwg.mxu0
    %v1627 = vadd.f32 %v1271, %v1552
    %v1628 = vadd.f32 %v1272, %v1554
    %v1629 = vadd.f32 %v1273, %v1623
    %v1630 = vadd.f32 %v1274, %v1625
    %v1631 = vmul.f32 %v1481, 0.5
    %v1632 = vtanh.pop %v1631
    %v1633 = vmul.f32 %v1632, 0.5
    %v1634 = vadd.f32 %v1633, 0.5
    %v1635 = vmul.f32 %v1482, 0.5
    %v1636 = vtanh.pop %v1635
    %v1637 = vmul.f32 %v1636, 0.5
    %v1638 = vadd.f32 %v1637, 0.5
    %v1639 = vtanh.pop %v1483
    %v1640 = vmul.f32 %v1484, 0.5
    %v1641 = vtanh.pop %v1640
    %v1642 = vmul.f32 %v1641, 0.5
    %v1643 = vadd.f32 %v1642, 0.5
    %v1644 = vmul.f32 %v1638, %v1242
    %v1645 = vmul.f32 %v1634, %v1639
    %v1646 = vadd.f32 %v1644, %v1645
    %v1647 = vtanh.pop %v1646
    %v1648 = vmul.f32 %v1643, %v1647
    %v1649 = vmul.f32 %v1627, 0.5
    %v1650 = vtanh.pop %v1649
    %v1651 = vmul.f32 %v1650, 0.5
    %v1652 = vadd.f32 %v1651, 0.5
    %v1653 = vmul.f32 %v1628, 0.5
    %v1654 = vtanh.pop %v1653
    %v1655 = vmul.f32 %v1654, 0.5
    %v1656 = vadd.f32 %v1655, 0.5
    %v1657 = vtanh.pop %v1629
    %v1658 = vmul.f32 %v1630, 0.5
    %v1659 = vtanh.pop %v1658
    %v1660 = vmul.f32 %v1659, 0.5
    %v1661 = vadd.f32 %v1660, 0.5
    %v1662 = vmul.f32 %v1656, %v1260
    %v1663 = vmul.f32 %v1652, %v1657
    %v1664 = vadd.f32 %v1662, %v1663
    %v1665 = vtanh.pop %v1664
    %v1666 = vmul.f32 %v1661, %v1665
    %s1667 = scalar_lea.vmem [#allocation11], 48
    %1668 = vst [vmem:[%s1667] sm:$0xff] %v1648
    %1669 = vst [vmem:[%s1667 + $0x8] sm:$0xff] %v1666
    %s1670 = scalar_lea.vmem [#allocation6], 256
    %v1671 = vld [vmem:[%s1670] sm:$0xff]
    %v1672 = vld [vmem:[%s1670 + $0x8] sm:$0xff]
    %v1673 = vld [vmem:[%s1670 + $0x10] sm:$0xff]
    %v1674 = vld [vmem:[%s1670 + $0x18] sm:$0xff]
    %v1675 = vld [vmem:[%s1670 + $0x20] sm:$0xff]
    %v1676 = vld [vmem:[%s1670 + $0x28] sm:$0xff]
    %v1677 = vld [vmem:[%s1670 + $0x30] sm:$0xff]
    %v1678 = vld [vmem:[%s1670 + $0x38] sm:$0xff]
    %v1679 = vld [vmem:[#allocation9] sm:$0xff]
    %v1680 = vld [vmem:[#allocation9 + $0x8] sm:$0xff]
    %v1681 = vld [vmem:[#allocation9 + $0x10] sm:$0xff]
    %v1682 = vld [vmem:[#allocation9 + $0x18] sm:$0xff]
    %v1683 = vld [vmem:[#allocation9 + $0x20] sm:$0xff]
    %v1684 = vld [vmem:[#allocation9 + $0x28] sm:$0xff]
    %v1685 = vld [vmem:[#allocation9 + $0x30] sm:$0xff]
    %v1686 = vld [vmem:[#allocation9 + $0x38] sm:$0xff]
    %v1687 = vld [vmem:[#allocation9 + $0x40] sm:$0xff]
    %v1688 = vld [vmem:[#allocation9 + $0x48] sm:$0xff]
    %v1689 = vld [vmem:[#allocation9 + $0x50] sm:$0xff]
    %v1690 = vld [vmem:[#allocation9 + $0x58] sm:$0xff]
    %v1691 = vld [vmem:[#allocation9 + $0x60] sm:$0xff]
    %v1692 = vld [vmem:[#allocation9 + $0x68] sm:$0xff]
    %v1693 = vld [vmem:[#allocation9 + $0x70] sm:$0xff]
    %v1694 = vld [vmem:[#allocation9 + $0x78] sm:$0xff]
    %v1695 = vld [vmem:[#allocation9 + $0x80] sm:$0xff]
    %v1696 = vld [vmem:[#allocation9 + $0x88] sm:$0xff]
    %v1697 = vld [vmem:[#allocation9 + $0x90] sm:$0xff]
    %v1698 = vld [vmem:[#allocation9 + $0x98] sm:$0xff]
    %v1699 = vld [vmem:[#allocation9 + $0xa0] sm:$0xff]
    %v1700 = vld [vmem:[#allocation9 + $0xa8] sm:$0xff]
    %v1701 = vld [vmem:[#allocation9 + $0xb0] sm:$0xff]
    %v1702 = vld [vmem:[#allocation9 + $0xb8] sm:$0xff]
    %v1703 = vld [vmem:[#allocation9 + $0xc0] sm:$0xff]
    %v1704 = vld [vmem:[#allocation9 + $0xc8] sm:$0xff]
    %v1705 = vld [vmem:[#allocation9 + $0xd0] sm:$0xff]
    %v1706 = vld [vmem:[#allocation9 + $0xd8] sm:$0xff]
    %v1707 = vld [vmem:[#allocation9 + $0xe0] sm:$0xff]
    %v1708 = vld [vmem:[#allocation9 + $0xe8] sm:$0xff]
    %v1709 = vld [vmem:[#allocation9 + $0xf0] sm:$0xff]
    %v1710 = vld [vmem:[#allocation9 + $0xf8] sm:$0xff]
    %v1711 = vld [vmem:[#allocation9 + $0x100] sm:$0xff]
    %v1712 = vld [vmem:[#allocation9 + $0x108] sm:$0xff]
    %v1713 = vld [vmem:[#allocation9 + $0x110] sm:$0xff]
    %v1714 = vld [vmem:[#allocation9 + $0x118] sm:$0xff]
    %v1715 = vld [vmem:[#allocation9 + $0x120] sm:$0xff]
    %v1716 = vld [vmem:[#allocation9 + $0x128] sm:$0xff]
    %v1717 = vld [vmem:[#allocation9 + $0x130] sm:$0xff]
    %v1718 = vld [vmem:[#allocation9 + $0x138] sm:$0xff]
    %v1719 = vld [vmem:[#allocation9 + $0x140] sm:$0xff]
    %v1720 = vld [vmem:[#allocation9 + $0x148] sm:$0xff]
    %v1721 = vld [vmem:[#allocation9 + $0x150] sm:$0xff]
    %v1722 = vld [vmem:[#allocation9 + $0x158] sm:$0xff]
    %v1723 = vld [vmem:[#allocation9 + $0x160] sm:$0xff]
    %v1724 = vld [vmem:[#allocation9 + $0x168] sm:$0xff]
    %v1725 = vld [vmem:[#allocation9 + $0x170] sm:$0xff]
    %v1726 = vld [vmem:[#allocation9 + $0x178] sm:$0xff]
    %v1727 = vld [vmem:[#allocation9 + $0x180] sm:$0xff]
    %v1728 = vld [vmem:[#allocation9 + $0x188] sm:$0xff]
    %v1729 = vld [vmem:[#allocation9 + $0x190] sm:$0xff]
    %v1730 = vld [vmem:[#allocation9 + $0x198] sm:$0xff]
    %v1731 = vld [vmem:[#allocation9 + $0x1a0] sm:$0xff]
    %v1732 = vld [vmem:[#allocation9 + $0x1a8] sm:$0xff]
    %v1733 = vld [vmem:[#allocation9 + $0x1b0] sm:$0xff]
    %v1734 = vld [vmem:[#allocation9 + $0x1b8] sm:$0xff]
    %v1735 = vld [vmem:[#allocation9 + $0x1c0] sm:$0xff]
    %v1736 = vld [vmem:[#allocation9 + $0x1c8] sm:$0xff]
    %v1737 = vld [vmem:[#allocation9 + $0x1d0] sm:$0xff]
    %v1738 = vld [vmem:[#allocation9 + $0x1d8] sm:$0xff]
    %v1739 = vld [vmem:[#allocation9 + $0x1e0] sm:$0xff]
    %v1740 = vld [vmem:[#allocation9 + $0x1e8] sm:$0xff]
    %v1741 = vld [vmem:[#allocation9 + $0x1f0] sm:$0xff]
    %v1742 = vld [vmem:[#allocation9 + $0x1f8] sm:$0xff]
    %1743 = vmatprep.subr.mxu0 %v1680
    %1744 = vmatpush1.msra.mxu0 %v1679
    %1745 = vmatprep.subr.mxu0 %v1684
    %1746 = vmatpush1.msra.mxu0 %v1683
    %1747 = vmatprep.subr.mxu0 %v1688
    %1748 = vmatpush1.msra.mxu0 %v1687
    %1749 = vmatprep.subr.mxu0 %v1692
    %1750 = vmatpush1.msra.mxu0 %v1691
    %1751 = vmatprep.subr.mxu0 %v1696
    %1752 = vmatpush1.msra.mxu0 %v1695
    %1753 = vmatprep.subr.mxu0 %v1700
    %1754 = vmatpush1.msra.mxu0 %v1699
    %1755 = vmatprep.subr.mxu0 %v1704
    %1756 = vmatpush1.msra.mxu0 %v1703
    %1757 = vmatprep.subr.mxu0 %v1708
    %1758 = vmatpush1.msra.mxu0 %v1707
    %1759 = vmatprep.subr.mxu0 %v1712
    %1760 = vmatpush1.msra.mxu0 %v1711
    %1761 = vmatprep.subr.mxu0 %v1716
    %1762 = vmatpush1.msra.mxu0 %v1715
    %1763 = vmatprep.subr.mxu0 %v1720
    %1764 = vmatpush1.msra.mxu0 %v1719
    %1765 = vmatprep.subr.mxu0 %v1724
    %1766 = vmatpush1.msra.mxu0 %v1723
    %1767 = vmatprep.subr.mxu0 %v1728
    %1768 = vmatpush1.msra.mxu0 %v1727
    %1769 = vmatprep.subr.mxu0 %v1732
    %1770 = vmatpush1.msra.mxu0 %v1731
    %1771 = vmatprep.subr.mxu0 %v1736
    %1772 = vmatpush1.msra.mxu0 %v1735
    %1773 = vmatprep.subr.mxu0 %v1740
    %1774 = vmatpush1.msra.mxu0 %v1739
    %1775 = vmatprep.subr.mxu0 0.0
    %1776 = vmatpush1.msra.mxu0 0.0
    %1777 = vmatprep.subr.mxu0 0.0
    %1778 = vmatpush1.msra.mxu0 0.0
    %1779 = vmatprep.subr.mxu0 0.0
    %1780 = vmatpush1.msra.mxu0 0.0
    %1781 = vmatprep.subr.mxu0 0.0
    %1782 = vmatpush1.msra.mxu0 0.0
    %1783 = vmatprep.subr.mxu0 0.0
    %1784 = vmatpush1.msra.mxu0 0.0
    %1785 = vmatprep.subr.mxu0 0.0
    %1786 = vmatpush1.msra.mxu0 0.0
    %1787 = vmatprep.subr.mxu0 0.0
    %1788 = vmatpush1.msra.mxu0 0.0
    %1789 = vmatprep.subr.mxu0 0.0
    %1790 = vmatpush1.msra.mxu0 0.0
    %1791 = vmatprep.subr.mxu0 0.0
    %1792 = vmatpush1.msra.mxu0 0.0
    %1793 = vmatprep.subr.mxu0 0.0
    %1794 = vmatpush1.msra.mxu0 0.0
    %1795 = vmatprep.subr.mxu0 0.0
    %1796 = vmatpush1.msra.mxu0 0.0
    %1797 = vmatprep.subr.mxu0 0.0
    %1798 = vmatpush1.msra.mxu0 0.0
    %1799 = vmatprep.subr.mxu0 0.0
    %1800 = vmatpush1.msra.mxu0 0.0
    %1801 = vmatprep.subr.mxu0 0.0
    %1802 = vmatpush1.msra.mxu0 0.0
    %1803 = vmatprep.subr.mxu0 0.0
    %1804 = vmatpush1.msra.mxu0 0.0
    %1805 = vmatprep.subr.mxu0 0.0
    %1806 = vmatpush1.msra.mxu0 0.0
    %1807 = vmatprep.mubr.f32.mxu0 0.0
    %1808 = vmatmul.mubr.f32.gmra.mrb[0].mxu0 %v1648
    %v1809 = vpop.f32.mrb[0].mxu0
    %v1810 = vadd.f32 0.0, %v1809
    %v1811 = vpop.f32.mrb[0].mxu0
    %v1812 = vadd.f32 0.0, %v1811
    %1813 = vdwg.mxu0
    %1814 = vmatprep.subr.mxu0 %v1682
    %1815 = vmatpush1.msra.mxu0 %v1681
    %1816 = vmatprep.subr.mxu0 %v1686
    %1817 = vmatpush1.msra.mxu0 %v1685
    %1818 = vmatprep.subr.mxu0 %v1690
    %1819 = vmatpush1.msra.mxu0 %v1689
    %1820 = vmatprep.subr.mxu0 %v1694
    %1821 = vmatpush1.msra.mxu0 %v1693
    %1822 = vmatprep.subr.mxu0 %v1698
    %1823 = vmatpush1.msra.mxu0 %v1697
    %1824 = vmatprep.subr.mxu0 %v1702
    %1825 = vmatpush1.msra.mxu0 %v1701
    %1826 = vmatprep.subr.mxu0 %v1706
    %1827 = vmatpush1.msra.mxu0 %v1705
    %1828 = vmatprep.subr.mxu0 %v1710
    %1829 = vmatpush1.msra.mxu0 %v1709
    %1830 = vmatprep.subr.mxu0 %v1714
    %1831 = vmatpush1.msra.mxu0 %v1713
    %1832 = vmatprep.subr.mxu0 %v1718
    %1833 = vmatpush1.msra.mxu0 %v1717
    %1834 = vmatprep.subr.mxu0 %v1722
    %1835 = vmatpush1.msra.mxu0 %v1721
    %1836 = vmatprep.subr.mxu0 %v1726
    %1837 = vmatpush1.msra.mxu0 %v1725
    %1838 = vmatprep.subr.mxu0 %v1730
    %1839 = vmatpush1.msra.mxu0 %v1729
    %1840 = vmatprep.subr.mxu0 %v1734
    %1841 = vmatpush1.msra.mxu0 %v1733
    %1842 = vmatprep.subr.mxu0 %v1738
    %1843 = vmatpush1.msra.mxu0 %v1737
    %1844 = vmatprep.subr.mxu0 %v1742
    %1845 = vmatpush1.msra.mxu0 %v1741
    %1846 = vmatprep.subr.mxu0 0.0
    %1847 = vmatpush1.msra.mxu0 0.0
    %1848 = vmatprep.subr.mxu0 0.0
    %1849 = vmatpush1.msra.mxu0 0.0
    %1850 = vmatprep.subr.mxu0 0.0
    %1851 = vmatpush1.msra.mxu0 0.0
    %1852 = vmatprep.subr.mxu0 0.0
    %1853 = vmatpush1.msra.mxu0 0.0
    %1854 = vmatprep.subr.mxu0 0.0
    %1855 = vmatpush1.msra.mxu0 0.0
    %1856 = vmatprep.subr.mxu0 0.0
    %1857 = vmatpush1.msra.mxu0 0.0
    %1858 = vmatprep.subr.mxu0 0.0
    %1859 = vmatpush1.msra.mxu0 0.0
    %1860 = vmatprep.subr.mxu0 0.0
    %1861 = vmatpush1.msra.mxu0 0.0
    %1862 = vmatprep.subr.mxu0 0.0
    %1863 = vmatpush1.msra.mxu0 0.0
    %1864 = vmatprep.subr.mxu0 0.0
    %1865 = vmatpush1.msra.mxu0 0.0
    %1866 = vmatprep.subr.mxu0 0.0
    %1867 = vmatpush1.msra.mxu0 0.0
    %1868 = vmatprep.subr.mxu0 0.0
    %1869 = vmatpush1.msra.mxu0 0.0
    %1870 = vmatprep.subr.mxu0 0.0
    %1871 = vmatpush1.msra.mxu0 0.0
    %1872 = vmatprep.subr.mxu0 0.0
    %1873 = vmatpush1.msra.mxu0 0.0
    %1874 = vmatprep.subr.mxu0 0.0
    %1875 = vmatpush1.msra.mxu0 0.0
    %1876 = vmatprep.subr.mxu0 0.0
    %1877 = vmatpush1.msra.mxu0 0.0
    %1878 = vmatprep.mubr.f32.mxu0 0.0
    %1879 = vmatmul.mubr.f32.gmra.mrb[0].mxu0 %v1648
    %v1880 = vpop.f32.mrb[0].mxu0
    %v1881 = vadd.f32 0.0, %v1880
    %v1882 = vpop.f32.mrb[0].mxu0
    %v1883 = vadd.f32 0.0, %v1882
    %1884 = vdwg.mxu0
    %v1885 = vadd.f32 %v1671, %v1810
    %v1886 = vadd.f32 %v1672, %v1812
    %v1887 = vadd.f32 %v1673, %v1881
    %v1888 = vadd.f32 %v1674, %v1883
    %1889 = vmatprep.subr.mxu0 %v1680
    %1890 = vmatpush1.msra.mxu0 %v1679
    %1891 = vmatprep.subr.mxu0 %v1684
    %1892 = vmatpush1.msra.mxu0 %v1683
    %1893 = vmatprep.subr.mxu0 %v1688
    %1894 = vmatpush1.msra.mxu0 %v1687
    %1895 = vmatprep.subr.mxu0 %v1692
    %1896 = vmatpush1.msra.mxu0 %v1691
    %1897 = vmatprep.subr.mxu0 %v1696
    %1898 = vmatpush1.msra.mxu0 %v1695
    %1899 = vmatprep.subr.mxu0 %v1700
    %1900 = vmatpush1.msra.mxu0 %v1699
    %1901 = vmatprep.subr.mxu0 %v1704
    %1902 = vmatpush1.msra.mxu0 %v1703
    %1903 = vmatprep.subr.mxu0 %v1708
    %1904 = vmatpush1.msra.mxu0 %v1707
    %1905 = vmatprep.subr.mxu0 %v1712
    %1906 = vmatpush1.msra.mxu0 %v1711
    %1907 = vmatprep.subr.mxu0 %v1716
    %1908 = vmatpush1.msra.mxu0 %v1715
    %1909 = vmatprep.subr.mxu0 %v1720
    %1910 = vmatpush1.msra.mxu0 %v1719
    %1911 = vmatprep.subr.mxu0 %v1724
    %1912 = vmatpush1.msra.mxu0 %v1723
    %1913 = vmatprep.subr.mxu0 %v1728
    %1914 = vmatpush1.msra.mxu0 %v1727
    %1915 = vmatprep.subr.mxu0 %v1732
    %1916 = vmatpush1.msra.mxu0 %v1731
    %1917 = vmatprep.subr.mxu0 %v1736
    %1918 = vmatpush1.msra.mxu0 %v1735
    %1919 = vmatprep.subr.mxu0 %v1740
    %1920 = vmatpush1.msra.mxu0 %v1739
    %1921 = vmatprep.subr.mxu0 0.0
    %1922 = vmatpush1.msra.mxu0 0.0
    %1923 = vmatprep.subr.mxu0 0.0
    %1924 = vmatpush1.msra.mxu0 0.0
    %1925 = vmatprep.subr.mxu0 0.0
    %1926 = vmatpush1.msra.mxu0 0.0
    %1927 = vmatprep.subr.mxu0 0.0
    %1928 = vmatpush1.msra.mxu0 0.0
    %1929 = vmatprep.subr.mxu0 0.0
    %1930 = vmatpush1.msra.mxu0 0.0
    %1931 = vmatprep.subr.mxu0 0.0
    %1932 = vmatpush1.msra.mxu0 0.0
    %1933 = vmatprep.subr.mxu0 0.0
    %1934 = vmatpush1.msra.mxu0 0.0
    %1935 = vmatprep.subr.mxu0 0.0
    %1936 = vmatpush1.msra.mxu0 0.0
    %1937 = vmatprep.subr.mxu0 0.0
    %1938 = vmatpush1.msra.mxu0 0.0
    %1939 = vmatprep.subr.mxu0 0.0
    %1940 = vmatpush1.msra.mxu0 0.0
    %1941 = vmatprep.subr.mxu0 0.0
    %1942 = vmatpush1.msra.mxu0 0.0
    %1943 = vmatprep.subr.mxu0 0.0
    %1944 = vmatpush1.msra.mxu0 0.0
    %1945 = vmatprep.subr.mxu0 0.0
    %1946 = vmatpush1.msra.mxu0 0.0
    %1947 = vmatprep.subr.mxu0 0.0
    %1948 = vmatpush1.msra.mxu0 0.0
    %1949 = vmatprep.subr.mxu0 0.0
    %1950 = vmatpush1.msra.mxu0 0.0
    %1951 = vmatprep.subr.mxu0 0.0
    %1952 = vmatpush1.msra.mxu0 0.0
    %1953 = vmatprep.mubr.f32.mxu0 0.0
    %1954 = vmatmul.mubr.f32.gmra.mrb[0].mxu0 %v1666
    %v1955 = vpop.f32.mrb[0].mxu0
    %v1956 = vadd.f32 0.0, %v1955
    %v1957 = vpop.f32.mrb[0].mxu0
    %v1958 = vadd.f32 0.0, %v1957
    %1959 = vdwg.mxu0
    %1960 = vmatprep.subr.mxu0 %v1682
    %1961 = vmatpush1.msra.mxu0 %v1681
    %1962 = vmatprep.subr.mxu0 %v1686
    %1963 = vmatpush1.msra.mxu0 %v1685
    %1964 = vmatprep.subr.mxu0 %v1690
    %1965 = vmatpush1.msra.mxu0 %v1689
    %1966 = vmatprep.subr.mxu0 %v1694
    %1967 = vmatpush1.msra.mxu0 %v1693
    %1968 = vmatprep.subr.mxu0 %v1698
    %1969 = vmatpush1.msra.mxu0 %v1697
    %1970 = vmatprep.subr.mxu0 %v1702
    %1971 = vmatpush1.msra.mxu0 %v1701
    %1972 = vmatprep.subr.mxu0 %v1706
    %1973 = vmatpush1.msra.mxu0 %v1705
    %1974 = vmatprep.subr.mxu0 %v1710
    %1975 = vmatpush1.msra.mxu0 %v1709
    %1976 = vmatprep.subr.mxu0 %v1714
    %1977 = vmatpush1.msra.mxu0 %v1713
    %1978 = vmatprep.subr.mxu0 %v1718
    %1979 = vmatpush1.msra.mxu0 %v1717
    %1980 = vmatprep.subr.mxu0 %v1722
    %1981 = vmatpush1.msra.mxu0 %v1721
    %1982 = vmatprep.subr.mxu0 %v1726
    %1983 = vmatpush1.msra.mxu0 %v1725
    %1984 = vmatprep.subr.mxu0 %v1730
    %1985 = vmatpush1.msra.mxu0 %v1729
    %1986 = vmatprep.subr.mxu0 %v1734
    %1987 = vmatpush1.msra.mxu0 %v1733
    %1988 = vmatprep.subr.mxu0 %v1738
    %1989 = vmatpush1.msra.mxu0 %v1737
    %1990 = vmatprep.subr.mxu0 %v1742
    %1991 = vmatpush1.msra.mxu0 %v1741
    %1992 = vmatprep.subr.mxu0 0.0
    %1993 = vmatpush1.msra.mxu0 0.0
    %1994 = vmatprep.subr.mxu0 0.0
    %1995 = vmatpush1.msra.mxu0 0.0
    %1996 = vmatprep.subr.mxu0 0.0
    %1997 = vmatpush1.msra.mxu0 0.0
    %1998 = vmatprep.subr.mxu0 0.0
    %1999 = vmatpush1.msra.mxu0 0.0
    %2000 = vmatprep.subr.mxu0 0.0
    %2001 = vmatpush1.msra.mxu0 0.0
    %2002 = vmatprep.subr.mxu0 0.0
    %2003 = vmatpush1.msra.mxu0 0.0
    %2004 = vmatprep.subr.mxu0 0.0
    %2005 = vmatpush1.msra.mxu0 0.0
    %2006 = vmatprep.subr.mxu0 0.0
    %2007 = vmatpush1.msra.mxu0 0.0
    %2008 = vmatprep.subr.mxu0 0.0
    %2009 = vmatpush1.msra.mxu0 0.0
    %2010 = vmatprep.subr.mxu0 0.0
    %2011 = vmatpush1.msra.mxu0 0.0
    %2012 = vmatprep.subr.mxu0 0.0
    %2013 = vmatpush1.msra.mxu0 0.0
    %2014 = vmatprep.subr.mxu0 0.0
    %2015 = vmatpush1.msra.mxu0 0.0
    %2016 = vmatprep.subr.mxu0 0.0
    %2017 = vmatpush1.msra.mxu0 0.0
    %2018 = vmatprep.subr.mxu0 0.0
    %2019 = vmatpush1.msra.mxu0 0.0
    %2020 = vmatprep.subr.mxu0 0.0
    %2021 = vmatpush1.msra.mxu0 0.0
    %2022 = vmatprep.subr.mxu0 0.0
    %2023 = vmatpush1.msra.mxu0 0.0
    %2024 = vmatprep.mubr.f32.mxu0 0.0
    %2025 = vmatmul.mubr.f32.gmra.mrb[0].mxu0 %v1666
    %v2026 = vpop.f32.mrb[0].mxu0
    %v2027 = vadd.f32 0.0, %v2026
    %v2028 = vpop.f32.mrb[0].mxu0
    %v2029 = vadd.f32 0.0, %v2028
    %2030 = vdwg.mxu0
    %v2031 = vadd.f32 %v1675, %v1956
    %v2032 = vadd.f32 %v1676, %v1958
    %v2033 = vadd.f32 %v1677, %v2027
    %v2034 = vadd.f32 %v1678, %v2029
    %v2035 = vmul.f32 %v1885, 0.5
    %v2036 = vtanh.pop %v2035
    %v2037 = vmul.f32 %v2036, 0.5
    %v2038 = vadd.f32 %v2037, 0.5
    %v2039 = vmul.f32 %v1886, 0.5
    %v2040 = vtanh.pop %v2039
    %v2041 = vmul.f32 %v2040, 0.5
    %v2042 = vadd.f32 %v2041, 0.5
    %v2043 = vtanh.pop %v1887
    %v2044 = vmul.f32 %v1888, 0.5
    %v2045 = vtanh.pop %v2044
    %v2046 = vmul.f32 %v2045, 0.5
    %v2047 = vadd.f32 %v2046, 0.5
    %v2048 = vmul.f32 %v2042, %v1646
    %v2049 = vmul.f32 %v2038, %v2043
    %v2050 = vadd.f32 %v2048, %v2049
    %v2051 = vtanh.pop %v2050
    %v2052 = vmul.f32 %v2047, %v2051
    %v2053 = vmul.f32 %v2031, 0.5
    %v2054 = vtanh.pop %v2053
    %v2055 = vmul.f32 %v2054, 0.5
    %v2056 = vadd.f32 %v2055, 0.5
    %v2057 = vmul.f32 %v2032, 0.5
    %v2058 = vtanh.pop %v2057
    %v2059 = vmul.f32 %v2058, 0.5
    %v2060 = vadd.f32 %v2059, 0.5
    %v2061 = vtanh.pop %v2033
    %v2062 = vmul.f32 %v2034, 0.5
    %v2063 = vtanh.pop %v2062
    %v2064 = vmul.f32 %v2063, 0.5
    %v2065 = vadd.f32 %v2064, 0.5
    %v2066 = vmul.f32 %v2060, %v1664
    %v2067 = vmul.f32 %v2056, %v2061
    %v2068 = vadd.f32 %v2066, %v2067
    %v2069 = vtanh.pop %v2068
    %v2070 = vmul.f32 %v2065, %v2069
    %s2071 = scalar_lea.vmem [#allocation11], 64
    %2072 = vst [vmem:[%s2071] sm:$0xff] %v2052
    %2073 = vst [vmem:[%s2071 + $0x8] sm:$0xff] %v2070
    %s2074 = scalar_lea.vmem [#allocation6], 320
    %v2075 = vld [vmem:[%s2074] sm:$0xff]
    %v2076 = vld [vmem:[%s2074 + $0x8] sm:$0xff]
    %v2077 = vld [vmem:[%s2074 + $0x10] sm:$0xff]
    %v2078 = vld [vmem:[%s2074 + $0x18] sm:$0xff]
    %v2079 = vld [vmem:[%s2074 + $0x20] sm:$0xff]
    %v2080 = vld [vmem:[%s2074 + $0x28] sm:$0xff]
    %v2081 = vld [vmem:[%s2074 + $0x30] sm:$0xff]
    %v2082 = vld [vmem:[%s2074 + $0x38] sm:$0xff]
    %v2083 = vld [vmem:[#allocation9] sm:$0xff]
    %v2084 = vld [vmem:[#allocation9 + $0x8] sm:$0xff]
    %v2085 = vld [vmem:[#allocation9 + $0x10] sm:$0xff]
    %v2086 = vld [vmem:[#allocation9 + $0x18] sm:$0xff]
    %v2087 = vld [vmem:[#allocation9 + $0x20] sm:$0xff]
    %v2088 = vld [vmem:[#allocation9 + $0x28] sm:$0xff]
    %v2089 = vld [vmem:[#allocation9 + $0x30] sm:$0xff]
    %v2090 = vld [vmem:[#allocation9 + $0x38] sm:$0xff]
    %v2091 = vld [vmem:[#allocation9 + $0x40] sm:$0xff]
    %v2092 = vld [vmem:[#allocation9 + $0x48] sm:$0xff]
    %v2093 = vld [vmem:[#allocation9 + $0x50] sm:$0xff]
    %v2094 = vld [vmem:[#allocation9 + $0x58] sm:$0xff]
    %v2095 = vld [vmem:[#allocation9 + $0x60] sm:$0xff]
    %v2096 = vld [vmem:[#allocation9 + $0x68] sm:$0xff]
    %v2097 = vld [vmem:[#allocation9 + $0x70] sm:$0xff]
    %v2098 = vld [vmem:[#allocation9 + $0x78] sm:$0xff]
    %v2099 = vld [vmem:[#allocation9 + $0x80] sm:$0xff]
    %v2100 = vld [vmem:[#allocation9 + $0x88] sm:$0xff]
    %v2101 = vld [vmem:[#allocation9 + $0x90] sm:$0xff]
    %v2102 = vld [vmem:[#allocation9 + $0x98] sm:$0xff]
    %v2103 = vld [vmem:[#allocation9 + $0xa0] sm:$0xff]
    %v2104 = vld [vmem:[#allocation9 + $0xa8] sm:$0xff]
    %v2105 = vld [vmem:[#allocation9 + $0xb0] sm:$0xff]
    %v2106 = vld [vmem:[#allocation9 + $0xb8] sm:$0xff]
    %v2107 = vld [vmem:[#allocation9 + $0xc0] sm:$0xff]
    %v2108 = vld [vmem:[#allocation9 + $0xc8] sm:$0xff]
    %v2109 = vld [vmem:[#allocation9 + $0xd0] sm:$0xff]
    %v2110 = vld [vmem:[#allocation9 + $0xd8] sm:$0xff]
    %v2111 = vld [vmem:[#allocation9 + $0xe0] sm:$0xff]
    %v2112 = vld [vmem:[#allocation9 + $0xe8] sm:$0xff]
    %v2113 = vld [vmem:[#allocation9 + $0xf0] sm:$0xff]
    %v2114 = vld [vmem:[#allocation9 + $0xf8] sm:$0xff]
    %v2115 = vld [vmem:[#allocation9 + $0x100] sm:$0xff]
    %v2116 = vld [vmem:[#allocation9 + $0x108] sm:$0xff]
    %v2117 = vld [vmem:[#allocation9 + $0x110] sm:$0xff]
    %v2118 = vld [vmem:[#allocation9 + $0x118] sm:$0xff]
    %v2119 = vld [vmem:[#allocation9 + $0x120] sm:$0xff]
    %v2120 = vld [vmem:[#allocation9 + $0x128] sm:$0xff]
    %v2121 = vld [vmem:[#allocation9 + $0x130] sm:$0xff]
    %v2122 = vld [vmem:[#allocation9 + $0x138] sm:$0xff]
    %v2123 = vld [vmem:[#allocation9 + $0x140] sm:$0xff]
    %v2124 = vld [vmem:[#allocation9 + $0x148] sm:$0xff]
    %v2125 = vld [vmem:[#allocation9 + $0x150] sm:$0xff]
    %v2126 = vld [vmem:[#allocation9 + $0x158] sm:$0xff]
    %v2127 = vld [vmem:[#allocation9 + $0x160] sm:$0xff]
    %v2128 = vld [vmem:[#allocation9 + $0x168] sm:$0xff]
    %v2129 = vld [vmem:[#allocation9 + $0x170] sm:$0xff]
    %v2130 = vld [vmem:[#allocation9 + $0x178] sm:$0xff]
    %v2131 = vld [vmem:[#allocation9 + $0x180] sm:$0xff]
    %v2132 = vld [vmem:[#allocation9 + $0x188] sm:$0xff]
    %v2133 = vld [vmem:[#allocation9 + $0x190] sm:$0xff]
    %v2134 = vld [vmem:[#allocation9 + $0x198] sm:$0xff]
    %v2135 = vld [vmem:[#allocation9 + $0x1a0] sm:$0xff]
    %v2136 = vld [vmem:[#allocation9 + $0x1a8] sm:$0xff]
    %v2137 = vld [vmem:[#allocation9 + $0x1b0] sm:$0xff]
    %v2138 = vld [vmem:[#allocation9 + $0x1b8] sm:$0xff]
    %v2139 = vld [vmem:[#allocation9 + $0x1c0] sm:$0xff]
    %v2140 = vld [vmem:[#allocation9 + $0x1c8] sm:$0xff]
    %v2141 = vld [vmem:[#allocation9 + $0x1d0] sm:$0xff]
    %v2142 = vld [vmem:[#allocation9 + $0x1d8] sm:$0xff]
    %v2143 = vld [vmem:[#allocation9 + $0x1e0] sm:$0xff]
    %v2144 = vld [vmem:[#allocation9 + $0x1e8] sm:$0xff]
    %v2145 = vld [vmem:[#allocation9 + $0x1f0] sm:$0xff]
    %v2146 = vld [vmem:[#allocation9 + $0x1f8] sm:$0xff]
    %2147 = vmatprep.subr.mxu0 %v2084
    %2148 = vmatpush1.msra.mxu0 %v2083
    %2149 = vmatprep.subr.mxu0 %v2088
    %2150 = vmatpush1.msra.mxu0 %v2087
    %2151 = vmatprep.subr.mxu0 %v2092
    %2152 = vmatpush1.msra.mxu0 %v2091
    %2153 = vmatprep.subr.mxu0 %v2096
    %2154 = vmatpush1.msra.mxu0 %v2095
    %2155 = vmatprep.subr.mxu0 %v2100
    %2156 = vmatpush1.msra.mxu0 %v2099
    %2157 = vmatprep.subr.mxu0 %v2104
    %2158 = vmatpush1.msra.mxu0 %v2103
    %2159 = vmatprep.subr.mxu0 %v2108
    %2160 = vmatpush1.msra.mxu0 %v2107
    %2161 = vmatprep.subr.mxu0 %v2112
    %2162 = vmatpush1.msra.mxu0 %v2111
    %2163 = vmatprep.subr.mxu0 %v2116
    %2164 = vmatpush1.msra.mxu0 %v2115
    %2165 = vmatprep.subr.mxu0 %v2120
    %2166 = vmatpush1.msra.mxu0 %v2119
    %2167 = vmatprep.subr.mxu0 %v2124
    %2168 = vmatpush1.msra.mxu0 %v2123
    %2169 = vmatprep.subr.mxu0 %v2128
    %2170 = vmatpush1.msra.mxu0 %v2127
    %2171 = vmatprep.subr.mxu0 %v2132
    %2172 = vmatpush1.msra.mxu0 %v2131
    %2173 = vmatprep.subr.mxu0 %v2136
    %2174 = vmatpush1.msra.mxu0 %v2135
    %2175 = vmatprep.subr.mxu0 %v2140
    %2176 = vmatpush1.msra.mxu0 %v2139
    %2177 = vmatprep.subr.mxu0 %v2144
    %2178 = vmatpush1.msra.mxu0 %v2143
    %2179 = vmatprep.subr.mxu0 0.0
    %2180 = vmatpush1.msra.mxu0 0.0
    %2181 = vmatprep.subr.mxu0 0.0
    %2182 = vmatpush1.msra.mxu0 0.0
    %2183 = vmatprep.subr.mxu0 0.0
    %2184 = vmatpush1.msra.mxu0 0.0
    %2185 = vmatprep.subr.mxu0 0.0
    %2186 = vmatpush1.msra.mxu0 0.0
    %2187 = vmatprep.subr.mxu0 0.0
    %2188 = vmatpush1.msra.mxu0 0.0
    %2189 = vmatprep.subr.mxu0 0.0
    %2190 = vmatpush1.msra.mxu0 0.0
    %2191 = vmatprep.subr.mxu0 0.0
    %2192 = vmatpush1.msra.mxu0 0.0
    %2193 = vmatprep.subr.mxu0 0.0
    %2194 = vmatpush1.msra.mxu0 0.0
    %2195 = vmatprep.subr.mxu0 0.0
    %2196 = vmatpush1.msra.mxu0 0.0
    %2197 = vmatprep.subr.mxu0 0.0
    %2198 = vmatpush1.msra.mxu0 0.0
    %2199 = vmatprep.subr.mxu0 0.0
    %2200 = vmatpush1.msra.mxu0 0.0
    %2201 = vmatprep.subr.mxu0 0.0
    %2202 = vmatpush1.msra.mxu0 0.0
    %2203 = vmatprep.subr.mxu0 0.0
    %2204 = vmatpush1.msra.mxu0 0.0
    %2205 = vmatprep.subr.mxu0 0.0
    %2206 = vmatpush1.msra.mxu0 0.0
    %2207 = vmatprep.subr.mxu0 0.0
    %2208 = vmatpush1.msra.mxu0 0.0
    %2209 = vmatprep.subr.mxu0 0.0
    %2210 = vmatpush1.msra.mxu0 0.0
    %2211 = vmatprep.mubr.f32.mxu0 0.0
    %2212 = vmatmul.mubr.f32.gmra.mrb[0].mxu0 %v2052
    %v2213 = vpop.f32.mrb[0].mxu0
    %v2214 = vadd.f32 0.0, %v2213
    %v2215 = vpop.f32.mrb[0].mxu0
    %v2216 = vadd.f32 0.0, %v2215
    %2217 = vdwg.mxu0
    %2218 = vmatprep.subr.mxu0 %v2086
    %2219 = vmatpush1.msra.mxu0 %v2085
    %2220 = vmatprep.subr.mxu0 %v2090
    %2221 = vmatpush1.msra.mxu0 %v2089
    %2222 = vmatprep.subr.mxu0 %v2094
    %2223 = vmatpush1.msra.mxu0 %v2093
    %2224 = vmatprep.subr.mxu0 %v2098
    %2225 = vmatpush1.msra.mxu0 %v2097
    %2226 = vmatprep.subr.mxu0 %v2102
    %2227 = vmatpush1.msra.mxu0 %v2101
    %2228 = vmatprep.subr.mxu0 %v2106
    %2229 = vmatpush1.msra.mxu0 %v2105
    %2230 = vmatprep.subr.mxu0 %v2110
    %2231 = vmatpush1.msra.mxu0 %v2109
    %2232 = vmatprep.subr.mxu0 %v2114
    %2233 = vmatpush1.msra.mxu0 %v2113
    %2234 = vmatprep.subr.mxu0 %v2118
    %2235 = vmatpush1.msra.mxu0 %v2117
    %2236 = vmatprep.subr.mxu0 %v2122
    %2237 = vmatpush1.msra.mxu0 %v2121
    %2238 = vmatprep.subr.mxu0 %v2126
    %2239 = vmatpush1.msra.mxu0 %v2125
    %2240 = vmatprep.subr.mxu0 %v2130
    %2241 = vmatpush1.msra.mxu0 %v2129
    %2242 = vmatprep.subr.mxu0 %v2134
    %2243 = vmatpush1.msra.mxu0 %v2133
    %2244 = vmatprep.subr.mxu0 %v2138
    %2245 = vmatpush1.msra.mxu0 %v2137
    %2246 = vmatprep.subr.mxu0 %v2142
    %2247 = vmatpush1.msra.mxu0 %v2141
    %2248 = vmatprep.subr.mxu0 %v2146
    %2249 = vmatpush1.msra.mxu0 %v2145
    %2250 = vmatprep.subr.mxu0 0.0
    %2251 = vmatpush1.msra.mxu0 0.0
    %2252 = vmatprep.subr.mxu0 0.0
    %2253 = vmatpush1.msra.mxu0 0.0
    %2254 = vmatprep.subr.mxu0 0.0
    %2255 = vmatpush1.msra.mxu0 0.0
    %2256 = vmatprep.subr.mxu0 0.0
    %2257 = vmatpush1.msra.mxu0 0.0
    %2258 = vmatprep.subr.mxu0 0.0
    %2259 = vmatpush1.msra.mxu0 0.0
    %2260 = vmatprep.subr.mxu0 0.0
    %2261 = vmatpush1.msra.mxu0 0.0
    %2262 = vmatprep.subr.mxu0 0.0
    %2263 = vmatpush1.msra.mxu0 0.0
    %2264 = vmatprep.subr.mxu0 0.0
    %2265 = vmatpush1.msra.mxu0 0.0
    %2266 = vmatprep.subr.mxu0 0.0
    %2267 = vmatpush1.msra.mxu0 0.0
    %2268 = vmatprep.subr.mxu0 0.0
    %2269 = vmatpush1.msra.mxu0 0.0
    %2270 = vmatprep.subr.mxu0 0.0
    %2271 = vmatpush1.msra.mxu0 0.0
    %2272 = vmatprep.subr.mxu0 0.0
    %2273 = vmatpush1.msra.mxu0 0.0
    %2274 = vmatprep.subr.mxu0 0.0
    %2275 = vmatpush1.msra.mxu0 0.0
    %2276 = vmatprep.subr.mxu0 0.0
    %2277 = vmatpush1.msra.mxu0 0.0
    %2278 = vmatprep.subr.mxu0 0.0
    %2279 = vmatpush1.msra.mxu0 0.0
    %2280 = vmatprep.subr.mxu0 0.0
    %2281 = vmatpush1.msra.mxu0 0.0
    %2282 = vmatprep.mubr.f32.mxu0 0.0
    %2283 = vmatmul.mubr.f32.gmra.mrb[0].mxu0 %v2052
    %v2284 = vpop.f32.mrb[0].mxu0
    %v2285 = vadd.f32 0.0, %v2284
    %v2286 = vpop.f32.mrb[0].mxu0
    %v2287 = vadd.f32 0.0, %v2286
    %2288 = vdwg.mxu0
    %v2289 = vadd.f32 %v2075, %v2214
    %v2290 = vadd.f32 %v2076, %v2216
    %v2291 = vadd.f32 %v2077, %v2285
    %v2292 = vadd.f32 %v2078, %v2287
    %2293 = vmatprep.subr.mxu0 %v2084
    %2294 = vmatpush1.msra.mxu0 %v2083
    %2295 = vmatprep.subr.mxu0 %v2088
    %2296 = vmatpush1.msra.mxu0 %v2087
    %2297 = vmatprep.subr.mxu0 %v2092
    %2298 = vmatpush1.msra.mxu0 %v2091
    %2299 = vmatprep.subr.mxu0 %v2096
    %2300 = vmatpush1.msra.mxu0 %v2095
    %2301 = vmatprep.subr.mxu0 %v2100
    %2302 = vmatpush1.msra.mxu0 %v2099
    %2303 = vmatprep.subr.mxu0 %v2104
    %2304 = vmatpush1.msra.mxu0 %v2103
    %2305 = vmatprep.subr.mxu0 %v2108
    %2306 = vmatpush1.msra.mxu0 %v2107
    %2307 = vmatprep.subr.mxu0 %v2112
    %2308 = vmatpush1.msra.mxu0 %v2111
    %2309 = vmatprep.subr.mxu0 %v2116
    %2310 = vmatpush1.msra.mxu0 %v2115
    %2311 = vmatprep.subr.mxu0 %v2120
    %2312 = vmatpush1.msra.mxu0 %v2119
    %2313 = vmatprep.subr.mxu0 %v2124
    %2314 = vmatpush1.msra.mxu0 %v2123
    %2315 = vmatprep.subr.mxu0 %v2128
    %2316 = vmatpush1.msra.mxu0 %v2127
    %2317 = vmatprep.subr.mxu0 %v2132
    %2318 = vmatpush1.msra.mxu0 %v2131
    %2319 = vmatprep.subr.mxu0 %v2136
    %2320 = vmatpush1.msra.mxu0 %v2135
    %2321 = vmatprep.subr.mxu0 %v2140
    %2322 = vmatpush1.msra.mxu0 %v2139
    %2323 = vmatprep.subr.mxu0 %v2144
    %2324 = vmatpush1.msra.mxu0 %v2143
    %2325 = vmatprep.subr.mxu0 0.0
    %2326 = vmatpush1.msra.mxu0 0.0
    %2327 = vmatprep.subr.mxu0 0.0
    %2328 = vmatpush1.msra.mxu0 0.0
    %2329 = vmatprep.subr.mxu0 0.0
    %2330 = vmatpush1.msra.mxu0 0.0
    %2331 = vmatprep.subr.mxu0 0.0
    %2332 = vmatpush1.msra.mxu0 0.0
    %2333 = vmatprep.subr.mxu0 0.0
    %2334 = vmatpush1.msra.mxu0 0.0
    %2335 = vmatprep.subr.mxu0 0.0
    %2336 = vmatpush1.msra.mxu0 0.0
    %2337 = vmatprep.subr.mxu0 0.0
    %2338 = vmatpush1.msra.mxu0 0.0
    %2339 = vmatprep.subr.mxu0 0.0
    %2340 = vmatpush1.msra.mxu0 0.0
    %2341 = vmatprep.subr.mxu0 0.0
    %2342 = vmatpush1.msra.mxu0 0.0
    %2343 = vmatprep.subr.mxu0 0.0
    %2344 = vmatpush1.msra.mxu0 0.0
    %2345 = vmatprep.subr.mxu0 0.0
    %2346 = vmatpush1.msra.mxu0 0.0
    %2347 = vmatprep.subr.mxu0 0.0
    %2348 = vmatpush1.msra.mxu0 0.0
    %2349 = vmatprep.subr.mxu0 0.0
    %2350 = vmatpush1.msra.mxu0 0.0
    %2351 = vmatprep.subr.mxu0 0.0
    %2352 = vmatpush1.msra.mxu0 0.0
    %2353 = vmatprep.subr.mxu0 0.0
    %2354 = vmatpush1.msra.mxu0 0.0
    %2355 = vmatprep.subr.mxu0 0.0
    %2356 = vmatpush1.msra.mxu0 0.0
    %2357 = vmatprep.mubr.f32.mxu0 0.0
    %2358 = vmatmul.mubr.f32.gmra.mrb[0].mxu0 %v2070
    %v2359 = vpop.f32.mrb[0].mxu0
    %v2360 = vadd.f32 0.0, %v2359
    %v2361 = vpop.f32.mrb[0].mxu0
    %v2362 = vadd.f32 0.0, %v2361
    %2363 = vdwg.mxu0
    %2364 = vmatprep.subr.mxu0 %v2086
    %2365 = vmatpush1.msra.mxu0 %v2085
    %2366 = vmatprep.subr.mxu0 %v2090
    %2367 = vmatpush1.msra.mxu0 %v2089
    %2368 = vmatprep.subr.mxu0 %v2094
    %2369 = vmatpush1.msra.mxu0 %v2093
    %2370 = vmatprep.subr.mxu0 %v2098
    %2371 = vmatpush1.msra.mxu0 %v2097
    %2372 = vmatprep.subr.mxu0 %v2102
    %2373 = vmatpush1.msra.mxu0 %v2101
    %2374 = vmatprep.subr.mxu0 %v2106
    %2375 = vmatpush1.msra.mxu0 %v2105
    %2376 = vmatprep.subr.mxu0 %v2110
    %2377 = vmatpush1.msra.mxu0 %v2109
    %2378 = vmatprep.subr.mxu0 %v2114
    %2379 = vmatpush1.msra.mxu0 %v2113
    %2380 = vmatprep.subr.mxu0 %v2118
    %2381 = vmatpush1.msra.mxu0 %v2117
    %2382 = vmatprep.subr.mxu0 %v2122
    %2383 = vmatpush1.msra.mxu0 %v2121
    %2384 = vmatprep.subr.mxu0 %v2126
    %2385 = vmatpush1.msra.mxu0 %v2125
    %2386 = vmatprep.subr.mxu0 %v2130
    %2387 = vmatpush1.msra.mxu0 %v2129
    %2388 = vmatprep.subr.mxu0 %v2134
    %2389 = vmatpush1.msra.mxu0 %v2133
    %2390 = vmatprep.subr.mxu0 %v2138
    %2391 = vmatpush1.msra.mxu0 %v2137
    %2392 = vmatprep.subr.mxu0 %v2142
    %2393 = vmatpush1.msra.mxu0 %v2141
    %2394 = vmatprep.subr.mxu0 %v2146
    %2395 = vmatpush1.msra.mxu0 %v2145
    %2396 = vmatprep.subr.mxu0 0.0
    %2397 = vmatpush1.msra.mxu0 0.0
    %2398 = vmatprep.subr.mxu0 0.0
    %2399 = vmatpush1.msra.mxu0 0.0
    %2400 = vmatprep.subr.mxu0 0.0
    %2401 = vmatpush1.msra.mxu0 0.0
    %2402 = vmatprep.subr.mxu0 0.0
    %2403 = vmatpush1.msra.mxu0 0.0
    %2404 = vmatprep.subr.mxu0 0.0
    %2405 = vmatpush1.msra.mxu0 0.0
    %2406 = vmatprep.subr.mxu0 0.0
    %2407 = vmatpush1.msra.mxu0 0.0
    %2408 = vmatprep.subr.mxu0 0.0
    %2409 = vmatpush1.msra.mxu0 0.0
    %2410 = vmatprep.subr.mxu0 0.0
    %2411 = vmatpush1.msra.mxu0 0.0
    %2412 = vmatprep.subr.mxu0 0.0
    %2413 = vmatpush1.msra.mxu0 0.0
    %2414 = vmatprep.subr.mxu0 0.0
    %2415 = vmatpush1.msra.mxu0 0.0
    %2416 = vmatprep.subr.mxu0 0.0
    %2417 = vmatpush1.msra.mxu0 0.0
    %2418 = vmatprep.subr.mxu0 0.0
    %2419 = vmatpush1.msra.mxu0 0.0
    %2420 = vmatprep.subr.mxu0 0.0
    %2421 = vmatpush1.msra.mxu0 0.0
    %2422 = vmatprep.subr.mxu0 0.0
    %2423 = vmatpush1.msra.mxu0 0.0
    %2424 = vmatprep.subr.mxu0 0.0
    %2425 = vmatpush1.msra.mxu0 0.0
    %2426 = vmatprep.subr.mxu0 0.0
    %2427 = vmatpush1.msra.mxu0 0.0
    %2428 = vmatprep.mubr.f32.mxu0 0.0
    %2429 = vmatmul.mubr.f32.gmra.mrb[0].mxu0 %v2070
    %v2430 = vpop.f32.mrb[0].mxu0
    %v2431 = vadd.f32 0.0, %v2430
    %v2432 = vpop.f32.mrb[0].mxu0
    %v2433 = vadd.f32 0.0, %v2432
    %2434 = vdwg.mxu0
    %v2435 = vadd.f32 %v2079, %v2360
    %v2436 = vadd.f32 %v2080, %v2362
    %v2437 = vadd.f32 %v2081, %v2431
    %v2438 = vadd.f32 %v2082, %v2433
    %v2439 = vmul.f32 %v2289, 0.5
    %v2440 = vtanh.pop %v2439
    %v2441 = vmul.f32 %v2440, 0.5
    %v2442 = vadd.f32 %v2441, 0.5
    %v2443 = vmul.f32 %v2290, 0.5
    %v2444 = vtanh.pop %v2443
    %v2445 = vmul.f32 %v2444, 0.5
    %v2446 = vadd.f32 %v2445, 0.5
    %v2447 = vtanh.pop %v2291
    %v2448 = vmul.f32 %v2292, 0.5
    %v2449 = vtanh.pop %v2448
    %v2450 = vmul.f32 %v2449, 0.5
    %v2451 = vadd.f32 %v2450, 0.5
    %v2452 = vmul.f32 %v2446, %v2050
    %v2453 = vmul.f32 %v2442, %v2447
    %v2454 = vadd.f32 %v2452, %v2453
    %v2455 = vtanh.pop %v2454
    %v2456 = vmul.f32 %v2451, %v2455
    %v2457 = vmul.f32 %v2435, 0.5
    %v2458 = vtanh.pop %v2457
    %v2459 = vmul.f32 %v2458, 0.5
    %v2460 = vadd.f32 %v2459, 0.5
    %v2461 = vmul.f32 %v2436, 0.5
    %v2462 = vtanh.pop %v2461
    %v2463 = vmul.f32 %v2462, 0.5
    %v2464 = vadd.f32 %v2463, 0.5
    %v2465 = vtanh.pop %v2437
    %v2466 = vmul.f32 %v2438, 0.5
    %v2467 = vtanh.pop %v2466
    %v2468 = vmul.f32 %v2467, 0.5
    %v2469 = vadd.f32 %v2468, 0.5
    %v2470 = vmul.f32 %v2464, %v2068
    %v2471 = vmul.f32 %v2460, %v2465
    %v2472 = vadd.f32 %v2470, %v2471
    %v2473 = vtanh.pop %v2472
    %v2474 = vmul.f32 %v2469, %v2473
    %s2475 = scalar_lea.vmem [#allocation11], 80
    %2476 = vst [vmem:[%s2475] sm:$0xff] %v2456
    %2477 = vst [vmem:[%s2475 + $0x8] sm:$0xff] %v2474
    %s2478 = scalar_lea.vmem [#allocation6], 384
    %v2479 = vld [vmem:[%s2478] sm:$0xff]
    %v2480 = vld [vmem:[%s2478 + $0x8] sm:$0xff]
    %v2481 = vld [vmem:[%s2478 + $0x10] sm:$0xff]
    %v2482 = vld [vmem:[%s2478 + $0x18] sm:$0xff]
    %v2483 = vld [vmem:[%s2478 + $0x20] sm:$0xff]
    %v2484 = vld [vmem:[%s2478 + $0x28] sm:$0xff]
    %v2485 = vld [vmem:[%s2478 + $0x30] sm:$0xff]
    %v2486 = vld [vmem:[%s2478 + $0x38] sm:$0xff]
    %v2487 = vld [vmem:[#allocation9] sm:$0xff]
    %v2488 = vld [vmem:[#allocation9 + $0x8] sm:$0xff]
    %v2489 = vld [vmem:[#allocation9 + $0x10] sm:$0xff]
    %v2490 = vld [vmem:[#allocation9 + $0x18] sm:$0xff]
    %v2491 = vld [vmem:[#allocation9 + $0x20] sm:$0xff]
    %v2492 = vld [vmem:[#allocation9 + $0x28] sm:$0xff]
    %v2493 = vld [vmem:[#allocation9 + $0x30] sm:$0xff]
    %v2494 = vld [vmem:[#allocation9 + $0x38] sm:$0xff]
    %v2495 = vld [vmem:[#allocation9 + $0x40] sm:$0xff]
    %v2496 = vld [vmem:[#allocation9 + $0x48] sm:$0xff]
    %v2497 = vld [vmem:[#allocation9 + $0x50] sm:$0xff]
    %v2498 = vld [vmem:[#allocation9 + $0x58] sm:$0xff]
    %v2499 = vld [vmem:[#allocation9 + $0x60] sm:$0xff]
    %v2500 = vld [vmem:[#allocation9 + $0x68] sm:$0xff]
    %v2501 = vld [vmem:[#allocation9 + $0x70] sm:$0xff]
    %v2502 = vld [vmem:[#allocation9 + $0x78] sm:$0xff]
    %v2503 = vld [vmem:[#allocation9 + $0x80] sm:$0xff]
    %v2504 = vld [vmem:[#allocation9 + $0x88] sm:$0xff]
    %v2505 = vld [vmem:[#allocation9 + $0x90] sm:$0xff]
    %v2506 = vld [vmem:[#allocation9 + $0x98] sm:$0xff]
    %v2507 = vld [vmem:[#allocation9 + $0xa0] sm:$0xff]
    %v2508 = vld [vmem:[#allocation9 + $0xa8] sm:$0xff]
    %v2509 = vld [vmem:[#allocation9 + $0xb0] sm:$0xff]
    %v2510 = vld [vmem:[#allocation9 + $0xb8] sm:$0xff]
    %v2511 = vld [vmem:[#allocation9 + $0xc0] sm:$0xff]
    %v2512 = vld [vmem:[#allocation9 + $0xc8] sm:$0xff]
    %v2513 = vld [vmem:[#allocation9 + $0xd0] sm:$0xff]
    %v2514 = vld [vmem:[#allocation9 + $0xd8] sm:$0xff]
    %v2515 = vld [vmem:[#allocation9 + $0xe0] sm:$0xff]
    %v2516 = vld [vmem:[#allocation9 + $0xe8] sm:$0xff]
    %v2517 = vld [vmem:[#allocation9 + $0xf0] sm:$0xff]
    %v2518 = vld [vmem:[#allocation9 + $0xf8] sm:$0xff]
    %v2519 = vld [vmem:[#allocation9 + $0x100] sm:$0xff]
    %v2520 = vld [vmem:[#allocation9 + $0x108] sm:$0xff]
    %v2521 = vld [vmem:[#allocation9 + $0x110] sm:$0xff]
    %v2522 = vld [vmem:[#allocation9 + $0x118] sm:$0xff]
    %v2523 = vld [vmem:[#allocation9 + $0x120] sm:$0xff]
    %v2524 = vld [vmem:[#allocation9 + $0x128] sm:$0xff]
    %v2525 = vld [vmem:[#allocation9 + $0x130] sm:$0xff]
    %v2526 = vld [vmem:[#allocation9 + $0x138] sm:$0xff]
    %v2527 = vld [vmem:[#allocation9 + $0x140] sm:$0xff]
    %v2528 = vld [vmem:[#allocation9 + $0x148] sm:$0xff]
    %v2529 = vld [vmem:[#allocation9 + $0x150] sm:$0xff]
    %v2530 = vld [vmem:[#allocation9 + $0x158] sm:$0xff]
    %v2531 = vld [vmem:[#allocation9 + $0x160] sm:$0xff]
    %v2532 = vld [vmem:[#allocation9 + $0x168] sm:$0xff]
    %v2533 = vld [vmem:[#allocation9 + $0x170] sm:$0xff]
    %v2534 = vld [vmem:[#allocation9 + $0x178] sm:$0xff]
    %v2535 = vld [vmem:[#allocation9 + $0x180] sm:$0xff]
    %v2536 = vld [vmem:[#allocation9 + $0x188] sm:$0xff]
    %v2537 = vld [vmem:[#allocation9 + $0x190] sm:$0xff]
    %v2538 = vld [vmem:[#allocation9 + $0x198] sm:$0xff]
    %v2539 = vld [vmem:[#allocation9 + $0x1a0] sm:$0xff]
    %v2540 = vld [vmem:[#allocation9 + $0x1a8] sm:$0xff]
    %v2541 = vld [vmem:[#allocation9 + $0x1b0] sm:$0xff]
    %v2542 = vld [vmem:[#allocation9 + $0x1b8] sm:$0xff]
    %v2543 = vld [vmem:[#allocation9 + $0x1c0] sm:$0xff]
    %v2544 = vld [vmem:[#allocation9 + $0x1c8] sm:$0xff]
    %v2545 = vld [vmem:[#allocation9 + $0x1d0] sm:$0xff]
    %v2546 = vld [vmem:[#allocation9 + $0x1d8] sm:$0xff]
    %v2547 = vld [vmem:[#allocation9 + $0x1e0] sm:$0xff]
    %v2548 = vld [vmem:[#allocation9 + $0x1e8] sm:$0xff]
    %v2549 = vld [vmem:[#allocation9 + $0x1f0] sm:$0xff]
    %v2550 = vld [vmem:[#allocation9 + $0x1f8] sm:$0xff]
    %2551 = vmatprep.subr.mxu0 %v2488
    %2552 = vmatpush1.msra.mxu0 %v2487
    %2553 = vmatprep.subr.mxu0 %v2492
    %2554 = vmatpush1.msra.mxu0 %v2491
    %2555 = vmatprep.subr.mxu0 %v2496
    %2556 = vmatpush1.msra.mxu0 %v2495
    %2557 = vmatprep.subr.mxu0 %v2500
    %2558 = vmatpush1.msra.mxu0 %v2499
    %2559 = vmatprep.subr.mxu0 %v2504
    %2560 = vmatpush1.msra.mxu0 %v2503
    %2561 = vmatprep.subr.mxu0 %v2508
    %2562 = vmatpush1.msra.mxu0 %v2507
    %2563 = vmatprep.subr.mxu0 %v2512
    %2564 = vmatpush1.msra.mxu0 %v2511
    %2565 = vmatprep.subr.mxu0 %v2516
    %2566 = vmatpush1.msra.mxu0 %v2515
    %2567 = vmatprep.subr.mxu0 %v2520
    %2568 = vmatpush1.msra.mxu0 %v2519
    %2569 = vmatprep.subr.mxu0 %v2524
    %2570 = vmatpush1.msra.mxu0 %v2523
    %2571 = vmatprep.subr.mxu0 %v2528
    %2572 = vmatpush1.msra.mxu0 %v2527
    %2573 = vmatprep.subr.mxu0 %v2532
    %2574 = vmatpush1.msra.mxu0 %v2531
    %2575 = vmatprep.subr.mxu0 %v2536
    %2576 = vmatpush1.msra.mxu0 %v2535
    %2577 = vmatprep.subr.mxu0 %v2540
    %2578 = vmatpush1.msra.mxu0 %v2539
    %2579 = vmatprep.subr.mxu0 %v2544
    %2580 = vmatpush1.msra.mxu0 %v2543
    %2581 = vmatprep.subr.mxu0 %v2548
    %2582 = vmatpush1.msra.mxu0 %v2547
    %2583 = vmatprep.subr.mxu0 0.0
    %2584 = vmatpush1.msra.mxu0 0.0
    %2585 = vmatprep.subr.mxu0 0.0
    %2586 = vmatpush1.msra.mxu0 0.0
    %2587 = vmatprep.subr.mxu0 0.0
    %2588 = vmatpush1.msra.mxu0 0.0
    %2589 = vmatprep.subr.mxu0 0.0
    %2590 = vmatpush1.msra.mxu0 0.0
    %2591 = vmatprep.subr.mxu0 0.0
    %2592 = vmatpush1.msra.mxu0 0.0
    %2593 = vmatprep.subr.mxu0 0.0
    %2594 = vmatpush1.msra.mxu0 0.0
    %2595 = vmatprep.subr.mxu0 0.0
    %2596 = vmatpush1.msra.mxu0 0.0
    %2597 = vmatprep.subr.mxu0 0.0
    %2598 = vmatpush1.msra.mxu0 0.0
    %2599 = vmatprep.subr.mxu0 0.0
    %2600 = vmatpush1.msra.mxu0 0.0
    %2601 = vmatprep.subr.mxu0 0.0
    %2602 = vmatpush1.msra.mxu0 0.0
    %2603 = vmatprep.subr.mxu0 0.0
    %2604 = vmatpush1.msra.mxu0 0.0
    %2605 = vmatprep.subr.mxu0 0.0
    %2606 = vmatpush1.msra.mxu0 0.0
    %2607 = vmatprep.subr.mxu0 0.0
    %2608 = vmatpush1.msra.mxu0 0.0
    %2609 = vmatprep.subr.mxu0 0.0
    %2610 = vmatpush1.msra.mxu0 0.0
    %2611 = vmatprep.subr.mxu0 0.0
    %2612 = vmatpush1.msra.mxu0 0.0
    %2613 = vmatprep.subr.mxu0 0.0
    %2614 = vmatpush1.msra.mxu0 0.0
    %2615 = vmatprep.mubr.f32.mxu0 0.0
    %2616 = vmatmul.mubr.f32.gmra.mrb[0].mxu0 %v2456
    %v2617 = vpop.f32.mrb[0].mxu0
    %v2618 = vadd.f32 0.0, %v2617
    %v2619 = vpop.f32.mrb[0].mxu0
    %v2620 = vadd.f32 0.0, %v2619
    %2621 = vdwg.mxu0
    %2622 = vmatprep.subr.mxu0 %v2490
    %2623 = vmatpush1.msra.mxu0 %v2489
    %2624 = vmatprep.subr.mxu0 %v2494
    %2625 = vmatpush1.msra.mxu0 %v2493
    %2626 = vmatprep.subr.mxu0 %v2498
    %2627 = vmatpush1.msra.mxu0 %v2497
    %2628 = vmatprep.subr.mxu0 %v2502
    %2629 = vmatpush1.msra.mxu0 %v2501
    %2630 = vmatprep.subr.mxu0 %v2506
    %2631 = vmatpush1.msra.mxu0 %v2505
    %2632 = vmatprep.subr.mxu0 %v2510
    %2633 = vmatpush1.msra.mxu0 %v2509
    %2634 = vmatprep.subr.mxu0 %v2514
    %2635 = vmatpush1.msra.mxu0 %v2513
    %2636 = vmatprep.subr.mxu0 %v2518
    %2637 = vmatpush1.msra.mxu0 %v2517
    %2638 = vmatprep.subr.mxu0 %v2522
    %2639 = vmatpush1.msra.mxu0 %v2521
    %2640 = vmatprep.subr.mxu0 %v2526
    %2641 = vmatpush1.msra.mxu0 %v2525
    %2642 = vmatprep.subr.mxu0 %v2530
    %2643 = vmatpush1.msra.mxu0 %v2529
    %2644 = vmatprep.subr.mxu0 %v2534
    %2645 = vmatpush1.msra.mxu0 %v2533
    %2646 = vmatprep.subr.mxu0 %v2538
    %2647 = vmatpush1.msra.mxu0 %v2537
    %2648 = vmatprep.subr.mxu0 %v2542
    %2649 = vmatpush1.msra.mxu0 %v2541
    %2650 = vmatprep.subr.mxu0 %v2546
    %2651 = vmatpush1.msra.mxu0 %v2545
    %2652 = vmatprep.subr.mxu0 %v2550
    %2653 = vmatpush1.msra.mxu0 %v2549
    %2654 = vmatprep.subr.mxu0 0.0
    %2655 = vmatpush1.msra.mxu0 0.0
    %2656 = vmatprep.subr.mxu0 0.0
    %2657 = vmatpush1.msra.mxu0 0.0
    %2658 = vmatprep.subr.mxu0 0.0
    %2659 = vmatpush1.msra.mxu0 0.0
    %2660 = vmatprep.subr.mxu0 0.0
    %2661 = vmatpush1.msra.mxu0 0.0
    %2662 = vmatprep.subr.mxu0 0.0
    %2663 = vmatpush1.msra.mxu0 0.0
    %2664 = vmatprep.subr.mxu0 0.0
    %2665 = vmatpush1.msra.mxu0 0.0
    %2666 = vmatprep.subr.mxu0 0.0
    %2667 = vmatpush1.msra.mxu0 0.0
    %2668 = vmatprep.subr.mxu0 0.0
    %2669 = vmatpush1.msra.mxu0 0.0
    %2670 = vmatprep.subr.mxu0 0.0
    %2671 = vmatpush1.msra.mxu0 0.0
    %2672 = vmatprep.subr.mxu0 0.0
    %2673 = vmatpush1.msra.mxu0 0.0
    %2674 = vmatprep.subr.mxu0 0.0
    %2675 = vmatpush1.msra.mxu0 0.0
    %2676 = vmatprep.subr.mxu0 0.0
    %2677 = vmatpush1.msra.mxu0 0.0
    %2678 = vmatprep.subr.mxu0 0.0
    %2679 = vmatpush1.msra.mxu0 0.0
    %2680 = vmatprep.subr.mxu0 0.0
    %2681 = vmatpush1.msra.mxu0 0.0
    %2682 = vmatprep.subr.mxu0 0.0
    %2683 = vmatpush1.msra.mxu0 0.0
    %2684 = vmatprep.subr.mxu0 0.0
    %2685 = vmatpush1.msra.mxu0 0.0
    %2686 = vmatprep.mubr.f32.mxu0 0.0
    %2687 = vmatmul.mubr.f32.gmra.mrb[0].mxu0 %v2456
    %v2688 = vpop.f32.mrb[0].mxu0
    %v2689 = vadd.f32 0.0, %v2688
    %v2690 = vpop.f32.mrb[0].mxu0
    %v2691 = vadd.f32 0.0, %v2690
    %2692 = vdwg.mxu0
    %v2693 = vadd.f32 %v2479, %v2618
    %v2694 = vadd.f32 %v2480, %v2620
    %v2695 = vadd.f32 %v2481, %v2689
    %v2696 = vadd.f32 %v2482, %v2691
    %2697 = vmatprep.subr.mxu0 %v2488
    %2698 = vmatpush1.msra.mxu0 %v2487
    %2699 = vmatprep.subr.mxu0 %v2492
    %2700 = vmatpush1.msra.mxu0 %v2491
    %2701 = vmatprep.subr.mxu0 %v2496
    %2702 = vmatpush1.msra.mxu0 %v2495
    %2703 = vmatprep.subr.mxu0 %v2500
    %2704 = vmatpush1.msra.mxu0 %v2499
    %2705 = vmatprep.subr.mxu0 %v2504
    %2706 = vmatpush1.msra.mxu0 %v2503
    %2707 = vmatprep.subr.mxu0 %v2508
    %2708 = vmatpush1.msra.mxu0 %v2507
    %2709 = vmatprep.subr.mxu0 %v2512
    %2710 = vmatpush1.msra.mxu0 %v2511
    %2711 = vmatprep.subr.mxu0 %v2516
    %2712 = vmatpush1.msra.mxu0 %v2515
    %2713 = vmatprep.subr.mxu0 %v2520
    %2714 = vmatpush1.msra.mxu0 %v2519
    %2715 = vmatprep.subr.mxu0 %v2524
    %2716 = vmatpush1.msra.mxu0 %v2523
    %2717 = vmatprep.subr.mxu0 %v2528
    %2718 = vmatpush1.msra.mxu0 %v2527
    %2719 = vmatprep.subr.mxu0 %v2532
    %2720 = vmatpush1.msra.mxu0 %v2531
    %2721 = vmatprep.subr.mxu0 %v2536
    %2722 = vmatpush1.msra.mxu0 %v2535
    %2723 = vmatprep.subr.mxu0 %v2540
    %2724 = vmatpush1.msra.mxu0 %v2539
    %2725 = vmatprep.subr.mxu0 %v2544
    %2726 = vmatpush1.msra.mxu0 %v2543
    %2727 = vmatprep.subr.mxu0 %v2548
    %2728 = vmatpush1.msra.mxu0 %v2547
    %2729 = vmatprep.subr.mxu0 0.0
    %2730 = vmatpush1.msra.mxu0 0.0
    %2731 = vmatprep.subr.mxu0 0.0
    %2732 = vmatpush1.msra.mxu0 0.0
    %2733 = vmatprep.subr.mxu0 0.0
    %2734 = vmatpush1.msra.mxu0 0.0
    %2735 = vmatprep.subr.mxu0 0.0
    %2736 = vmatpush1.msra.mxu0 0.0
    %2737 = vmatprep.subr.mxu0 0.0
    %2738 = vmatpush1.msra.mxu0 0.0
    %2739 = vmatprep.subr.mxu0 0.0
    %2740 = vmatpush1.msra.mxu0 0.0
    %2741 = vmatprep.subr.mxu0 0.0
    %2742 = vmatpush1.msra.mxu0 0.0
    %2743 = vmatprep.subr.mxu0 0.0
    %2744 = vmatpush1.msra.mxu0 0.0
    %2745 = vmatprep.subr.mxu0 0.0
    %2746 = vmatpush1.msra.mxu0 0.0
    %2747 = vmatprep.subr.mxu0 0.0
    %2748 = vmatpush1.msra.mxu0 0.0
    %2749 = vmatprep.subr.mxu0 0.0
    %2750 = vmatpush1.msra.mxu0 0.0
    %2751 = vmatprep.subr.mxu0 0.0
    %2752 = vmatpush1.msra.mxu0 0.0
    %2753 = vmatprep.subr.mxu0 0.0
    %2754 = vmatpush1.msra.mxu0 0.0
    %2755 = vmatprep.subr.mxu0 0.0
    %2756 = vmatpush1.msra.mxu0 0.0
    %2757 = vmatprep.subr.mxu0 0.0
    %2758 = vmatpush1.msra.mxu0 0.0
    %2759 = vmatprep.subr.mxu0 0.0
    %2760 = vmatpush1.msra.mxu0 0.0
    %2761 = vmatprep.mubr.f32.mxu0 0.0
    %2762 = vmatmul.mubr.f32.gmra.mrb[0].mxu0 %v2474
    %v2763 = vpop.f32.mrb[0].mxu0
    %v2764 = vadd.f32 0.0, %v2763
    %v2765 = vpop.f32.mrb[0].mxu0
    %v2766 = vadd.f32 0.0, %v2765
    %2767 = vdwg.mxu0
    %2768 = vmatprep.subr.mxu0 %v2490
    %2769 = vmatpush1.msra.mxu0 %v2489
    %2770 = vmatprep.subr.mxu0 %v2494
    %2771 = vmatpush1.msra.mxu0 %v2493
    %2772 = vmatprep.subr.mxu0 %v2498
    %2773 = vmatpush1.msra.mxu0 %v2497
    %2774 = vmatprep.subr.mxu0 %v2502
    %2775 = vmatpush1.msra.mxu0 %v2501
    %2776 = vmatprep.subr.mxu0 %v2506
    %2777 = vmatpush1.msra.mxu0 %v2505
    %2778 = vmatprep.subr.mxu0 %v2510
    %2779 = vmatpush1.msra.mxu0 %v2509
    %2780 = vmatprep.subr.mxu0 %v2514
    %2781 = vmatpush1.msra.mxu0 %v2513
    %2782 = vmatprep.subr.mxu0 %v2518
    %2783 = vmatpush1.msra.mxu0 %v2517
    %2784 = vmatprep.subr.mxu0 %v2522
    %2785 = vmatpush1.msra.mxu0 %v2521
    %2786 = vmatprep.subr.mxu0 %v2526
    %2787 = vmatpush1.msra.mxu0 %v2525
    %2788 = vmatprep.subr.mxu0 %v2530
    %2789 = vmatpush1.msra.mxu0 %v2529
    %2790 = vmatprep.subr.mxu0 %v2534
    %2791 = vmatpush1.msra.mxu0 %v2533
    %2792 = vmatprep.subr.mxu0 %v2538
    %2793 = vmatpush1.msra.mxu0 %v2537
    %2794 = vmatprep.subr.mxu0 %v2542
    %2795 = vmatpush1.msra.mxu0 %v2541
    %2796 = vmatprep.subr.mxu0 %v2546
    %2797 = vmatpush1.msra.mxu0 %v2545
    %2798 = vmatprep.subr.mxu0 %v2550
    %2799 = vmatpush1.msra.mxu0 %v2549
    %2800 = vmatprep.subr.mxu0 0.0
    %2801 = vmatpush1.msra.mxu0 0.0
    %2802 = vmatprep.subr.mxu0 0.0
    %2803 = vmatpush1.msra.mxu0 0.0
    %2804 = vmatprep.subr.mxu0 0.0
    %2805 = vmatpush1.msra.mxu0 0.0
    %2806 = vmatprep.subr.mxu0 0.0
    %2807 = vmatpush1.msra.mxu0 0.0
    %2808 = vmatprep.subr.mxu0 0.0
    %2809 = vmatpush1.msra.mxu0 0.0
    %2810 = vmatprep.subr.mxu0 0.0
    %2811 = vmatpush1.msra.mxu0 0.0
    %2812 = vmatprep.subr.mxu0 0.0
    %2813 = vmatpush1.msra.mxu0 0.0
    %2814 = vmatprep.subr.mxu0 0.0
    %2815 = vmatpush1.msra.mxu0 0.0
    %2816 = vmatprep.subr.mxu0 0.0
    %2817 = vmatpush1.msra.mxu0 0.0
    %2818 = vmatprep.subr.mxu0 0.0
    %2819 = vmatpush1.msra.mxu0 0.0
    %2820 = vmatprep.subr.mxu0 0.0
    %2821 = vmatpush1.msra.mxu0 0.0
    %2822 = vmatprep.subr.mxu0 0.0
    %2823 = vmatpush1.msra.mxu0 0.0
    %2824 = vmatprep.subr.mxu0 0.0
    %2825 = vmatpush1.msra.mxu0 0.0
    %2826 = vmatprep.subr.mxu0 0.0
    %2827 = vmatpush1.msra.mxu0 0.0
    %2828 = vmatprep.subr.mxu0 0.0
    %2829 = vmatpush1.msra.mxu0 0.0
    %2830 = vmatprep.subr.mxu0 0.0
    %2831 = vmatpush1.msra.mxu0 0.0
    %2832 = vmatprep.mubr.f32.mxu0 0.0
    %2833 = vmatmul.mubr.f32.gmra.mrb[0].mxu0 %v2474
    %v2834 = vpop.f32.mrb[0].mxu0
    %v2835 = vadd.f32 0.0, %v2834
    %v2836 = vpop.f32.mrb[0].mxu0
    %v2837 = vadd.f32 0.0, %v2836
    %2838 = vdwg.mxu0
    %v2839 = vadd.f32 %v2483, %v2764
    %v2840 = vadd.f32 %v2484, %v2766
    %v2841 = vadd.f32 %v2485, %v2835
    %v2842 = vadd.f32 %v2486, %v2837
    %v2843 = vmul.f32 %v2693, 0.5
    %v2844 = vtanh.pop %v2843
    %v2845 = vmul.f32 %v2844, 0.5
    %v2846 = vadd.f32 %v2845, 0.5
    %v2847 = vmul.f32 %v2694, 0.5
    %v2848 = vtanh.pop %v2847
    %v2849 = vmul.f32 %v2848, 0.5
    %v2850 = vadd.f32 %v2849, 0.5
    %v2851 = vtanh.pop %v2695
    %v2852 = vmul.f32 %v2696, 0.5
    %v2853 = vtanh.pop %v2852
    %v2854 = vmul.f32 %v2853, 0.5
    %v2855 = vadd.f32 %v2854, 0.5
    %v2856 = vmul.f32 %v2850, %v2454
    %v2857 = vmul.f32 %v2846, %v2851
    %v2858 = vadd.f32 %v2856, %v2857
    %v2859 = vtanh.pop %v2858
    %v2860 = vmul.f32 %v2855, %v2859
    %v2861 = vmul.f32 %v2839, 0.5
    %v2862 = vtanh.pop %v2861
    %v2863 = vmul.f32 %v2862, 0.5
    %v2864 = vadd.f32 %v2863, 0.5
    %v2865 = vmul.f32 %v2840, 0.5
    %v2866 = vtanh.pop %v2865
    %v2867 = vmul.f32 %v2866, 0.5
    %v2868 = vadd.f32 %v2867, 0.5
    %v2869 = vtanh.pop %v2841
    %v2870 = vmul.f32 %v2842, 0.5
    %v2871 = vtanh.pop %v2870
    %v2872 = vmul.f32 %v2871, 0.5
    %v2873 = vadd.f32 %v2872, 0.5
    %v2874 = vmul.f32 %v2868, %v2472
    %v2875 = vmul.f32 %v2864, %v2869
    %v2876 = vadd.f32 %v2874, %v2875
    %v2877 = vtanh.pop %v2876
    %v2878 = vmul.f32 %v2873, %v2877
    %s2879 = scalar_lea.vmem [#allocation11], 96
    %2880 = vst [vmem:[%s2879] sm:$0xff] %v2860
    %2881 = vst [vmem:[%s2879 + $0x8] sm:$0xff] %v2878
    %s2882 = scalar_lea.vmem [#allocation6], 448
    %v2883 = vld [vmem:[%s2882] sm:$0xff]
    %v2884 = vld [vmem:[%s2882 + $0x8] sm:$0xff]
    %v2885 = vld [vmem:[%s2882 + $0x10] sm:$0xff]
    %v2886 = vld [vmem:[%s2882 + $0x18] sm:$0xff]
    %v2887 = vld [vmem:[%s2882 + $0x20] sm:$0xff]
    %v2888 = vld [vmem:[%s2882 + $0x28] sm:$0xff]
    %v2889 = vld [vmem:[%s2882 + $0x30] sm:$0xff]
    %v2890 = vld [vmem:[%s2882 + $0x38] sm:$0xff]
    %v2891 = vld [vmem:[#allocation9] sm:$0xff]
    %v2892 = vld [vmem:[#allocation9 + $0x8] sm:$0xff]
    %v2893 = vld [vmem:[#allocation9 + $0x10] sm:$0xff]
    %v2894 = vld [vmem:[#allocation9 + $0x18] sm:$0xff]
    %v2895 = vld [vmem:[#allocation9 + $0x20] sm:$0xff]
    %v2896 = vld [vmem:[#allocation9 + $0x28] sm:$0xff]
    %v2897 = vld [vmem:[#allocation9 + $0x30] sm:$0xff]
    %v2898 = vld [vmem:[#allocation9 + $0x38] sm:$0xff]
    %v2899 = vld [vmem:[#allocation9 + $0x40] sm:$0xff]
    %v2900 = vld [vmem:[#allocation9 + $0x48] sm:$0xff]
    %v2901 = vld [vmem:[#allocation9 + $0x50] sm:$0xff]
    %v2902 = vld [vmem:[#allocation9 + $0x58] sm:$0xff]
    %v2903 = vld [vmem:[#allocation9 + $0x60] sm:$0xff]
    %v2904 = vld [vmem:[#allocation9 + $0x68] sm:$0xff]
    %v2905 = vld [vmem:[#allocation9 + $0x70] sm:$0xff]
    %v2906 = vld [vmem:[#allocation9 + $0x78] sm:$0xff]
    %v2907 = vld [vmem:[#allocation9 + $0x80] sm:$0xff]
    %v2908 = vld [vmem:[#allocation9 + $0x88] sm:$0xff]
    %v2909 = vld [vmem:[#allocation9 + $0x90] sm:$0xff]
    %v2910 = vld [vmem:[#allocation9 + $0x98] sm:$0xff]
    %v2911 = vld [vmem:[#allocation9 + $0xa0] sm:$0xff]
    %v2912 = vld [vmem:[#allocation9 + $0xa8] sm:$0xff]
    %v2913 = vld [vmem:[#allocation9 + $0xb0] sm:$0xff]
    %v2914 = vld [vmem:[#allocation9 + $0xb8] sm:$0xff]
    %v2915 = vld [vmem:[#allocation9 + $0xc0] sm:$0xff]
    %v2916 = vld [vmem:[#allocation9 + $0xc8] sm:$0xff]
    %v2917 = vld [vmem:[#allocation9 + $0xd0] sm:$0xff]
    %v2918 = vld [vmem:[#allocation9 + $0xd8] sm:$0xff]
    %v2919 = vld [vmem:[#allocation9 + $0xe0] sm:$0xff]
    %v2920 = vld [vmem:[#allocation9 + $0xe8] sm:$0xff]
    %v2921 = vld [vmem:[#allocation9 + $0xf0] sm:$0xff]
    %v2922 = vld [vmem:[#allocation9 + $0xf8] sm:$0xff]
    %v2923 = vld [vmem:[#allocation9 + $0x100] sm:$0xff]
    %v2924 = vld [vmem:[#allocation9 + $0x108] sm:$0xff]
    %v2925 = vld [vmem:[#allocation9 + $0x110] sm:$0xff]
    %v2926 = vld [vmem:[#allocation9 + $0x118] sm:$0xff]
    %v2927 = vld [vmem:[#allocation9 + $0x120] sm:$0xff]
    %v2928 = vld [vmem:[#allocation9 + $0x128] sm:$0xff]
    %v2929 = vld [vmem:[#allocation9 + $0x130] sm:$0xff]
    %v2930 = vld [vmem:[#allocation9 + $0x138] sm:$0xff]
    %v2931 = vld [vmem:[#allocation9 + $0x140] sm:$0xff]
    %v2932 = vld [vmem:[#allocation9 + $0x148] sm:$0xff]
    %v2933 = vld [vmem:[#allocation9 + $0x150] sm:$0xff]
    %v2934 = vld [vmem:[#allocation9 + $0x158] sm:$0xff]
    %v2935 = vld [vmem:[#allocation9 + $0x160] sm:$0xff]
    %v2936 = vld [vmem:[#allocation9 + $0x168] sm:$0xff]
    %v2937 = vld [vmem:[#allocation9 + $0x170] sm:$0xff]
    %v2938 = vld [vmem:[#allocation9 + $0x178] sm:$0xff]
    %v2939 = vld [vmem:[#allocation9 + $0x180] sm:$0xff]
    %v2940 = vld [vmem:[#allocation9 + $0x188] sm:$0xff]
    %v2941 = vld [vmem:[#allocation9 + $0x190] sm:$0xff]
    %v2942 = vld [vmem:[#allocation9 + $0x198] sm:$0xff]
    %v2943 = vld [vmem:[#allocation9 + $0x1a0] sm:$0xff]
    %v2944 = vld [vmem:[#allocation9 + $0x1a8] sm:$0xff]
    %v2945 = vld [vmem:[#allocation9 + $0x1b0] sm:$0xff]
    %v2946 = vld [vmem:[#allocation9 + $0x1b8] sm:$0xff]
    %v2947 = vld [vmem:[#allocation9 + $0x1c0] sm:$0xff]
    %v2948 = vld [vmem:[#allocation9 + $0x1c8] sm:$0xff]
    %v2949 = vld [vmem:[#allocation9 + $0x1d0] sm:$0xff]
    %v2950 = vld [vmem:[#allocation9 + $0x1d8] sm:$0xff]
    %v2951 = vld [vmem:[#allocation9 + $0x1e0] sm:$0xff]
    %v2952 = vld [vmem:[#allocation9 + $0x1e8] sm:$0xff]
    %v2953 = vld [vmem:[#allocation9 + $0x1f0] sm:$0xff]
    %v2954 = vld [vmem:[#allocation9 + $0x1f8] sm:$0xff]
    %2955 = vmatprep.subr.mxu0 %v2892
    %2956 = vmatpush1.msra.mxu0 %v2891
    %2957 = vmatprep.subr.mxu0 %v2896
    %2958 = vmatpush1.msra.mxu0 %v2895
    %2959 = vmatprep.subr.mxu0 %v2900
    %2960 = vmatpush1.msra.mxu0 %v2899
    %2961 = vmatprep.subr.mxu0 %v2904
    %2962 = vmatpush1.msra.mxu0 %v2903
    %2963 = vmatprep.subr.mxu0 %v2908
    %2964 = vmatpush1.msra.mxu0 %v2907
    %2965 = vmatprep.subr.mxu0 %v2912
    %2966 = vmatpush1.msra.mxu0 %v2911
    %2967 = vmatprep.subr.mxu0 %v2916
    %2968 = vmatpush1.msra.mxu0 %v2915
    %2969 = vmatprep.subr.mxu0 %v2920
    %2970 = vmatpush1.msra.mxu0 %v2919
    %2971 = vmatprep.subr.mxu0 %v2924
    %2972 = vmatpush1.msra.mxu0 %v2923
    %2973 = vmatprep.subr.mxu0 %v2928
    %2974 = vmatpush1.msra.mxu0 %v2927
    %2975 = vmatprep.subr.mxu0 %v2932
    %2976 = vmatpush1.msra.mxu0 %v2931
    %2977 = vmatprep.subr.mxu0 %v2936
    %2978 = vmatpush1.msra.mxu0 %v2935
    %2979 = vmatprep.subr.mxu0 %v2940
    %2980 = vmatpush1.msra.mxu0 %v2939
    %2981 = vmatprep.subr.mxu0 %v2944
    %2982 = vmatpush1.msra.mxu0 %v2943
    %2983 = vmatprep.subr.mxu0 %v2948
    %2984 = vmatpush1.msra.mxu0 %v2947
    %2985 = vmatprep.subr.mxu0 %v2952
    %2986 = vmatpush1.msra.mxu0 %v2951
    %2987 = vmatprep.subr.mxu0 0.0
    %2988 = vmatpush1.msra.mxu0 0.0
    %2989 = vmatprep.subr.mxu0 0.0
    %2990 = vmatpush1.msra.mxu0 0.0
    %2991 = vmatprep.subr.mxu0 0.0
    %2992 = vmatpush1.msra.mxu0 0.0
    %2993 = vmatprep.subr.mxu0 0.0
    %2994 = vmatpush1.msra.mxu0 0.0
    %2995 = vmatprep.subr.mxu0 0.0
    %2996 = vmatpush1.msra.mxu0 0.0
    %2997 = vmatprep.subr.mxu0 0.0
    %2998 = vmatpush1.msra.mxu0 0.0
    %2999 = vmatprep.subr.mxu0 0.0
    %3000 = vmatpush1.msra.mxu0 0.0
    %3001 = vmatprep.subr.mxu0 0.0
    %3002 = vmatpush1.msra.mxu0 0.0
    %3003 = vmatprep.subr.mxu0 0.0
    %3004 = vmatpush1.msra.mxu0 0.0
    %3005 = vmatprep.subr.mxu0 0.0
    %3006 = vmatpush1.msra.mxu0 0.0
    %3007 = vmatprep.subr.mxu0 0.0
    %3008 = vmatpush1.msra.mxu0 0.0
    %3009 = vmatprep.subr.mxu0 0.0
    %3010 = vmatpush1.msra.mxu0 0.0
    %3011 = vmatprep.subr.mxu0 0.0
    %3012 = vmatpush1.msra.mxu0 0.0
    %3013 = vmatprep.subr.mxu0 0.0
    %3014 = vmatpush1.msra.mxu0 0.0
    %3015 = vmatprep.subr.mxu0 0.0
    %3016 = vmatpush1.msra.mxu0 0.0
    %3017 = vmatprep.subr.mxu0 0.0
    %3018 = vmatpush1.msra.mxu0 0.0
    %3019 = vmatprep.mubr.f32.mxu0 0.0
    %3020 = vmatmul.mubr.f32.gmra.mrb[0].mxu0 %v2860
    %v3021 = vpop.f32.mrb[0].mxu0
    %v3022 = vadd.f32 0.0, %v3021
    %v3023 = vpop.f32.mrb[0].mxu0
    %v3024 = vadd.f32 0.0, %v3023
    %3025 = vdwg.mxu0
    %3026 = vmatprep.subr.mxu0 %v2894
    %3027 = vmatpush1.msra.mxu0 %v2893
    %3028 = vmatprep.subr.mxu0 %v2898
    %3029 = vmatpush1.msra.mxu0 %v2897
    %3030 = vmatprep.subr.mxu0 %v2902
    %3031 = vmatpush1.msra.mxu0 %v2901
    %3032 = vmatprep.subr.mxu0 %v2906
    %3033 = vmatpush1.msra.mxu0 %v2905
    %3034 = vmatprep.subr.mxu0 %v2910
    %3035 = vmatpush1.msra.mxu0 %v2909
    %3036 = vmatprep.subr.mxu0 %v2914
    %3037 = vmatpush1.msra.mxu0 %v2913
    %3038 = vmatprep.subr.mxu0 %v2918
    %3039 = vmatpush1.msra.mxu0 %v2917
    %3040 = vmatprep.subr.mxu0 %v2922
    %3041 = vmatpush1.msra.mxu0 %v2921
    %3042 = vmatprep.subr.mxu0 %v2926
    %3043 = vmatpush1.msra.mxu0 %v2925
    %3044 = vmatprep.subr.mxu0 %v2930
    %3045 = vmatpush1.msra.mxu0 %v2929
    %3046 = vmatprep.subr.mxu0 %v2934
    %3047 = vmatpush1.msra.mxu0 %v2933
    %3048 = vmatprep.subr.mxu0 %v2938
    %3049 = vmatpush1.msra.mxu0 %v2937
    %3050 = vmatprep.subr.mxu0 %v2942
    %3051 = vmatpush1.msra.mxu0 %v2941
    %3052 = vmatprep.subr.mxu0 %v2946
    %3053 = vmatpush1.msra.mxu0 %v2945
    %3054 = vmatprep.subr.mxu0 %v2950
    %3055 = vmatpush1.msra.mxu0 %v2949
    %3056 = vmatprep.subr.mxu0 %v2954
    %3057 = vmatpush1.msra.mxu0 %v2953
    %3058 = vmatprep.subr.mxu0 0.0
    %3059 = vmatpush1.msra.mxu0 0.0
    %3060 = vmatprep.subr.mxu0 0.0
    %3061 = vmatpush1.msra.mxu0 0.0
    %3062 = vmatprep.subr.mxu0 0.0
    %3063 = vmatpush1.msra.mxu0 0.0
    %3064 = vmatprep.subr.mxu0 0.0
    %3065 = vmatpush1.msra.mxu0 0.0
    %3066 = vmatprep.subr.mxu0 0.0
    %3067 = vmatpush1.msra.mxu0 0.0
    %3068 = vmatprep.subr.mxu0 0.0
    %3069 = vmatpush1.msra.mxu0 0.0
    %3070 = vmatprep.subr.mxu0 0.0
    %3071 = vmatpush1.msra.mxu0 0.0
    %3072 = vmatprep.subr.mxu0 0.0
    %3073 = vmatpush1.msra.mxu0 0.0
    %3074 = vmatprep.subr.mxu0 0.0
    %3075 = vmatpush1.msra.mxu0 0.0
    %3076 = vmatprep.subr.mxu0 0.0
    %3077 = vmatpush1.msra.mxu0 0.0
    %3078 = vmatprep.subr.mxu0 0.0
    %3079 = vmatpush1.msra.mxu0 0.0
    %3080 = vmatprep.subr.mxu0 0.0
    %3081 = vmatpush1.msra.mxu0 0.0
    %3082 = vmatprep.subr.mxu0 0.0
    %3083 = vmatpush1.msra.mxu0 0.0
    %3084 = vmatprep.subr.mxu0 0.0
    %3085 = vmatpush1.msra.mxu0 0.0
    %3086 = vmatprep.subr.mxu0 0.0
    %3087 = vmatpush1.msra.mxu0 0.0
    %3088 = vmatprep.subr.mxu0 0.0
    %3089 = vmatpush1.msra.mxu0 0.0
    %3090 = vmatprep.mubr.f32.mxu0 0.0
    %3091 = vmatmul.mubr.f32.gmra.mrb[0].mxu0 %v2860
    %v3092 = vpop.f32.mrb[0].mxu0
    %v3093 = vadd.f32 0.0, %v3092
    %v3094 = vpop.f32.mrb[0].mxu0
    %v3095 = vadd.f32 0.0, %v3094
    %3096 = vdwg.mxu0
    %v3097 = vadd.f32 %v2883, %v3022
    %v3098 = vadd.f32 %v2884, %v3024
    %v3099 = vadd.f32 %v2885, %v3093
    %v3100 = vadd.f32 %v2886, %v3095
    %3101 = vmatprep.subr.mxu0 %v2892
    %3102 = vmatpush1.msra.mxu0 %v2891
    %3103 = vmatprep.subr.mxu0 %v2896
    %3104 = vmatpush1.msra.mxu0 %v2895
    %3105 = vmatprep.subr.mxu0 %v2900
    %3106 = vmatpush1.msra.mxu0 %v2899
    %3107 = vmatprep.subr.mxu0 %v2904
    %3108 = vmatpush1.msra.mxu0 %v2903
    %3109 = vmatprep.subr.mxu0 %v2908
    %3110 = vmatpush1.msra.mxu0 %v2907
    %3111 = vmatprep.subr.mxu0 %v2912
    %3112 = vmatpush1.msra.mxu0 %v2911
    %3113 = vmatprep.subr.mxu0 %v2916
    %3114 = vmatpush1.msra.mxu0 %v2915
    %3115 = vmatprep.subr.mxu0 %v2920
    %3116 = vmatpush1.msra.mxu0 %v2919
    %3117 = vmatprep.subr.mxu0 %v2924
    %3118 = vmatpush1.msra.mxu0 %v2923
    %3119 = vmatprep.subr.mxu0 %v2928
    %3120 = vmatpush1.msra.mxu0 %v2927
    %3121 = vmatprep.subr.mxu0 %v2932
    %3122 = vmatpush1.msra.mxu0 %v2931
    %3123 = vmatprep.subr.mxu0 %v2936
    %3124 = vmatpush1.msra.mxu0 %v2935
    %3125 = vmatprep.subr.mxu0 %v2940
    %3126 = vmatpush1.msra.mxu0 %v2939
    %3127 = vmatprep.subr.mxu0 %v2944
    %3128 = vmatpush1.msra.mxu0 %v2943
    %3129 = vmatprep.subr.mxu0 %v2948
    %3130 = vmatpush1.msra.mxu0 %v2947
    %3131 = vmatprep.subr.mxu0 %v2952
    %3132 = vmatpush1.msra.mxu0 %v2951
    %3133 = vmatprep.subr.mxu0 0.0
    %3134 = vmatpush1.msra.mxu0 0.0
    %3135 = vmatprep.subr.mxu0 0.0
    %3136 = vmatpush1.msra.mxu0 0.0
    %3137 = vmatprep.subr.mxu0 0.0
    %3138 = vmatpush1.msra.mxu0 0.0
    %3139 = vmatprep.subr.mxu0 0.0
    %3140 = vmatpush1.msra.mxu0 0.0
    %3141 = vmatprep.subr.mxu0 0.0
    %3142 = vmatpush1.msra.mxu0 0.0
    %3143 = vmatprep.subr.mxu0 0.0
    %3144 = vmatpush1.msra.mxu0 0.0
    %3145 = vmatprep.subr.mxu0 0.0
    %3146 = vmatpush1.msra.mxu0 0.0
    %3147 = vmatprep.subr.mxu0 0.0
    %3148 = vmatpush1.msra.mxu0 0.0
    %3149 = vmatprep.subr.mxu0 0.0
    %3150 = vmatpush1.msra.mxu0 0.0
    %3151 = vmatprep.subr.mxu0 0.0
    %3152 = vmatpush1.msra.mxu0 0.0
    %3153 = vmatprep.subr.mxu0 0.0
    %3154 = vmatpush1.msra.mxu0 0.0
    %3155 = vmatprep.subr.mxu0 0.0
    %3156 = vmatpush1.msra.mxu0 0.0
    %3157 = vmatprep.subr.mxu0 0.0
    %3158 = vmatpush1.msra.mxu0 0.0
    %3159 = vmatprep.subr.mxu0 0.0
    %3160 = vmatpush1.msra.mxu0 0.0
    %3161 = vmatprep.subr.mxu0 0.0
    %3162 = vmatpush1.msra.mxu0 0.0
    %3163 = vmatprep.subr.mxu0 0.0
    %3164 = vmatpush1.msra.mxu0 0.0
    %3165 = vmatprep.mubr.f32.mxu0 0.0
    %3166 = vmatmul.mubr.f32.gmra.mrb[0].mxu0 %v2878
    %v3167 = vpop.f32.mrb[0].mxu0
    %v3168 = vadd.f32 0.0, %v3167
    %v3169 = vpop.f32.mrb[0].mxu0
    %v3170 = vadd.f32 0.0, %v3169
    %3171 = vdwg.mxu0
    %3172 = vmatprep.subr.mxu0 %v2894
    %3173 = vmatpush1.msra.mxu0 %v2893
    %3174 = vmatprep.subr.mxu0 %v2898
    %3175 = vmatpush1.msra.mxu0 %v2897
    %3176 = vmatprep.subr.mxu0 %v2902
    %3177 = vmatpush1.msra.mxu0 %v2901
    %3178 = vmatprep.subr.mxu0 %v2906
    %3179 = vmatpush1.msra.mxu0 %v2905
    %3180 = vmatprep.subr.mxu0 %v2910
    %3181 = vmatpush1.msra.mxu0 %v2909
    %3182 = vmatprep.subr.mxu0 %v2914
    %3183 = vmatpush1.msra.mxu0 %v2913
    %3184 = vmatprep.subr.mxu0 %v2918
    %3185 = vmatpush1.msra.mxu0 %v2917
    %3186 = vmatprep.subr.mxu0 %v2922
    %3187 = vmatpush1.msra.mxu0 %v2921
    %3188 = vmatprep.subr.mxu0 %v2926
    %3189 = vmatpush1.msra.mxu0 %v2925
    %3190 = vmatprep.subr.mxu0 %v2930
    %3191 = vmatpush1.msra.mxu0 %v2929
    %3192 = vmatprep.subr.mxu0 %v2934
    %3193 = vmatpush1.msra.mxu0 %v2933
    %3194 = vmatprep.subr.mxu0 %v2938
    %3195 = vmatpush1.msra.mxu0 %v2937
    %3196 = vmatprep.subr.mxu0 %v2942
    %3197 = vmatpush1.msra.mxu0 %v2941
    %3198 = vmatprep.subr.mxu0 %v2946
    %3199 = vmatpush1.msra.mxu0 %v2945
    %3200 = vmatprep.subr.mxu0 %v2950
    %3201 = vmatpush1.msra.mxu0 %v2949
    %3202 = vmatprep.subr.mxu0 %v2954
    %3203 = vmatpush1.msra.mxu0 %v2953
    %3204 = vmatprep.subr.mxu0 0.0
    %3205 = vmatpush1.msra.mxu0 0.0
    %3206 = vmatprep.subr.mxu0 0.0
    %3207 = vmatpush1.msra.mxu0 0.0
    %3208 = vmatprep.subr.mxu0 0.0
    %3209 = vmatpush1.msra.mxu0 0.0
    %3210 = vmatprep.subr.mxu0 0.0
    %3211 = vmatpush1.msra.mxu0 0.0
    %3212 = vmatprep.subr.mxu0 0.0
    %3213 = vmatpush1.msra.mxu0 0.0
    %3214 = vmatprep.subr.mxu0 0.0
    %3215 = vmatpush1.msra.mxu0 0.0
    %3216 = vmatprep.subr.mxu0 0.0
    %3217 = vmatpush1.msra.mxu0 0.0
    %3218 = vmatprep.subr.mxu0 0.0
    %3219 = vmatpush1.msra.mxu0 0.0
    %3220 = vmatprep.subr.mxu0 0.0
    %3221 = vmatpush1.msra.mxu0 0.0
    %3222 = vmatprep.subr.mxu0 0.0
    %3223 = vmatpush1.msra.mxu0 0.0
    %3224 = vmatprep.subr.mxu0 0.0
    %3225 = vmatpush1.msra.mxu0 0.0
    %3226 = vmatprep.subr.mxu0 0.0
    %3227 = vmatpush1.msra.mxu0 0.0
    %3228 = vmatprep.subr.mxu0 0.0
    %3229 = vmatpush1.msra.mxu0 0.0
    %3230 = vmatprep.subr.mxu0 0.0
    %3231 = vmatpush1.msra.mxu0 0.0
    %3232 = vmatprep.subr.mxu0 0.0
    %3233 = vmatpush1.msra.mxu0 0.0
    %3234 = vmatprep.subr.mxu0 0.0
    %3235 = vmatpush1.msra.mxu0 0.0
    %3236 = vmatprep.mubr.f32.mxu0 0.0
    %3237 = vmatmul.mubr.f32.gmra.mrb[0].mxu0 %v2878
    %v3238 = vpop.f32.mrb[0].mxu0
    %v3239 = vadd.f32 0.0, %v3238
    %v3240 = vpop.f32.mrb[0].mxu0
    %v3241 = vadd.f32 0.0, %v3240
    %3242 = vdwg.mxu0
    %v3243 = vadd.f32 %v2887, %v3168
    %v3244 = vadd.f32 %v2888, %v3170
    %v3245 = vadd.f32 %v2889, %v3239
    %v3246 = vadd.f32 %v2890, %v3241
    %v3247 = vmul.f32 %v3097, 0.5
    %v3248 = vtanh.pop %v3247
    %v3249 = vmul.f32 %v3248, 0.5
    %v3250 = vadd.f32 %v3249, 0.5
    %v3251 = vmul.f32 %v3098, 0.5
    %v3252 = vtanh.pop %v3251
    %v3253 = vmul.f32 %v3252, 0.5
    %v3254 = vadd.f32 %v3253, 0.5
    %v3255 = vtanh.pop %v3099
    %v3256 = vmul.f32 %v3100, 0.5
    %v3257 = vtanh.pop %v3256
    %v3258 = vmul.f32 %v3257, 0.5
    %v3259 = vadd.f32 %v3258, 0.5
    %v3260 = vmul.f32 %v3254, %v2858
    %v3261 = vmul.f32 %v3250, %v3255
    %v3262 = vadd.f32 %v3260, %v3261
    %v3263 = vtanh.pop %v3262
    %v3264 = vmul.f32 %v3259, %v3263
    %v3265 = vmul.f32 %v3243, 0.5
    %v3266 = vtanh.pop %v3265
    %v3267 = vmul.f32 %v3266, 0.5
    %v3268 = vadd.f32 %v3267, 0.5
    %v3269 = vmul.f32 %v3244, 0.5
    %v3270 = vtanh.pop %v3269
    %v3271 = vmul.f32 %v3270, 0.5
    %v3272 = vadd.f32 %v3271, 0.5
    %v3273 = vtanh.pop %v3245
    %v3274 = vmul.f32 %v3246, 0.5
    %v3275 = vtanh.pop %v3274
    %v3276 = vmul.f32 %v3275, 0.5
    %v3277 = vadd.f32 %v3276, 0.5
    %v3278 = vmul.f32 %v3272, %v2876
    %v3279 = vmul.f32 %v3268, %v3273
    %v3280 = vadd.f32 %v3278, %v3279
    %v3281 = vtanh.pop %v3280
    %v3282 = vmul.f32 %v3277, %v3281
    %s3283 = scalar_lea.vmem [#allocation11], 112
    %3284 = vst [vmem:[%s3283] sm:$0xff] %v3264
    %3285 = vst [vmem:[%s3283 + $0x8] sm:$0xff] %v3282
    %3286 = vst [vmem:[#allocation2] sm:$0xff] %v3264
    %3287 = vst [vmem:[#allocation3] sm:$0xff] %v3262
    %3288 = vst [vmem:[#allocation4] sm:$0xff] %v3282
    %3289 = vst [vmem:[#allocation5] sm:$0xff] %v3280
    // Predicated region
    $region22: #{tpu_custom_call.1} parent=1 // pred_check
      %p3290 = pneg %p44
    $region23: #{tpu_custom_call.1} parent=1 // pred_check_branch
      %3292 = sbr.rel (%p3290) target = $region25
    $region24: #{tpu_custom_call.1} parent=1 // pred_region
      %3293 = vst [vmem:[#allocation12] sm:$0xff] %v3264
      %3294 = vst [vmem:[#allocation12 + $0x8] sm:$0xff] %v3282
      %3295 = vst [vmem:[#allocation14] sm:$0xff] %v3262
      %3296 = vst [vmem:[#allocation14 + $0x8] sm:$0xff] %v3280
    $region25: #{tpu_custom_call.1} parent=1 // pred_fallthru
      _
    // Predicated region
    $region26: #{tpu_custom_call.1} parent=1 // pred_check
      _
    $region27: #{tpu_custom_call.1} parent=1 // pred_check_branch
      %3298 = sbr.rel (0) target = $region29
    $region28: #{tpu_custom_call.1} parent=1 // pred_region
      %s3300 = ssub.s32 2048, 2048
      %3301 = vsyncadd [#allocation8], %s3300
      %s3302 = sshll.u32 [#allocation11], 4
      %s3303 = int_to_ptr.vmem [resolvable:$true] %s3302
      %3308 = dma.vmem_to_hbm [thread:$0]  %s3303, 2048, %s2, [#allocation8], 128, 128, 8
    $region29: #{tpu_custom_call.1} parent=1 // pred_fallthru
      _
    // Predicated region
    $region30: #{tpu_custom_call.1} parent=1 // pred_check
      _
    $region31: #{tpu_custom_call.1} parent=1 // pred_check_branch
      %3310 = sbr.rel (0) target = $region33
    $region32: #{tpu_custom_call.1} parent=1 // pred_region
      %s3312 = ssub.s32 256, 256
      %3313 = vsyncadd [#allocation13], %s3312
      %s3314 = sshll.u32 [#allocation12], 4
      %s3315 = int_to_ptr.vmem [resolvable:$true] %s3314
      %3320 = dma.vmem_to_hbm [thread:$0]  %s3315, 256, %s3, [#allocation13], 128, 128, 8
    $region33: #{tpu_custom_call.1} parent=1 // pred_fallthru
      _
    // Predicated region
    $region34: #{tpu_custom_call.1} parent=1 // pred_check
      _
    $region35: #{tpu_custom_call.1} parent=1 // pred_check_branch
      %3322 = sbr.rel (0) target = $region37
    $region36: #{tpu_custom_call.1} parent=1 // pred_region
      %s3324 = ssub.s32 256, 256
      %3325 = vsyncadd [#allocation13], %s3324
      %s3326 = sshll.u32 [#allocation14], 4
      %s3327 = int_to_ptr.vmem [resolvable:$true] %s3326
      %3332 = dma.vmem_to_hbm [thread:$0]  %s3327, 256, %s4, [#allocation13], 128, 128, 8
    $region37: #{tpu_custom_call.1} parent=1 // pred_fallthru
      _
    // Predicated region
    $region38: #{tpu_custom_call.1} parent=1 // pred_check
      _
    $region39: #{tpu_custom_call.1} parent=1 // pred_check_branch
      %3334 = sbr.rel (0) target = $region41
    $region40: #{tpu_custom_call.1} parent=1 // pred_region
      %3335 = dma.done [#allocation8], 2048
    $region41: #{tpu_custom_call.1} parent=1 // pred_fallthru
      _
    // Predicated region
    $region42: #{tpu_custom_call.1} parent=1 // pred_check
      _
    $region43: #{tpu_custom_call.1} parent=1 // pred_check_branch
      %3337 = sbr.rel (0) target = $region45
    $region44: #{tpu_custom_call.1} parent=1 // pred_region
      %3338 = dma.done [#allocation13], 256
    $region45: #{tpu_custom_call.1} parent=1 // pred_fallthru
      _
    // Predicated region
    $region46: #{tpu_custom_call.1} parent=1 // pred_check
      _
    $region47: #{tpu_custom_call.1} parent=1 // pred_check_branch
      %3340 = sbr.rel (0) target = $region49
    $region48: #{tpu_custom_call.1} parent=1 // pred_region
      %3341 = dma.done [#allocation13], 256
    $region49: #{tpu_custom_call.1} parent=1 // pred_fallthru
      _
    %3342 = vsyncpa [#allocation7], 1
    %3343 = vsyncpa [#allocation10], 1
    %3344 = vsyncpa [#allocation8], 1
    %3345 = vsyncpa [#allocation13], 1

</llo_original>
